<compile_context>
chip_gen: v7x
topology: tpu7x:2x2x1
jax: 0.10.0
libtpu: 0.0.40
codegen_flags: <defaults>
</compile_context>

<pallas_src>
import jax
import jax.numpy as jnp
from jax.experimental import pallas as pl
from jax.experimental.pallas import tpu as pltpu

LEAKY_SLOPE = 0.2
BN_EPS = 0.8  # second positional arg of nn.BatchNorm1d(out_feat, 0.8) is eps

LATENT_DIM = 31           # latent_dim + 1 (label) = 32 -> lane friendly
COORD_SIZE = 64
BATCH = 8

LAYER_DIMS = [LATENT_DIM + 1, 64, 128, 256, 512, 1024, COORD_SIZE]


# ---------------------------------------------------------------------------
# Packed small-parameter vector layout (single f32 row, 128-lane-aligned segs)
# ---------------------------------------------------------------------------
def _pad128(n):
    return (n + 127) // 128 * 128


_SEGS = (
    ("b1", 64), ("w1l", 64),            # layer-1 bias + label row of W1
    ("g2", 128), ("be2", 128),          # BN gamma/beta, layers 2..5
    ("g3", 256), ("be3", 256),
    ("g4", 512), ("be4", 512),
    ("g5", 1024), ("be5", 1024),
    ("b6", 64),                         # final Linear bias
    ("s4", 512), ("s5", 1024), ("s6", 64),  # int8 dequant scales (per out column)
)
PACK_OFF = {}
_off = 0
for _name, _n in _SEGS:
    PACK_OFF[_name] = (_off, _n)
    _off += _pad128(_n)
PACK_LEN = _off  # multiple of 128


# ---------------------------------------------------------------------------
# Kernel helpers (epilogue math in f32; only MXU operands are bf16)
# ---------------------------------------------------------------------------
def _seg(packed_ref, name):
    off, n = PACK_OFF[name]
    return packed_ref[:, off:off + n]          # static, lane-aligned slice


def _matmul(x_f32, w_bf16):
    # bf16 x bf16 MXU matmul, f32 accumulate
    return jnp.dot(x_f32.astype(jnp.bfloat16), w_bf16,
                   preferred_element_type=jnp.float32)


def _dequant(wq_i8, scale_f32):
    # int8 -> f32 -> per-column scale -> bf16 (VPU only; MXU never sees ints)
    return (wq_i8.astype(jnp.float32) * scale_f32).astype(jnp.bfloat16)


def _leaky_relu(x):
    return jnp.maximum(x, LEAKY_SLOPE * x)


def _batch_norm(x, gamma, beta):
    # Training-mode batch norm: biased variance over batch axis, eps = 0.8
    mean = jnp.mean(x, axis=0, keepdims=True)
    centered = x - mean
    var = jnp.mean(centered * centered, axis=0, keepdims=True)
    return centered * jax.lax.rsqrt(var + BN_EPS) * gamma + beta


def decoder_kernel(labels_ref, noise_ref,
                   w1n_ref, w2_ref, w3_ref,
                   w4q_ref, w5q_ref, w6q_ref,
                   packed_ref, out_ref):
    labels = labels_ref[...]                   # (B, 1)  f32
    noise = noise_ref[...]                     # (B, 31) f32

    # block(latent_dim+1, 64, normalize=False): fused concat
    #   cat(labels, noise) @ W1 + b1 == labels * W1[0:1,:] + noise @ W1[1:,:] + b1
    h = (_matmul(noise, w1n_ref[...])
         + labels * _seg(packed_ref, "w1l")
         + _seg(packed_ref, "b1"))
    h = _leaky_relu(h)

    # blocks 2..5: Linear (bias cancelled by train-mode BN mean-centering) + BN + LeakyReLU
    h = _leaky_relu(_batch_norm(_matmul(h, w2_ref[...]),
                                _seg(packed_ref, "g2"), _seg(packed_ref, "be2")))
    h = _leaky_relu(_batch_norm(_matmul(h, w3_ref[...]),
                                _seg(packed_ref, "g3"), _seg(packed_ref, "be3")))

    w4 = _dequant(w4q_ref[...], _seg(packed_ref, "s4"))
    h = _leaky_relu(_batch_norm(_matmul(h, w4),
                                _seg(packed_ref, "g4"), _seg(packed_ref, "be4")))

    w5 = _dequant(w5q_ref[...], _seg(packed_ref, "s5"))
    h = _leaky_relu(_batch_norm(_matmul(h, w5),
                                _seg(packed_ref, "g5"), _seg(packed_ref, "be5")))

    # Linear(1024, coord_size) + Tanh
    w6 = _dequant(w6q_ref[...], _seg(packed_ref, "s6"))
    out_ref[...] = jnp.tanh(_matmul(h, w6) + _seg(packed_ref, "b6"))


# ---------------------------------------------------------------------------
# Parameters (deterministic init mimicking PyTorch default Linear init ranges)
# ---------------------------------------------------------------------------
def _quantize_per_col(w):
    scale = jnp.maximum(jnp.max(jnp.abs(w), axis=0, keepdims=True), 1e-8) / 127.0
    q = jnp.clip(jnp.round(w / scale), -127.0, 127.0).astype(jnp.int8)
    return q, scale


def init_params(key):
    w, b = {}, {}
    for i in range(6):
        fan_in, fan_out = LAYER_DIMS[i], LAYER_DIMS[i + 1]
        key, kw, kb = jax.random.split(key, 3)
        bound = 1.0 / jnp.sqrt(fan_in)
        # stored as (in, out): equivalent to PyTorch weight (out, in) transposed
        w[i + 1] = jax.random.uniform(kw, (fan_in, fan_out), jnp.float32, -bound, bound)
        b[i + 1] = jax.random.uniform(kb, (1, fan_out), jnp.float32, -bound, bound)

    # gen_input = cat((labels, noise), -1): row 0 of W1^T is the label input row.
    w1l = w[1][0:1, :]        # (1, 64)     -> goes into the packed vector
    w1n = w[1][1:, :]         # (31, 64)    -> bf16 MXU operand

    # Dominant weights in int8 with per-output-column scales.
    w4q, s4 = _quantize_per_col(w[4])
    w5q, s5 = _quantize_per_col(w[5])
    w6q, s6 = _quantize_per_col(w[6])

    # BatchNorm affine params (PyTorch init: gamma=1, beta=0)
    gamma = {i: jnp.ones((1, LAYER_DIMS[i]), jnp.float32) for i in range(2, 6)}
    beta = {i: jnp.zeros((1, LAYER_DIMS[i]), jnp.float32) for i in range(2, 6)}

    # Pack every tiny f32 vector into one lane-aligned row (single DMA).
    packed = jnp.zeros((1, PACK_LEN), jnp.float32)

    def put(p, name, val):
        off, n = PACK_OFF[name]
        return p.at[:, off:off + n].set(val.reshape(1, n))

    packed = put(packed, "b1", b[1])
    packed = put(packed, "w1l", w1l)
    for i in range(2, 6):
        packed = put(packed, f"g{i}", gamma[i])
        packed = put(packed, f"be{i}", beta[i])
    packed = put(packed, "b6", b[6])
    packed = put(packed, "s4", s4)
    packed = put(packed, "s5", s5)
    packed = put(packed, "s6", s6)
    # Note: b2..b5 exist in the PyTorch module but are cancelled exactly by the
    # training-mode BN mean-centering, so they are never shipped to the kernel.

    return {
        "w1n": w1n.astype(jnp.bfloat16),
        "w2": w[2].astype(jnp.bfloat16),
        "w3": w[3].astype(jnp.bfloat16),
        "w4q": w4q, "w5q": w5q, "w6q": w6q,
        "packed": packed,
    }


# ---------------------------------------------------------------------------
# Wrapper
# ---------------------------------------------------------------------------
def decoder_forward(noise, labels, params):
    batch = noise.shape[0]

    args = (
        labels.astype(jnp.float32),
        noise.astype(jnp.float32),
        params["w1n"], params["w2"], params["w3"],
        params["w4q"], params["w5q"], params["w6q"],
        params["packed"],
    )

    # Everything fits comfortably in VMEM (~1 MB of weights), so run the whole MLP
    # as a single grid-less pallas_call with full-array residency. Train-mode BN
    # statistics span the full batch, which forbids batch tiling; feature-axis
    # tiling (per-feature BN stats) would be the legal lever to engage both v7x
    # TensorCores if hidden sizes ever grow.
    vmem = pl.BlockSpec(memory_space=pltpu.MemorySpace.VMEM)

    flops = 2 * batch * sum(LAYER_DIMS[i] * LAYER_DIMS[i + 1] for i in range(6))
    bytes_accessed = (
        2 * (LATENT_DIM * 64 + 64 * 128 + 128 * 256)        # bf16 weights
        + (256 * 512 + 512 * 1024 + 1024 * COORD_SIZE)      # int8 weights
        + 4 * (PACK_LEN + batch * (LATENT_DIM + 1) + batch * COORD_SIZE)
    )
    transcendentals = batch * COORD_SIZE + (128 + 256 + 512 + 1024)  # tanh + rsqrt

    flat = pl.pallas_call(
        decoder_kernel,
        out_shape=jax.ShapeDtypeStruct((batch, COORD_SIZE), jnp.float32),
        in_specs=[vmem] * len(args),
        out_specs=vmem,
        compiler_params=pltpu.CompilerParams(vmem_limit_bytes=16 << 20),
        cost_estimate=pl.CostEstimate(flops=flops,
                                      bytes_accessed=bytes_accessed,
                                      transcendentals=transcendentals),
    )(*args)

    # coords.view(B, 1, coord_size)
    return flat.reshape(batch, 1, COORD_SIZE)


# ---------------------------------------------------------------------------
# Main
# ---------------------------------------------------------------------------
if __name__ == "__main__":
    key = jax.random.PRNGKey(0)
    kp, kn, kl = jax.random.split(key, 3)

    params = init_params(kp)
    noise = jax.random.normal(kn, (BATCH, LATENT_DIM), jnp.float32)
    labels = jax.random.uniform(kl, (BATCH, 1), jnp.float32)

    coords = decoder_forward(noise, labels, params)
    coords = jax.block_until_ready(coords)

    assert coords.shape == (BATCH, 1, COORD_SIZE), coords.shape
    assert coords.dtype == jnp.float32
    assert bool(jnp.all(jnp.isfinite(coords)))
    assert bool(jnp.all(jnp.abs(coords) <= 1.0))  # Tanh range

    print("KERNEL_OK")
</pallas_src>

<mosaic_0001>
module attributes {stable_mosaic.version = 11 : i64} {
  func.func @decoder_kernel(%arg0: memref<8x1xf32, #tpu.memory_space<vmem>>, %arg1: memref<8x31xf32, #tpu.memory_space<vmem>>, %arg2: memref<31x64xbf16, #tpu.memory_space<vmem>>, %arg3: memref<64x128xbf16, #tpu.memory_space<vmem>>, %arg4: memref<128x256xbf16, #tpu.memory_space<vmem>>, %arg5: memref<256x512xi8, #tpu.memory_space<vmem>>, %arg6: memref<512x1024xi8, #tpu.memory_space<vmem>>, %arg7: memref<1024x64xi8, #tpu.memory_space<vmem>>, %arg8: memref<1x5888xf32, #tpu.memory_space<vmem>>, %arg9: memref<8x64xf32, #tpu.memory_space<vmem>>) attributes {dimension_semantics = [], scalar_prefetch = 0 : i64, scratch_operands = 0 : i64, tpu.core_type = #tpu.core_type<tc>} {
    %c0 = arith.constant 0 : index
    %c0_0 = arith.constant 0 : index
    %0 = vector.load %arg0[%c0, %c0_0] : memref<8x1xf32, #tpu.memory_space<vmem>>, vector<8x1xf32>
    %c0_1 = arith.constant 0 : index
    %c0_2 = arith.constant 0 : index
    %1 = vector.load %arg1[%c0_1, %c0_2] : memref<8x31xf32, #tpu.memory_space<vmem>>, vector<8x31xf32>
    %c0_3 = arith.constant 0 : index
    %c0_4 = arith.constant 0 : index
    %2 = vector.load %arg2[%c0_3, %c0_4] : memref<31x64xbf16, #tpu.memory_space<vmem>>, vector<31x64xbf16>
    %3 = arith.truncf %1 : vector<8x31xf32> to vector<8x31xbf16>
    %cst = arith.constant dense<0.000000e+00> : vector<8x64xf32>
    %4 = tpu.matmul %3, %2, %cst {dimension_numbers = #tpu.dot_dimension_numbers<[1], [0], [0], [1], [0, 0, 1, 1], [], []>} : vector<8x31xbf16>, vector<31x64xbf16>, vector<8x64xf32> -> vector<8x64xf32>
    %c0_5 = arith.constant 0 : index
    %c128 = arith.constant 128 : index
    %5 = vector.load %arg8[%c0_5, %c128] : memref<1x5888xf32, #tpu.memory_space<vmem>>, vector<1x64xf32>
    %6 = vector.broadcast %0 : vector<8x1xf32> to vector<8x64xf32>
    %7 = vector.broadcast %5 : vector<1x64xf32> to vector<8x64xf32>
    %8 = arith.mulf %6, %7 : vector<8x64xf32>
    %9 = arith.addf %4, %8 : vector<8x64xf32>
    %c0_6 = arith.constant 0 : index
    %c0_7 = arith.constant 0 : index
    %10 = vector.load %arg8[%c0_6, %c0_7] : memref<1x5888xf32, #tpu.memory_space<vmem>>, vector<1x64xf32>
    %11 = vector.broadcast %10 : vector<1x64xf32> to vector<8x64xf32>
    %12 = arith.addf %9, %11 : vector<8x64xf32>
    %cst_8 = arith.constant 2.000000e-01 : f32
    %13 = vector.broadcast %cst_8 : f32 to vector<8x64xf32>
    %14 = arith.mulf %13, %12 : vector<8x64xf32>
    %15 = arith.maximumf %12, %14 : vector<8x64xf32>
    %c0_9 = arith.constant 0 : index
    %c0_10 = arith.constant 0 : index
    %16 = vector.load %arg3[%c0_9, %c0_10] : memref<64x128xbf16, #tpu.memory_space<vmem>>, vector<64x128xbf16>
    %17 = arith.truncf %15 : vector<8x64xf32> to vector<8x64xbf16>
    %cst_11 = arith.constant dense<0.000000e+00> : vector<8x128xf32>
    %18 = tpu.matmul %17, %16, %cst_11 {dimension_numbers = #tpu.dot_dimension_numbers<[1], [0], [0], [1], [0, 0, 1, 1], [], []>} : vector<8x64xbf16>, vector<64x128xbf16>, vector<8x128xf32> -> vector<8x128xf32>
    %c0_12 = arith.constant 0 : index
    %c256 = arith.constant 256 : index
    %19 = vector.load %arg8[%c0_12, %c256] : memref<1x5888xf32, #tpu.memory_space<vmem>>, vector<1x128xf32>
    %c0_13 = arith.constant 0 : index
    %c384 = arith.constant 384 : index
    %20 = vector.load %arg8[%c0_13, %c384] : memref<1x5888xf32, #tpu.memory_space<vmem>>, vector<1x128xf32>
    %cst_14 = arith.constant dense<0.000000e+00> : vector<128xf32>
    %21 = vector.multi_reduction <add>, %18, %cst_14 [0] : vector<8x128xf32> to vector<128xf32>
    %22 = vector.shape_cast %21 : vector<128xf32> to vector<1x128xf32>
    %cst_15 = arith.constant 8.000000e+00 : f32
    %23 = vector.broadcast %cst_15 : f32 to vector<1x128xf32>
    %24 = arith.divf %22, %23 : vector<1x128xf32>
    %25 = vector.broadcast %24 : vector<1x128xf32> to vector<8x128xf32>
    %26 = arith.subf %18, %25 : vector<8x128xf32>
    %27 = arith.mulf %26, %26 : vector<8x128xf32>
    %cst_16 = arith.constant dense<0.000000e+00> : vector<128xf32>
    %28 = vector.multi_reduction <add>, %27, %cst_16 [0] : vector<8x128xf32> to vector<128xf32>
    %29 = vector.shape_cast %28 : vector<128xf32> to vector<1x128xf32>
    %cst_17 = arith.constant 8.000000e+00 : f32
    %30 = vector.broadcast %cst_17 : f32 to vector<1x128xf32>
    %31 = arith.divf %29, %30 : vector<1x128xf32>
    %cst_18 = arith.constant 8.000000e-01 : f32
    %32 = vector.broadcast %cst_18 : f32 to vector<1x128xf32>
    %33 = arith.addf %31, %32 : vector<1x128xf32>
    %34 = math.rsqrt %33 : vector<1x128xf32>
    %35 = vector.broadcast %34 : vector<1x128xf32> to vector<8x128xf32>
    %36 = arith.mulf %26, %35 : vector<8x128xf32>
    %37 = vector.broadcast %19 : vector<1x128xf32> to vector<8x128xf32>
    %38 = arith.mulf %36, %37 : vector<8x128xf32>
    %39 = vector.broadcast %20 : vector<1x128xf32> to vector<8x128xf32>
    %40 = arith.addf %38, %39 : vector<8x128xf32>
    %cst_19 = arith.constant 2.000000e-01 : f32
    %41 = vector.broadcast %cst_19 : f32 to vector<8x128xf32>
    %42 = arith.mulf %41, %40 : vector<8x128xf32>
    %43 = arith.maximumf %40, %42 : vector<8x128xf32>
    %c0_20 = arith.constant 0 : index
    %c0_21 = arith.constant 0 : index
    %44 = vector.load %arg4[%c0_20, %c0_21] : memref<128x256xbf16, #tpu.memory_space<vmem>>, vector<128x256xbf16>
    %45 = arith.truncf %43 : vector<8x128xf32> to vector<8x128xbf16>
    %cst_22 = arith.constant dense<0.000000e+00> : vector<8x256xf32>
    %46 = tpu.matmul %45, %44, %cst_22 {dimension_numbers = #tpu.dot_dimension_numbers<[1], [0], [0], [1], [0, 0, 1, 1], [], []>} : vector<8x128xbf16>, vector<128x256xbf16>, vector<8x256xf32> -> vector<8x256xf32>
    %c0_23 = arith.constant 0 : index
    %c512 = arith.constant 512 : index
    %47 = vector.load %arg8[%c0_23, %c512] : memref<1x5888xf32, #tpu.memory_space<vmem>>, vector<1x256xf32>
    %c0_24 = arith.constant 0 : index
    %c768 = arith.constant 768 : index
    %48 = vector.load %arg8[%c0_24, %c768] : memref<1x5888xf32, #tpu.memory_space<vmem>>, vector<1x256xf32>
    %cst_25 = arith.constant dense<0.000000e+00> : vector<256xf32>
    %49 = vector.multi_reduction <add>, %46, %cst_25 [0] : vector<8x256xf32> to vector<256xf32>
    %50 = vector.shape_cast %49 : vector<256xf32> to vector<1x256xf32>
    %cst_26 = arith.constant 8.000000e+00 : f32
    %51 = vector.broadcast %cst_26 : f32 to vector<1x256xf32>
    %52 = arith.divf %50, %51 : vector<1x256xf32>
    %53 = vector.broadcast %52 : vector<1x256xf32> to vector<8x256xf32>
    %54 = arith.subf %46, %53 : vector<8x256xf32>
    %55 = arith.mulf %54, %54 : vector<8x256xf32>
    %cst_27 = arith.constant dense<0.000000e+00> : vector<256xf32>
    %56 = vector.multi_reduction <add>, %55, %cst_27 [0] : vector<8x256xf32> to vector<256xf32>
    %57 = vector.shape_cast %56 : vector<256xf32> to vector<1x256xf32>
    %cst_28 = arith.constant 8.000000e+00 : f32
    %58 = vector.broadcast %cst_28 : f32 to vector<1x256xf32>
    %59 = arith.divf %57, %58 : vector<1x256xf32>
    %cst_29 = arith.constant 8.000000e-01 : f32
    %60 = vector.broadcast %cst_29 : f32 to vector<1x256xf32>
    %61 = arith.addf %59, %60 : vector<1x256xf32>
    %62 = math.rsqrt %61 : vector<1x256xf32>
    %63 = vector.broadcast %62 : vector<1x256xf32> to vector<8x256xf32>
    %64 = arith.mulf %54, %63 : vector<8x256xf32>
    %65 = vector.broadcast %47 : vector<1x256xf32> to vector<8x256xf32>
    %66 = arith.mulf %64, %65 : vector<8x256xf32>
    %67 = vector.broadcast %48 : vector<1x256xf32> to vector<8x256xf32>
    %68 = arith.addf %66, %67 : vector<8x256xf32>
    %cst_30 = arith.constant 2.000000e-01 : f32
    %69 = vector.broadcast %cst_30 : f32 to vector<8x256xf32>
    %70 = arith.mulf %69, %68 : vector<8x256xf32>
    %71 = arith.maximumf %68, %70 : vector<8x256xf32>
    %c0_31 = arith.constant 0 : index
    %c0_32 = arith.constant 0 : index
    %72 = vector.load %arg5[%c0_31, %c0_32] : memref<256x512xi8, #tpu.memory_space<vmem>>, vector<256x512xi8>
    %c0_33 = arith.constant 0 : index
    %c4224 = arith.constant 4224 : index
    %73 = vector.load %arg8[%c0_33, %c4224] : memref<1x5888xf32, #tpu.memory_space<vmem>>, vector<1x512xf32>
    %74 = arith.sitofp %72 : vector<256x512xi8> to vector<256x512xf32>
    %75 = vector.broadcast %73 : vector<1x512xf32> to vector<256x512xf32>
    %76 = arith.mulf %74, %75 : vector<256x512xf32>
    %77 = arith.truncf %76 : vector<256x512xf32> to vector<256x512xbf16>
    %78 = arith.truncf %71 : vector<8x256xf32> to vector<8x256xbf16>
    %cst_34 = arith.constant dense<0.000000e+00> : vector<8x512xf32>
    %79 = tpu.matmul %78, %77, %cst_34 {dimension_numbers = #tpu.dot_dimension_numbers<[1], [0], [0], [1], [0, 0, 1, 1], [], []>} : vector<8x256xbf16>, vector<256x512xbf16>, vector<8x512xf32> -> vector<8x512xf32>
    %c0_35 = arith.constant 0 : index
    %c1024 = arith.constant 1024 : index
    %80 = vector.load %arg8[%c0_35, %c1024] : memref<1x5888xf32, #tpu.memory_space<vmem>>, vector<1x512xf32>
    %c0_36 = arith.constant 0 : index
    %c1536 = arith.constant 1536 : index
    %81 = vector.load %arg8[%c0_36, %c1536] : memref<1x5888xf32, #tpu.memory_space<vmem>>, vector<1x512xf32>
    %cst_37 = arith.constant dense<0.000000e+00> : vector<512xf32>
    %82 = vector.multi_reduction <add>, %79, %cst_37 [0] : vector<8x512xf32> to vector<512xf32>
    %83 = vector.shape_cast %82 : vector<512xf32> to vector<1x512xf32>
    %cst_38 = arith.constant 8.000000e+00 : f32
    %84 = vector.broadcast %cst_38 : f32 to vector<1x512xf32>
    %85 = arith.divf %83, %84 : vector<1x512xf32>
    %86 = vector.broadcast %85 : vector<1x512xf32> to vector<8x512xf32>
    %87 = arith.subf %79, %86 : vector<8x512xf32>
    %88 = arith.mulf %87, %87 : vector<8x512xf32>
    %cst_39 = arith.constant dense<0.000000e+00> : vector<512xf32>
    %89 = vector.multi_reduction <add>, %88, %cst_39 [0] : vector<8x512xf32> to vector<512xf32>
    %90 = vector.shape_cast %89 : vector<512xf32> to vector<1x512xf32>
    %cst_40 = arith.constant 8.000000e+00 : f32
    %91 = vector.broadcast %cst_40 : f32 to vector<1x512xf32>
    %92 = arith.divf %90, %91 : vector<1x512xf32>
    %cst_41 = arith.constant 8.000000e-01 : f32
    %93 = vector.broadcast %cst_41 : f32 to vector<1x512xf32>
    %94 = arith.addf %92, %93 : vector<1x512xf32>
    %95 = math.rsqrt %94 : vector<1x512xf32>
    %96 = vector.broadcast %95 : vector<1x512xf32> to vector<8x512xf32>
    %97 = arith.mulf %87, %96 : vector<8x512xf32>
    %98 = vector.broadcast %80 : vector<1x512xf32> to vector<8x512xf32>
    %99 = arith.mulf %97, %98 : vector<8x512xf32>
    %100 = vector.broadcast %81 : vector<1x512xf32> to vector<8x512xf32>
    %101 = arith.addf %99, %100 : vector<8x512xf32>
    %cst_42 = arith.constant 2.000000e-01 : f32
    %102 = vector.broadcast %cst_42 : f32 to vector<8x512xf32>
    %103 = arith.mulf %102, %101 : vector<8x512xf32>
    %104 = arith.maximumf %101, %103 : vector<8x512xf32>
    %c0_43 = arith.constant 0 : index
    %c0_44 = arith.constant 0 : index
    %105 = vector.load %arg6[%c0_43, %c0_44] : memref<512x1024xi8, #tpu.memory_space<vmem>>, vector<512x1024xi8>
    %c0_45 = arith.constant 0 : index
    %c4736 = arith.constant 4736 : index
    %106 = vector.load %arg8[%c0_45, %c4736] : memref<1x5888xf32, #tpu.memory_space<vmem>>, vector<1x1024xf32>
    %107 = arith.sitofp %105 : vector<512x1024xi8> to vector<512x1024xf32>
    %108 = vector.broadcast %106 : vector<1x1024xf32> to vector<512x1024xf32>
    %109 = arith.mulf %107, %108 : vector<512x1024xf32>
    %110 = arith.truncf %109 : vector<512x1024xf32> to vector<512x1024xbf16>
    %111 = arith.truncf %104 : vector<8x512xf32> to vector<8x512xbf16>
    %cst_46 = arith.constant dense<0.000000e+00> : vector<8x1024xf32>
    %112 = tpu.matmul %111, %110, %cst_46 {dimension_numbers = #tpu.dot_dimension_numbers<[1], [0], [0], [1], [0, 0, 1, 1], [], []>} : vector<8x512xbf16>, vector<512x1024xbf16>, vector<8x1024xf32> -> vector<8x1024xf32>
    %c0_47 = arith.constant 0 : index
    %c2048 = arith.constant 2048 : index
    %113 = vector.load %arg8[%c0_47, %c2048] : memref<1x5888xf32, #tpu.memory_space<vmem>>, vector<1x1024xf32>
    %c0_48 = arith.constant 0 : index
    %c3072 = arith.constant 3072 : index
    %114 = vector.load %arg8[%c0_48, %c3072] : memref<1x5888xf32, #tpu.memory_space<vmem>>, vector<1x1024xf32>
    %cst_49 = arith.constant dense<0.000000e+00> : vector<1024xf32>
    %115 = vector.multi_reduction <add>, %112, %cst_49 [0] : vector<8x1024xf32> to vector<1024xf32>
    %116 = vector.shape_cast %115 : vector<1024xf32> to vector<1x1024xf32>
    %cst_50 = arith.constant 8.000000e+00 : f32
    %117 = vector.broadcast %cst_50 : f32 to vector<1x1024xf32>
    %118 = arith.divf %116, %117 : vector<1x1024xf32>
    %119 = vector.broadcast %118 : vector<1x1024xf32> to vector<8x1024xf32>
    %120 = arith.subf %112, %119 : vector<8x1024xf32>
    %121 = arith.mulf %120, %120 : vector<8x1024xf32>
    %cst_51 = arith.constant dense<0.000000e+00> : vector<1024xf32>
    %122 = vector.multi_reduction <add>, %121, %cst_51 [0] : vector<8x1024xf32> to vector<1024xf32>
    %123 = vector.shape_cast %122 : vector<1024xf32> to vector<1x1024xf32>
    %cst_52 = arith.constant 8.000000e+00 : f32
    %124 = vector.broadcast %cst_52 : f32 to vector<1x1024xf32>
    %125 = arith.divf %123, %124 : vector<1x1024xf32>
    %cst_53 = arith.constant 8.000000e-01 : f32
    %126 = vector.broadcast %cst_53 : f32 to vector<1x1024xf32>
    %127 = arith.addf %125, %126 : vector<1x1024xf32>
    %128 = math.rsqrt %127 : vector<1x1024xf32>
    %129 = vector.broadcast %128 : vector<1x1024xf32> to vector<8x1024xf32>
    %130 = arith.mulf %120, %129 : vector<8x1024xf32>
    %131 = vector.broadcast %113 : vector<1x1024xf32> to vector<8x1024xf32>
    %132 = arith.mulf %130, %131 : vector<8x1024xf32>
    %133 = vector.broadcast %114 : vector<1x1024xf32> to vector<8x1024xf32>
    %134 = arith.addf %132, %133 : vector<8x1024xf32>
    %cst_54 = arith.constant 2.000000e-01 : f32
    %135 = vector.broadcast %cst_54 : f32 to vector<8x1024xf32>
    %136 = arith.mulf %135, %134 : vector<8x1024xf32>
    %137 = arith.maximumf %134, %136 : vector<8x1024xf32>
    %c0_55 = arith.constant 0 : index
    %c0_56 = arith.constant 0 : index
    %138 = vector.load %arg7[%c0_55, %c0_56] : memref<1024x64xi8, #tpu.memory_space<vmem>>, vector<1024x64xi8>
    %c0_57 = arith.constant 0 : index
    %c5760 = arith.constant 5760 : index
    %139 = vector.load %arg8[%c0_57, %c5760] : memref<1x5888xf32, #tpu.memory_space<vmem>>, vector<1x64xf32>
    %140 = arith.sitofp %138 : vector<1024x64xi8> to vector<1024x64xf32>
    %141 = vector.broadcast %139 : vector<1x64xf32> to vector<1024x64xf32>
    %142 = arith.mulf %140, %141 : vector<1024x64xf32>
    %143 = arith.truncf %142 : vector<1024x64xf32> to vector<1024x64xbf16>
    %144 = arith.truncf %137 : vector<8x1024xf32> to vector<8x1024xbf16>
    %cst_58 = arith.constant dense<0.000000e+00> : vector<8x64xf32>
    %145 = tpu.matmul %144, %143, %cst_58 {dimension_numbers = #tpu.dot_dimension_numbers<[1], [0], [0], [1], [0, 0, 1, 1], [], []>} : vector<8x1024xbf16>, vector<1024x64xbf16>, vector<8x64xf32> -> vector<8x64xf32>
    %c0_59 = arith.constant 0 : index
    %c4096 = arith.constant 4096 : index
    %146 = vector.load %arg8[%c0_59, %c4096] : memref<1x5888xf32, #tpu.memory_space<vmem>>, vector<1x64xf32>
    %147 = vector.broadcast %146 : vector<1x64xf32> to vector<8x64xf32>
    %148 = arith.addf %145, %147 : vector<8x64xf32>
    %149 = math.tanh %148 : vector<8x64xf32>
    %c0_60 = arith.constant 0 : index
    %c0_61 = arith.constant 0 : index
    %150 = vector.load %arg9[%c0_60, %c0_61] : memref<8x64xf32, #tpu.memory_space<vmem>>, vector<8x64xf32>
    tpu.vector_store %arg9[%c0_60, %c0_61], %149 {strides = array<i32>} : memref<8x64xf32, #tpu.memory_space<vmem>>, vector<8x64xf32>,
    return
  }
}

</mosaic_0001>

<llo_original>
// kernel: tpu_custom_call.1
$region0: #{tpu_custom_call.1}
  #allocation0 [shape = 'u32[]', space=smem, size = 0x4, offset = 0x4, fixed_abs, tag = 'smem constant byte address 0x4 - core index']
  #allocation1 [shape = 'u32[144,128]{1,0:T(1,128)}', space=vmem, size = 0x12000, scoped, tag = 'internal scratch']
  %s0 = inlined_call_operand.vmem [shape: f32[8,1], index: 0, kind: input, shape index: {}]
  %s1 = inlined_call_operand.vmem [shape: f32[8,31], index: 1, kind: input, shape index: {}]
  %s2 = inlined_call_operand.vmem [shape: bf16[31,64], index: 2, kind: input, shape index: {}]
  %s3 = inlined_call_operand.hbm [shape: bf16[64,128], index: 3, kind: input, shape index: {}]
  %s4 = inlined_call_operand.vmem [shape: bf16[128,256], index: 4, kind: input, shape index: {}]
  %s5 = inlined_call_operand.vmem [shape: s8[256,512], index: 5, kind: input, shape index: {}]
  %s6 = inlined_call_operand.hbm [shape: s8[512,1024], index: 6, kind: input, shape index: {}]
  %s7 = inlined_call_operand.vmem [shape: s8[1024,64], index: 7, kind: input, shape index: {}]
  %s8 = inlined_call_operand.hbm [shape: f32[1,5888], index: 8, kind: input, shape index: {}]
  %s9 = inlined_call_operand.hbm [shape: f32[8,64], index: 9, kind: output, shape index: {}]
  %s10 = sld [smem:[#allocation0]]
  $region58: #{tpu_custom_call.1} parent=0
    _
  %s12 = ssub.s32 1, %s10
  %s13 = scalar_select 0, %s12, %s10
  $region1: #{tpu_custom_call.1} parent=0
    #allocation2 [shape = 'u8[16384]{0}', space=vmem, size = 0x4000, scoped, tag = 'input window, operand 3, single buffered']
    #allocation3 [shape = 's32[1]{0}', space=sflag, size = 0x4, scoped, tag = 'scoped memory for tpu_custom_call.1']
    #allocation4 [shape = 's32[1]{0}', space=sflag, size = 0x4, scoped, tag = 'scoped memory for tpu_custom_call.1']
    #allocation5 [shape = 'u8[524288]{0}', space=vmem, size = 0x80000, scoped, tag = 'input window, operand 6, single buffered']
    #allocation6 [shape = 's32[1]{0}', space=sflag, size = 0x4, scoped, tag = 'scoped memory for tpu_custom_call.1']
    #allocation7 [shape = 'u8[23552]{0}', space=vmem, size = 0x5c00, scoped, tag = 'input window, operand 8, single buffered']
    #allocation8 [shape = 'u8[4096]{0}', space=vmem, size = 0x1000, scoped, tag = 'output window, operand 0, single buffered']
    %14 = vsyncpa [#allocation3], 0
    %15 = vsyncpa [#allocation6], 0
    %16 = vsyncpa [#allocation4], 0
    // Predicated region
    $region2: #{tpu_custom_call.1} parent=1 // pred_check
      _
    $region3: #{tpu_custom_call.1} parent=1 // pred_check_branch
      %18 = sbr.rel (0) target = $region5
    $region4: #{tpu_custom_call.1} parent=1 // pred_region
      _
    $region5: #{tpu_custom_call.1} parent=1 // pred_fallthru
      _
    // Predicated region
    $region6: #{tpu_custom_call.1} parent=1 // pred_check
      _
    $region7: #{tpu_custom_call.1} parent=1 // pred_check_branch
      %20 = sbr.rel (0) target = $region9
    $region8: #{tpu_custom_call.1} parent=1 // pred_region
      _
    $region9: #{tpu_custom_call.1} parent=1 // pred_fallthru
      _
    // Predicated region
    $region10: #{tpu_custom_call.1} parent=1 // pred_check
      _
    $region11: #{tpu_custom_call.1} parent=1 // pred_check_branch
      %22 = sbr.rel (0) target = $region13
    $region12: #{tpu_custom_call.1} parent=1 // pred_region
      _
    $region13: #{tpu_custom_call.1} parent=1 // pred_fallthru
      _
    // Predicated region
    $region14: #{tpu_custom_call.1} parent=1 // pred_check
      _
    $region15: #{tpu_custom_call.1} parent=1 // pred_check_branch
      %24 = sbr.rel (0) target = $region17
    $region16: #{tpu_custom_call.1} parent=1 // pred_region
      %s26 = ssub.s32 512, 512
      %27 = vsyncadd [#allocation3], %s26
      %s28 = sshll.u32 [#allocation2], 4
      %s29 = int_to_ptr.vmem [resolvable:$true] %s28
      %34 = dma.hbm_to_vmem [thread:$0]  %s3, 512, %s29, [#allocation3], 64, 64, 4
    $region17: #{tpu_custom_call.1} parent=1 // pred_fallthru
      _
    // Predicated region
    $region18: #{tpu_custom_call.1} parent=1 // pred_check
      _
    $region19: #{tpu_custom_call.1} parent=1 // pred_check_branch
      %36 = sbr.rel (0) target = $region21
    $region20: #{tpu_custom_call.1} parent=1 // pred_region
      _
    $region21: #{tpu_custom_call.1} parent=1 // pred_fallthru
      _
    // Predicated region
    $region22: #{tpu_custom_call.1} parent=1 // pred_check
      _
    $region23: #{tpu_custom_call.1} parent=1 // pred_check_branch
      %38 = sbr.rel (0) target = $region25
    $region24: #{tpu_custom_call.1} parent=1 // pred_region
      _
    $region25: #{tpu_custom_call.1} parent=1 // pred_fallthru
      _
    // Predicated region
    $region26: #{tpu_custom_call.1} parent=1 // pred_check
      _
    $region27: #{tpu_custom_call.1} parent=1 // pred_check_branch
      %40 = sbr.rel (0) target = $region29
    $region28: #{tpu_custom_call.1} parent=1 // pred_region
      %s42 = ssub.s32 16384, 16384
      %43 = vsyncadd [#allocation6], %s42
      %s44 = sshll.u32 [#allocation5], 4
      %s45 = int_to_ptr.vmem [resolvable:$true] %s44
      %50 = dma.hbm_to_vmem [thread:$0]  %s6, 16384, %s45, [#allocation6], 1024, 1024, 64
    $region29: #{tpu_custom_call.1} parent=1 // pred_fallthru
      _
    // Predicated region
    $region30: #{tpu_custom_call.1} parent=1 // pred_check
      _
    $region31: #{tpu_custom_call.1} parent=1 // pred_check_branch
      %52 = sbr.rel (0) target = $region33
    $region32: #{tpu_custom_call.1} parent=1 // pred_region
      _
    $region33: #{tpu_custom_call.1} parent=1 // pred_fallthru
      _
    // Predicated region
    $region34: #{tpu_custom_call.1} parent=1 // pred_check
      _
    $region35: #{tpu_custom_call.1} parent=1 // pred_check_branch
      %54 = sbr.rel (0) target = $region37
    $region36: #{tpu_custom_call.1} parent=1 // pred_region
      %s56 = ssub.s32 736, 736
      %57 = vsyncadd [#allocation6], %s56
      %s59 = sshll.u32 [#allocation7], 4
      %s60 = int_to_ptr.vmem [resolvable:$true] %s59
      %62 = dma.hbm_to_vmem [thread:$0]  %s8, 736, %s60, [#allocation6]
    $region37: #{tpu_custom_call.1} parent=1 // pred_fallthru
      _
    // Predicated region
    $region38: #{tpu_custom_call.1} parent=1 // pred_check
      _
    $region39: #{tpu_custom_call.1} parent=1 // pred_check_branch
      %64 = sbr.rel (0) target = $region41
    $region40: #{tpu_custom_call.1} parent=1 // pred_region
      %65 = dma.done [#allocation3], 512
    $region41: #{tpu_custom_call.1} parent=1 // pred_fallthru
      _
    // Predicated region
    $region42: #{tpu_custom_call.1} parent=1 // pred_check
      _
    $region43: #{tpu_custom_call.1} parent=1 // pred_check_branch
      %67 = sbr.rel (0) target = $region45
    $region44: #{tpu_custom_call.1} parent=1 // pred_region
      %68 = dma.done [#allocation6], 16384
    $region45: #{tpu_custom_call.1} parent=1 // pred_fallthru
      _
    // Predicated region
    $region46: #{tpu_custom_call.1} parent=1 // pred_check
      _
    $region47: #{tpu_custom_call.1} parent=1 // pred_check_branch
      %70 = sbr.rel (0) target = $region49
    $region48: #{tpu_custom_call.1} parent=1 // pred_region
      %71 = dma.done [#allocation6], 736
    $region49: #{tpu_custom_call.1} parent=1 // pred_fallthru
      _
    %v73 = vld [vmem:[%s0] sm:$0xff]
    %v74 = vld [vmem:[%s1] sm:$0xff]
    %v75 = vld [vmem:[%s2] sm:$0xf]
    %v76 = vld [vmem:[%s2 + $0x4] sm:$0xf]
    %v77 = vld [vmem:[%s2 + $0x8] sm:$0xf]
    %v78 = vld [vmem:[%s2 + $0xc] sm:$0xf]
    %v79 = vpack.c.bf16 %v74, %v74
    %v80 = vld [vmem:[#allocation7 + $0x1] sm:$0x1]
    %82 = vset.pattern.permute.xlu0 0
    %83 = vperm.xlu0 %82, %v73
    %v84 = vpop.permute.xlu0 %83
    %v87 = vlaneseq
    %v88 = vshrl.u32 %v87, 7
    %v89 = vsub.s32 0, %v88
    %v90 = vrot.slane %v80, %v89
    %v92 = vmul.f32 %v84, %v90
    %v97 = vunpack.c.l.b16 %v75
    %v98 = vunpack.c.l.b16 %v76
    %v99 = vunpack.c.l.b16 %v77
    %v100 = vunpack.c.l.b16 %v78
    %v101 = vpack.c.b16 %v98, %v97
    %v102 = vpack.c.b16 %v100, %v99
    %vm104 = vcmask 252928
    %v106 = vsel %vm104, %v79, 0
    %vm108 = vcmask 1046528
    %vm109 = vcmask 1047552
    %v110 = vsel %vm108, 4294967295, 65535
    %v111 = vsel %vm109, %v110, 0
    %v113 = vand.u32 %v102, %v111
    %115 = vmatprep.subr.bf16.mxu0 0
    %116 = vmatpush1.bf16.msra.mxu0 %v101
    %117 = vmatprep.subr.bf16.mxu0 0
    %118 = vmatpush1.bf16.msra.mxu0 %v113
    %119 = vmatprep.subr.bf16.mxu0 0
    %120 = vmatpush1.bf16.msra.mxu0 0
    %121 = vmatprep.subr.bf16.mxu0 0
    %122 = vmatpush1.bf16.msra.mxu0 0
    %123 = vmatprep.subr.bf16.mxu0 0
    %124 = vmatpush1.bf16.msra.mxu0 0
    %125 = vmatprep.subr.bf16.mxu0 0
    %126 = vmatpush1.bf16.msra.mxu0 0
    %127 = vmatprep.subr.bf16.mxu0 0
    %128 = vmatpush1.bf16.msra.mxu0 0
    %129 = vmatprep.subr.bf16.mxu0 0
    %130 = vmatpush1.bf16.msra.mxu0 0
    %131 = vmatprep.subr.bf16.mxu0 0
    %132 = vmatpush1.bf16.msra.mxu0 0
    %133 = vmatprep.subr.bf16.mxu0 0
    %134 = vmatpush1.bf16.msra.mxu0 0
    %135 = vmatprep.subr.bf16.mxu0 0
    %136 = vmatpush1.bf16.msra.mxu0 0
    %137 = vmatprep.subr.bf16.mxu0 0
    %138 = vmatpush1.bf16.msra.mxu0 0
    %139 = vmatprep.subr.bf16.mxu0 0
    %140 = vmatpush1.bf16.msra.mxu0 0
    %141 = vmatprep.subr.bf16.mxu0 0
    %142 = vmatpush1.bf16.msra.mxu0 0
    %143 = vmatprep.subr.bf16.mxu0 0
    %144 = vmatpush1.bf16.msra.mxu0 0
    %145 = vmatprep.subr.bf16.mxu0 0
    %146 = vmatpush1.bf16.msra.mxu0 0
    %147 = vmatprep.mubr.bf16.mxu0 0
    %148 = vmatmul.mubr.bf16.gmra.mrb[0].mxu0 %v106
    %v149 = vpop.f32.mrb[0].mxu0
    %v150 = vadd.f32 %v92, %v149
    %v151 = vpop.f32.mrb[0].mxu0
    %v152 = vpop.f32.mrb[0].mxu0
    %v153 = vpop.f32.mrb[0].mxu0
    %154 = vdwg.mxu0
    %v155 = vld [vmem:[#allocation7] sm:$0x1]
    %v157 = vlaneseq
    %v158 = vshrl.u32 %v157, 7
    %v159 = vsub.s32 0, %v158
    %v160 = vrot.slane %v155, %v159
    %v162 = vadd.f32 %v150, %v160
    %v163 = vmul.f32 %v162, 0.2
    %v164 = vmax.f32 %v162, %v163
    %v165 = vld [vmem:[#allocation2] sm:$0xf]
    %v166 = vld [vmem:[#allocation2 + $0x4] sm:$0xf]
    %v167 = vld [vmem:[#allocation2 + $0x8] sm:$0xf]
    %v168 = vld [vmem:[#allocation2 + $0xc] sm:$0xf]
    %v169 = vld [vmem:[#allocation2 + $0x10] sm:$0xf]
    %v170 = vld [vmem:[#allocation2 + $0x14] sm:$0xf]
    %v171 = vld [vmem:[#allocation2 + $0x18] sm:$0xf]
    %v172 = vld [vmem:[#allocation2 + $0x1c] sm:$0xf]
    %v173 = vpack.c.bf16 %v164, %v164
    %v182 = vunpack.c.l.b16 %v165
    %v183 = vunpack.c.l.b16 %v166
    %v184 = vunpack.c.l.b16 %v167
    %v185 = vunpack.c.l.b16 %v168
    %v186 = vunpack.c.l.b16 %v169
    %v187 = vunpack.c.l.b16 %v170
    %v188 = vunpack.c.l.b16 %v171
    %v189 = vunpack.c.l.b16 %v172
    %v190 = vpack.c.b16 %v183, %v182
    %v191 = vpack.c.b16 %v185, %v184
    %v192 = vpack.c.b16 %v187, %v186
    %v193 = vpack.c.b16 %v189, %v188
    %vm198 = vcmask 523264
    %v200 = vsel %vm198, %v173, 0
    %202 = vmatprep.subr.bf16.mxu0 0
    %203 = vmatpush1.bf16.msra.mxu0 %v190
    %204 = vmatprep.subr.bf16.mxu0 0
    %205 = vmatpush1.bf16.msra.mxu0 %v191
    %206 = vmatprep.subr.bf16.mxu0 0
    %207 = vmatpush1.bf16.msra.mxu0 %v192
    %208 = vmatprep.subr.bf16.mxu0 0
    %209 = vmatpush1.bf16.msra.mxu0 %v193
    %210 = vmatprep.subr.bf16.mxu0 0
    %211 = vmatpush1.bf16.msra.mxu0 0
    %212 = vmatprep.subr.bf16.mxu0 0
    %213 = vmatpush1.bf16.msra.mxu0 0
    %214 = vmatprep.subr.bf16.mxu0 0
    %215 = vmatpush1.bf16.msra.mxu0 0
    %216 = vmatprep.subr.bf16.mxu0 0
    %217 = vmatpush1.bf16.msra.mxu0 0
    %218 = vmatprep.subr.bf16.mxu0 0
    %219 = vmatpush1.bf16.msra.mxu0 0
    %220 = vmatprep.subr.bf16.mxu0 0
    %221 = vmatpush1.bf16.msra.mxu0 0
    %222 = vmatprep.subr.bf16.mxu0 0
    %223 = vmatpush1.bf16.msra.mxu0 0
    %224 = vmatprep.subr.bf16.mxu0 0
    %225 = vmatpush1.bf16.msra.mxu0 0
    %226 = vmatprep.subr.bf16.mxu0 0
    %227 = vmatpush1.bf16.msra.mxu0 0
    %228 = vmatprep.subr.bf16.mxu0 0
    %229 = vmatpush1.bf16.msra.mxu0 0
    %230 = vmatprep.subr.bf16.mxu0 0
    %231 = vmatpush1.bf16.msra.mxu0 0
    %232 = vmatprep.subr.bf16.mxu0 0
    %233 = vmatpush1.bf16.msra.mxu0 0
    %234 = vmatprep.mubr.bf16.mxu0 0
    %235 = vmatmul.mubr.bf16.gmra.mrb[0].mxu0 %v200
    %v236 = vpop.f32.mrb[0].mxu0
    %v237 = vadd.f32 0.0, %v236
    %v238 = vpop.f32.mrb[0].mxu0
    %v239 = vpop.f32.mrb[0].mxu0
    %v240 = vpop.f32.mrb[0].mxu0
    %241 = vdwg.mxu0
    %v242 = vld [vmem:[#allocation7 + $0x2] sm:$0x1]
    %v243 = vld [vmem:[#allocation7 + $0x3] sm:$0x1]
    %v244 = vrot.slane %v237, 4
    %v245 = vadd.f32 %v237, %v244
    %v246 = vrot.slane %v245, 2
    %v247 = vadd.f32 %v245, %v246
    %v248 = vrot.slane %v247, 1
    %v249 = vadd.f32 %v247, %v248
    %v250 = vrcp.pop 8.0
    %v251 = vmul.f32 %v249, %v250
    %v252 = vsub.f32 %v237, %v251
    %v253 = vmul.f32 %v252, %v252
    %v254 = vrot.slane %v253, 4
    %v255 = vadd.f32 %v253, %v254
    %v256 = vrot.slane %v255, 2
    %v257 = vadd.f32 %v255, %v256
    %v258 = vrot.slane %v257, 1
    %v259 = vadd.f32 %v257, %v258
    %v260 = vmul.f32 %v259, %v250
    %v261 = vadd.f32 %v260, 0.8
    %v262 = vrsqrt.pop %v261
    %v263 = vmul.f32 %v252, %v262
    %v265 = vlaneseq
    %v266 = vshrl.u32 %v265, 7
    %v267 = vsub.s32 0, %v266
    %v268 = vrot.slane %v242, %v267
    %v270 = vmul.f32 %v263, %v268
    %v272 = vlaneseq
    %v273 = vshrl.u32 %v272, 7
    %v274 = vsub.s32 0, %v273
    %v275 = vrot.slane %v243, %v274
    %v277 = vadd.f32 %v270, %v275
    %v278 = vmul.f32 %v277, 0.2
    %v279 = vmax.f32 %v277, %v278
    %v280 = vld [vmem:[%s4] sm:$0xff]
    %v281 = vld [vmem:[%s4 + $0x8] sm:$0xff]
    %v282 = vld [vmem:[%s4 + $0x10] sm:$0xff]
    %v283 = vld [vmem:[%s4 + $0x18] sm:$0xff]
    %v284 = vld [vmem:[%s4 + $0x20] sm:$0xff]
    %v285 = vld [vmem:[%s4 + $0x28] sm:$0xff]
    %v286 = vld [vmem:[%s4 + $0x30] sm:$0xff]
    %v287 = vld [vmem:[%s4 + $0x38] sm:$0xff]
    %v288 = vld [vmem:[%s4 + $0x40] sm:$0xff]
    %v289 = vld [vmem:[%s4 + $0x48] sm:$0xff]
    %v290 = vld [vmem:[%s4 + $0x50] sm:$0xff]
    %v291 = vld [vmem:[%s4 + $0x58] sm:$0xff]
    %v292 = vld [vmem:[%s4 + $0x60] sm:$0xff]
    %v293 = vld [vmem:[%s4 + $0x68] sm:$0xff]
    %v294 = vld [vmem:[%s4 + $0x70] sm:$0xff]
    %v295 = vld [vmem:[%s4 + $0x78] sm:$0xff]
    %v296 = vpack.c.bf16 %v279, %v279
    %v313 = vunpack.c.l.b16 %v280
    %v314 = vunpack.c.h.b16 %v280
    %v315 = vunpack.c.l.b16 %v281
    %v316 = vunpack.c.h.b16 %v281
    %v317 = vunpack.c.l.b16 %v282
    %v318 = vunpack.c.h.b16 %v282
    %v319 = vunpack.c.l.b16 %v283
    %v320 = vunpack.c.h.b16 %v283
    %v321 = vunpack.c.l.b16 %v284
    %v322 = vunpack.c.h.b16 %v284
    %v323 = vunpack.c.l.b16 %v285
    %v324 = vunpack.c.h.b16 %v285
    %v325 = vunpack.c.l.b16 %v286
    %v326 = vunpack.c.h.b16 %v286
    %v327 = vunpack.c.l.b16 %v287
    %v328 = vunpack.c.h.b16 %v287
    %v329 = vunpack.c.l.b16 %v288
    %v330 = vunpack.c.h.b16 %v288
    %v331 = vunpack.c.l.b16 %v289
    %v332 = vunpack.c.h.b16 %v289
    %v333 = vunpack.c.l.b16 %v290
    %v334 = vunpack.c.h.b16 %v290
    %v335 = vunpack.c.l.b16 %v291
    %v336 = vunpack.c.h.b16 %v291
    %v337 = vunpack.c.l.b16 %v292
    %v338 = vunpack.c.h.b16 %v292
    %v339 = vunpack.c.l.b16 %v293
    %v340 = vunpack.c.h.b16 %v293
    %v341 = vunpack.c.l.b16 %v294
    %v342 = vunpack.c.h.b16 %v294
    %v343 = vunpack.c.l.b16 %v295
    %v344 = vunpack.c.h.b16 %v295
    %v345 = vpack.c.b16 %v315, %v313
    %v346 = vpack.c.b16 %v316, %v314
    %v347 = vpack.c.b16 %v319, %v317
    %v348 = vpack.c.b16 %v320, %v318
    %v349 = vpack.c.b16 %v323, %v321
    %v350 = vpack.c.b16 %v324, %v322
    %v351 = vpack.c.b16 %v327, %v325
    %v352 = vpack.c.b16 %v328, %v326
    %v353 = vpack.c.b16 %v331, %v329
    %v354 = vpack.c.b16 %v332, %v330
    %v355 = vpack.c.b16 %v335, %v333
    %v356 = vpack.c.b16 %v336, %v334
    %v357 = vpack.c.b16 %v339, %v337
    %v358 = vpack.c.b16 %v340, %v338
    %v359 = vpack.c.b16 %v343, %v341
    %v360 = vpack.c.b16 %v344, %v342
    %377 = vmatprep.subr.bf16.mxu0 %v346
    %378 = vmatpush1.bf16.msra.mxu0 %v345
    %379 = vmatprep.subr.bf16.mxu0 %v348
    %380 = vmatpush1.bf16.msra.mxu0 %v347
    %381 = vmatprep.subr.bf16.mxu0 %v350
    %382 = vmatpush1.bf16.msra.mxu0 %v349
    %383 = vmatprep.subr.bf16.mxu0 %v352
    %384 = vmatpush1.bf16.msra.mxu0 %v351
    %385 = vmatprep.subr.bf16.mxu0 %v354
    %386 = vmatpush1.bf16.msra.mxu0 %v353
    %387 = vmatprep.subr.bf16.mxu0 %v356
    %388 = vmatpush1.bf16.msra.mxu0 %v355
    %389 = vmatprep.subr.bf16.mxu0 %v358
    %390 = vmatpush1.bf16.msra.mxu0 %v357
    %391 = vmatprep.subr.bf16.mxu0 %v360
    %392 = vmatpush1.bf16.msra.mxu0 %v359
    %393 = vmatprep.subr.bf16.mxu0 0
    %394 = vmatpush1.bf16.msra.mxu0 0
    %395 = vmatprep.subr.bf16.mxu0 0
    %396 = vmatpush1.bf16.msra.mxu0 0
    %397 = vmatprep.subr.bf16.mxu0 0
    %398 = vmatpush1.bf16.msra.mxu0 0
    %399 = vmatprep.subr.bf16.mxu0 0
    %400 = vmatpush1.bf16.msra.mxu0 0
    %401 = vmatprep.subr.bf16.mxu0 0
    %402 = vmatpush1.bf16.msra.mxu0 0
    %403 = vmatprep.subr.bf16.mxu0 0
    %404 = vmatpush1.bf16.msra.mxu0 0
    %405 = vmatprep.subr.bf16.mxu0 0
    %406 = vmatpush1.bf16.msra.mxu0 0
    %407 = vmatprep.subr.bf16.mxu0 0
    %408 = vmatpush1.bf16.msra.mxu0 0
    %409 = vmatprep.mubr.bf16.mxu0 0
    %410 = vmatmul.mubr.bf16.gmra.mrb[0].mxu0 %v296
    %v411 = vpop.f32.mrb[0].mxu0
    %v412 = vadd.f32 0.0, %v411
    %v413 = vpop.f32.mrb[0].mxu0
    %v414 = vadd.f32 0.0, %v413
    %v415 = vpop.f32.mrb[0].mxu0
    %v416 = vpop.f32.mrb[0].mxu0
    %417 = vdwg.mxu0
    %v418 = vld [vmem:[#allocation7 + $0x4] sm:$0x3]
    %v419 = vld [vmem:[#allocation7 + $0x6] sm:$0x3]
    %v420 = vrot.slane %v412, 4
    %v421 = vadd.f32 %v412, %v420
    %v422 = vrot.slane %v421, 2
    %v423 = vadd.f32 %v421, %v422
    %v424 = vrot.slane %v423, 1
    %v425 = vadd.f32 %v423, %v424
    %v426 = vrot.slane %v414, 4
    %v427 = vadd.f32 %v414, %v426
    %v428 = vrot.slane %v427, 2
    %v429 = vadd.f32 %v427, %v428
    %v430 = vrot.slane %v429, 1
    %v431 = vadd.f32 %v429, %v430
    %v432 = vmul.f32 %v425, %v250
    %v433 = vmul.f32 %v431, %v250
    %v434 = vsub.f32 %v412, %v432
    %v435 = vsub.f32 %v414, %v433
    %v436 = vmul.f32 %v434, %v434
    %v437 = vmul.f32 %v435, %v435
    %v438 = vrot.slane %v436, 4
    %v439 = vadd.f32 %v436, %v438
    %v440 = vrot.slane %v439, 2
    %v441 = vadd.f32 %v439, %v440
    %v442 = vrot.slane %v441, 1
    %v443 = vadd.f32 %v441, %v442
    %v444 = vrot.slane %v437, 4
    %v445 = vadd.f32 %v437, %v444
    %v446 = vrot.slane %v445, 2
    %v447 = vadd.f32 %v445, %v446
    %v448 = vrot.slane %v447, 1
    %v449 = vadd.f32 %v447, %v448
    %v450 = vmul.f32 %v443, %v250
    %v451 = vmul.f32 %v449, %v250
    %v452 = vadd.f32 %v450, 0.8
    %v453 = vadd.f32 %v451, 0.8
    %v454 = vrsqrt.pop %v452
    %v455 = vrsqrt.pop %v453
    %v456 = vmul.f32 %v434, %v454
    %v457 = vmul.f32 %v435, %v455
    %v459 = vlaneseq
    %v460 = vshrl.u32 %v459, 7
    %v461 = vsub.s32 0, %v460
    %v462 = vrot.slane %v418, %v461
    %v463 = vlaneseq
    %v464 = vshrl.u32 %v463, 7
    %v465 = vsub.s32 1, %v464
    %v466 = vrot.slane %v418, %v465
    %v469 = vmul.f32 %v456, %v462
    %v470 = vmul.f32 %v457, %v466
    %v472 = vlaneseq
    %v473 = vshrl.u32 %v472, 7
    %v474 = vsub.s32 0, %v473
    %v475 = vrot.slane %v419, %v474
    %v476 = vlaneseq
    %v477 = vshrl.u32 %v476, 7
    %v478 = vsub.s32 1, %v477
    %v479 = vrot.slane %v419, %v478
    %v482 = vadd.f32 %v469, %v475
    %v483 = vadd.f32 %v470, %v479
    %v484 = vmul.f32 %v482, 0.2
    %v485 = vmul.f32 %v483, 0.2
    %v486 = vmax.f32 %v482, %v484
    %v487 = vmax.f32 %v483, %v485
    %v488 = vld [vmem:[%s5] sm:$0xff]
    %v489 = vld [vmem:[%s5 + $0x8] sm:$0xff]
    %v490 = vld [vmem:[%s5 + $0x10] sm:$0xff]
    %v491 = vld [vmem:[%s5 + $0x18] sm:$0xff]
    %v492 = vld [vmem:[%s5 + $0x20] sm:$0xff]
    %v493 = vld [vmem:[%s5 + $0x28] sm:$0xff]
    %v494 = vld [vmem:[%s5 + $0x30] sm:$0xff]
    %v495 = vld [vmem:[%s5 + $0x38] sm:$0xff]
    %v496 = vld [vmem:[%s5 + $0x40] sm:$0xff]
    %v497 = vld [vmem:[%s5 + $0x48] sm:$0xff]
    %v498 = vld [vmem:[%s5 + $0x50] sm:$0xff]
    %v499 = vld [vmem:[%s5 + $0x58] sm:$0xff]
    %v500 = vld [vmem:[%s5 + $0x60] sm:$0xff]
    %v501 = vld [vmem:[%s5 + $0x68] sm:$0xff]
    %v502 = vld [vmem:[%s5 + $0x70] sm:$0xff]
    %v503 = vld [vmem:[%s5 + $0x78] sm:$0xff]
    %v504 = vld [vmem:[%s5 + $0x80] sm:$0xff]
    %v505 = vld [vmem:[%s5 + $0x88] sm:$0xff]
    %v506 = vld [vmem:[%s5 + $0x90] sm:$0xff]
    %v507 = vld [vmem:[%s5 + $0x98] sm:$0xff]
    %v508 = vld [vmem:[%s5 + $0xa0] sm:$0xff]
    %v509 = vld [vmem:[%s5 + $0xa8] sm:$0xff]
    %v510 = vld [vmem:[%s5 + $0xb0] sm:$0xff]
    %v511 = vld [vmem:[%s5 + $0xb8] sm:$0xff]
    %v512 = vld [vmem:[%s5 + $0xc0] sm:$0xff]
    %v513 = vld [vmem:[%s5 + $0xc8] sm:$0xff]
    %v514 = vld [vmem:[%s5 + $0xd0] sm:$0xff]
    %v515 = vld [vmem:[%s5 + $0xd8] sm:$0xff]
    %v516 = vld [vmem:[%s5 + $0xe0] sm:$0xff]
    %v517 = vld [vmem:[%s5 + $0xe8] sm:$0xff]
    %v518 = vld [vmem:[%s5 + $0xf0] sm:$0xff]
    %v519 = vld [vmem:[%s5 + $0xf8] sm:$0xff]
    %v520 = vld [vmem:[#allocation7 + $0x21] sm:$0xf]
    %v521 = vunpack.c.0.s8 %v488
    %v522 = vunpack.c.0.s8 %v489
    %v523 = vunpack.c.0.s8 %v490
    %v524 = vunpack.c.0.s8 %v491
    %v525 = vunpack.c.1.s8 %v488
    %v526 = vunpack.c.1.s8 %v489
    %v527 = vunpack.c.1.s8 %v490
    %v528 = vunpack.c.1.s8 %v491
    %v529 = vunpack.c.2.s8 %v488
    %v530 = vunpack.c.2.s8 %v489
    %v531 = vunpack.c.2.s8 %v490
    %v532 = vunpack.c.2.s8 %v491
    %v533 = vunpack.c.3.s8 %v488
    %v534 = vunpack.c.3.s8 %v489
    %v535 = vunpack.c.3.s8 %v490
    %v536 = vunpack.c.3.s8 %v491
    %v537 = vunpack.c.0.s8 %v492
    %v538 = vunpack.c.0.s8 %v493
    %v539 = vunpack.c.0.s8 %v494
    %v540 = vunpack.c.0.s8 %v495
    %v541 = vunpack.c.1.s8 %v492
    %v542 = vunpack.c.1.s8 %v493
    %v543 = vunpack.c.1.s8 %v494
    %v544 = vunpack.c.1.s8 %v495
    %v545 = vunpack.c.2.s8 %v492
    %v546 = vunpack.c.2.s8 %v493
    %v547 = vunpack.c.2.s8 %v494
    %v548 = vunpack.c.2.s8 %v495
    %v549 = vunpack.c.3.s8 %v492
    %v550 = vunpack.c.3.s8 %v493
    %v551 = vunpack.c.3.s8 %v494
    %v552 = vunpack.c.3.s8 %v495
    %v553 = vunpack.c.0.s8 %v496
    %v554 = vunpack.c.0.s8 %v497
    %v555 = vunpack.c.0.s8 %v498
    %v556 = vunpack.c.0.s8 %v499
    %v557 = vunpack.c.1.s8 %v496
    %v558 = vunpack.c.1.s8 %v497
    %v559 = vunpack.c.1.s8 %v498
    %v560 = vunpack.c.1.s8 %v499
    %v561 = vunpack.c.2.s8 %v496
    %v562 = vunpack.c.2.s8 %v497
    %v563 = vunpack.c.2.s8 %v498
    %v564 = vunpack.c.2.s8 %v499
    %v565 = vunpack.c.3.s8 %v496
    %v566 = vunpack.c.3.s8 %v497
    %v567 = vunpack.c.3.s8 %v498
    %v568 = vunpack.c.3.s8 %v499
    %v569 = vunpack.c.0.s8 %v500
    %v570 = vunpack.c.0.s8 %v501
    %v571 = vunpack.c.0.s8 %v502
    %v572 = vunpack.c.0.s8 %v503
    %v573 = vunpack.c.1.s8 %v500
    %v574 = vunpack.c.1.s8 %v501
    %v575 = vunpack.c.1.s8 %v502
    %v576 = vunpack.c.1.s8 %v503
    %v577 = vunpack.c.2.s8 %v500
    %v578 = vunpack.c.2.s8 %v501
    %v579 = vunpack.c.2.s8 %v502
    %v580 = vunpack.c.2.s8 %v503
    %v581 = vunpack.c.3.s8 %v500
    %v582 = vunpack.c.3.s8 %v501
    %v583 = vunpack.c.3.s8 %v502
    %v584 = vunpack.c.3.s8 %v503
    %v585 = vunpack.c.0.s8 %v504
    %v586 = vunpack.c.0.s8 %v505
    %v587 = vunpack.c.0.s8 %v506
    %v588 = vunpack.c.0.s8 %v507
    %v589 = vunpack.c.1.s8 %v504
    %v590 = vunpack.c.1.s8 %v505
    %v591 = vunpack.c.1.s8 %v506
    %v592 = vunpack.c.1.s8 %v507
    %v593 = vunpack.c.2.s8 %v504
    %v594 = vunpack.c.2.s8 %v505
    %v595 = vunpack.c.2.s8 %v506
    %v596 = vunpack.c.2.s8 %v507
    %v597 = vunpack.c.3.s8 %v504
    %v598 = vunpack.c.3.s8 %v505
    %v599 = vunpack.c.3.s8 %v506
    %v600 = vunpack.c.3.s8 %v507
    %v601 = vunpack.c.0.s8 %v508
    %v602 = vunpack.c.0.s8 %v509
    %v603 = vunpack.c.0.s8 %v510
    %v604 = vunpack.c.0.s8 %v511
    %v605 = vunpack.c.1.s8 %v508
    %v606 = vunpack.c.1.s8 %v509
    %v607 = vunpack.c.1.s8 %v510
    %v608 = vunpack.c.1.s8 %v511
    %v609 = vunpack.c.2.s8 %v508
    %v610 = vunpack.c.2.s8 %v509
    %v611 = vunpack.c.2.s8 %v510
    %v612 = vunpack.c.2.s8 %v511
    %v613 = vunpack.c.3.s8 %v508
    %v614 = vunpack.c.3.s8 %v509
    %v615 = vunpack.c.3.s8 %v510
    %v616 = vunpack.c.3.s8 %v511
    %v617 = vunpack.c.0.s8 %v512
    %v618 = vunpack.c.0.s8 %v513
    %v619 = vunpack.c.0.s8 %v514
    %v620 = vunpack.c.0.s8 %v515
    %v621 = vunpack.c.1.s8 %v512
    %v622 = vunpack.c.1.s8 %v513
    %v623 = vunpack.c.1.s8 %v514
    %v624 = vunpack.c.1.s8 %v515
    %v625 = vunpack.c.2.s8 %v512
    %v626 = vunpack.c.2.s8 %v513
    %v627 = vunpack.c.2.s8 %v514
    %v628 = vunpack.c.2.s8 %v515
    %v629 = vunpack.c.3.s8 %v512
    %v630 = vunpack.c.3.s8 %v513
    %v631 = vunpack.c.3.s8 %v514
    %v632 = vunpack.c.3.s8 %v515
    %v633 = vunpack.c.0.s8 %v516
    %v634 = vunpack.c.0.s8 %v517
    %v635 = vunpack.c.0.s8 %v518
    %v636 = vunpack.c.0.s8 %v519
    %v637 = vunpack.c.1.s8 %v516
    %v638 = vunpack.c.1.s8 %v517
    %v639 = vunpack.c.1.s8 %v518
    %v640 = vunpack.c.1.s8 %v519
    %v641 = vunpack.c.2.s8 %v516
    %v642 = vunpack.c.2.s8 %v517
    %v643 = vunpack.c.2.s8 %v518
    %v644 = vunpack.c.2.s8 %v519
    %v645 = vunpack.c.3.s8 %v516
    %v646 = vunpack.c.3.s8 %v517
    %v647 = vunpack.c.3.s8 %v518
    %v648 = vunpack.c.3.s8 %v519
    %v649 = vcvt.s32.f32 %v521
    %v650 = vcvt.s32.f32 %v522
    %v651 = vcvt.s32.f32 %v523
    %v652 = vcvt.s32.f32 %v524
    %v653 = vcvt.s32.f32 %v525
    %v654 = vcvt.s32.f32 %v526
    %v655 = vcvt.s32.f32 %v527
    %v656 = vcvt.s32.f32 %v528
    %v657 = vcvt.s32.f32 %v529
    %v658 = vcvt.s32.f32 %v530
    %v659 = vcvt.s32.f32 %v531
    %v660 = vcvt.s32.f32 %v532
    %v661 = vcvt.s32.f32 %v533
    %v662 = vcvt.s32.f32 %v534
    %v663 = vcvt.s32.f32 %v535
    %v664 = vcvt.s32.f32 %v536
    %v665 = vcvt.s32.f32 %v537
    %v666 = vcvt.s32.f32 %v538
    %v667 = vcvt.s32.f32 %v539
    %v668 = vcvt.s32.f32 %v540
    %v669 = vcvt.s32.f32 %v541
    %v670 = vcvt.s32.f32 %v542
    %v671 = vcvt.s32.f32 %v543
    %v672 = vcvt.s32.f32 %v544
    %v673 = vcvt.s32.f32 %v545
    %v674 = vcvt.s32.f32 %v546
    %v675 = vcvt.s32.f32 %v547
    %v676 = vcvt.s32.f32 %v548
    %v677 = vcvt.s32.f32 %v549
    %v678 = vcvt.s32.f32 %v550
    %v679 = vcvt.s32.f32 %v551
    %v680 = vcvt.s32.f32 %v552
    %v681 = vcvt.s32.f32 %v553
    %v682 = vcvt.s32.f32 %v554
    %v683 = vcvt.s32.f32 %v555
    %v684 = vcvt.s32.f32 %v556
    %v685 = vcvt.s32.f32 %v557
    %v686 = vcvt.s32.f32 %v558
    %v687 = vcvt.s32.f32 %v559
    %v688 = vcvt.s32.f32 %v560
    %v689 = vcvt.s32.f32 %v561
    %v690 = vcvt.s32.f32 %v562
    %v691 = vcvt.s32.f32 %v563
    %v692 = vcvt.s32.f32 %v564
    %v693 = vcvt.s32.f32 %v565
    %v694 = vcvt.s32.f32 %v566
    %v695 = vcvt.s32.f32 %v567
    %v696 = vcvt.s32.f32 %v568
    %v697 = vcvt.s32.f32 %v569
    %v698 = vcvt.s32.f32 %v570
    %v699 = vcvt.s32.f32 %v571
    %v700 = vcvt.s32.f32 %v572
    %v701 = vcvt.s32.f32 %v573
    %v702 = vcvt.s32.f32 %v574
    %v703 = vcvt.s32.f32 %v575
    %v704 = vcvt.s32.f32 %v576
    %v705 = vcvt.s32.f32 %v577
    %v706 = vcvt.s32.f32 %v578
    %v707 = vcvt.s32.f32 %v579
    %v708 = vcvt.s32.f32 %v580
    %v709 = vcvt.s32.f32 %v581
    %v710 = vcvt.s32.f32 %v582
    %v711 = vcvt.s32.f32 %v583
    %v712 = vcvt.s32.f32 %v584
    %v713 = vcvt.s32.f32 %v585
    %v714 = vcvt.s32.f32 %v586
    %v715 = vcvt.s32.f32 %v587
    %v716 = vcvt.s32.f32 %v588
    %v717 = vcvt.s32.f32 %v589
    %v718 = vcvt.s32.f32 %v590
    %v719 = vcvt.s32.f32 %v591
    %v720 = vcvt.s32.f32 %v592
    %v721 = vcvt.s32.f32 %v593
    %v722 = vcvt.s32.f32 %v594
    %v723 = vcvt.s32.f32 %v595
    %v724 = vcvt.s32.f32 %v596
    %v725 = vcvt.s32.f32 %v597
    %v726 = vcvt.s32.f32 %v598
    %v727 = vcvt.s32.f32 %v599
    %v728 = vcvt.s32.f32 %v600
    %v729 = vcvt.s32.f32 %v601
    %v730 = vcvt.s32.f32 %v602
    %v731 = vcvt.s32.f32 %v603
    %v732 = vcvt.s32.f32 %v604
    %v733 = vcvt.s32.f32 %v605
    %v734 = vcvt.s32.f32 %v606
    %v735 = vcvt.s32.f32 %v607
    %v736 = vcvt.s32.f32 %v608
    %v737 = vcvt.s32.f32 %v609
    %v738 = vcvt.s32.f32 %v610
    %v739 = vcvt.s32.f32 %v611
    %v740 = vcvt.s32.f32 %v612
    %v741 = vcvt.s32.f32 %v613
    %v742 = vcvt.s32.f32 %v614
    %v743 = vcvt.s32.f32 %v615
    %v744 = vcvt.s32.f32 %v616
    %v745 = vcvt.s32.f32 %v617
    %v746 = vcvt.s32.f32 %v618
    %v747 = vcvt.s32.f32 %v619
    %v748 = vcvt.s32.f32 %v620
    %v749 = vcvt.s32.f32 %v621
    %v750 = vcvt.s32.f32 %v622
    %v751 = vcvt.s32.f32 %v623
    %v752 = vcvt.s32.f32 %v624
    %v753 = vcvt.s32.f32 %v625
    %v754 = vcvt.s32.f32 %v626
    %v755 = vcvt.s32.f32 %v627
    %v756 = vcvt.s32.f32 %v628
    %v757 = vcvt.s32.f32 %v629
    %v758 = vcvt.s32.f32 %v630
    %v759 = vcvt.s32.f32 %v631
    %v760 = vcvt.s32.f32 %v632
    %v761 = vcvt.s32.f32 %v633
    %v762 = vcvt.s32.f32 %v634
    %v763 = vcvt.s32.f32 %v635
    %v764 = vcvt.s32.f32 %v636
    %v765 = vcvt.s32.f32 %v637
    %v766 = vcvt.s32.f32 %v638
    %v767 = vcvt.s32.f32 %v639
    %v768 = vcvt.s32.f32 %v640
    %v769 = vcvt.s32.f32 %v641
    %v770 = vcvt.s32.f32 %v642
    %v771 = vcvt.s32.f32 %v643
    %v772 = vcvt.s32.f32 %v644
    %v773 = vcvt.s32.f32 %v645
    %v774 = vcvt.s32.f32 %v646
    %v775 = vcvt.s32.f32 %v647
    %v776 = vcvt.s32.f32 %v648
    %v778 = vlaneseq
    %v779 = vshrl.u32 %v778, 7
    %v780 = vsub.s32 0, %v779
    %v781 = vrot.slane %v520, %v780
    %v782 = vlaneseq
    %v783 = vshrl.u32 %v782, 7
    %v784 = vsub.s32 1, %v783
    %v785 = vrot.slane %v520, %v784
    %v786 = vlaneseq
    %v787 = vshrl.u32 %v786, 7
    %v788 = vsub.s32 2, %v787
    %v789 = vrot.slane %v520, %v788
    %v790 = vlaneseq
    %v791 = vshrl.u32 %v790, 7
    %v792 = vsub.s32 3, %v791
    %v793 = vrot.slane %v520, %v792
    %v798 = vmul.f32 %v649, %v781
    %v799 = vmul.f32 %v650, %v785
    %v800 = vmul.f32 %v651, %v789
    %v801 = vmul.f32 %v652, %v793
    %v802 = vmul.f32 %v653, %v781
    %v803 = vmul.f32 %v654, %v785
    %v804 = vmul.f32 %v655, %v789
    %v805 = vmul.f32 %v656, %v793
    %v806 = vmul.f32 %v657, %v781
    %v807 = vmul.f32 %v658, %v785
    %v808 = vmul.f32 %v659, %v789
    %v809 = vmul.f32 %v660, %v793
    %v810 = vmul.f32 %v661, %v781
    %v811 = vmul.f32 %v662, %v785
    %v812 = vmul.f32 %v663, %v789
    %v813 = vmul.f32 %v664, %v793
    %v814 = vmul.f32 %v665, %v781
    %v815 = vmul.f32 %v666, %v785
    %v816 = vmul.f32 %v667, %v789
    %v817 = vmul.f32 %v668, %v793
    %v818 = vmul.f32 %v669, %v781
    %v819 = vmul.f32 %v670, %v785
    %v820 = vmul.f32 %v671, %v789
    %v821 = vmul.f32 %v672, %v793
    %v822 = vmul.f32 %v673, %v781
    %v823 = vmul.f32 %v674, %v785
    %v824 = vmul.f32 %v675, %v789
    %v825 = vmul.f32 %v676, %v793
    %v826 = vmul.f32 %v677, %v781
    %v827 = vmul.f32 %v678, %v785
    %v828 = vmul.f32 %v679, %v789
    %v829 = vmul.f32 %v680, %v793
    %v830 = vmul.f32 %v681, %v781
    %v831 = vmul.f32 %v682, %v785
    %v832 = vmul.f32 %v683, %v789
    %v833 = vmul.f32 %v684, %v793
    %v834 = vmul.f32 %v685, %v781
    %v835 = vmul.f32 %v686, %v785
    %v836 = vmul.f32 %v687, %v789
    %v837 = vmul.f32 %v688, %v793
    %v838 = vmul.f32 %v689, %v781
    %v839 = vmul.f32 %v690, %v785
    %v840 = vmul.f32 %v691, %v789
    %v841 = vmul.f32 %v692, %v793
    %v842 = vmul.f32 %v693, %v781
    %v843 = vmul.f32 %v694, %v785
    %v844 = vmul.f32 %v695, %v789
    %v845 = vmul.f32 %v696, %v793
    %v846 = vmul.f32 %v697, %v781
    %v847 = vmul.f32 %v698, %v785
    %v848 = vmul.f32 %v699, %v789
    %v849 = vmul.f32 %v700, %v793
    %v850 = vmul.f32 %v701, %v781
    %v851 = vmul.f32 %v702, %v785
    %v852 = vmul.f32 %v703, %v789
    %v853 = vmul.f32 %v704, %v793
    %v854 = vmul.f32 %v705, %v781
    %v855 = vmul.f32 %v706, %v785
    %v856 = vmul.f32 %v707, %v789
    %v857 = vmul.f32 %v708, %v793
    %v858 = vmul.f32 %v709, %v781
    %v859 = vmul.f32 %v710, %v785
    %v860 = vmul.f32 %v711, %v789
    %v861 = vmul.f32 %v712, %v793
    %v862 = vmul.f32 %v713, %v781
    %v863 = vmul.f32 %v714, %v785
    %v864 = vmul.f32 %v715, %v789
    %v865 = vmul.f32 %v716, %v793
    %v866 = vmul.f32 %v717, %v781
    %v867 = vmul.f32 %v718, %v785
    %v868 = vmul.f32 %v719, %v789
    %v869 = vmul.f32 %v720, %v793
    %v870 = vmul.f32 %v721, %v781
    %v871 = vmul.f32 %v722, %v785
    %v872 = vmul.f32 %v723, %v789
    %v873 = vmul.f32 %v724, %v793
    %v874 = vmul.f32 %v725, %v781
    %v875 = vmul.f32 %v726, %v785
    %v876 = vmul.f32 %v727, %v789
    %v877 = vmul.f32 %v728, %v793
    %v878 = vmul.f32 %v729, %v781
    %v879 = vmul.f32 %v730, %v785
    %v880 = vmul.f32 %v731, %v789
    %v881 = vmul.f32 %v732, %v793
    %v882 = vmul.f32 %v733, %v781
    %v883 = vmul.f32 %v734, %v785
    %v884 = vmul.f32 %v735, %v789
    %v885 = vmul.f32 %v736, %v793
    %v886 = vmul.f32 %v737, %v781
    %v887 = vmul.f32 %v738, %v785
    %v888 = vmul.f32 %v739, %v789
    %v889 = vmul.f32 %v740, %v793
    %v890 = vmul.f32 %v741, %v781
    %v891 = vmul.f32 %v742, %v785
    %v892 = vmul.f32 %v743, %v789
    %v893 = vmul.f32 %v744, %v793
    %v894 = vmul.f32 %v745, %v781
    %v895 = vmul.f32 %v746, %v785
    %v896 = vmul.f32 %v747, %v789
    %v897 = vmul.f32 %v748, %v793
    %v898 = vmul.f32 %v749, %v781
    %v899 = vmul.f32 %v750, %v785
    %v900 = vmul.f32 %v751, %v789
    %v901 = vmul.f32 %v752, %v793
    %v902 = vmul.f32 %v753, %v781
    %v903 = vmul.f32 %v754, %v785
    %v904 = vmul.f32 %v755, %v789
    %v905 = vmul.f32 %v756, %v793
    %v906 = vmul.f32 %v757, %v781
    %v907 = vmul.f32 %v758, %v785
    %v908 = vmul.f32 %v759, %v789
    %v909 = vmul.f32 %v760, %v793
    %v910 = vmul.f32 %v761, %v781
    %v911 = vmul.f32 %v762, %v785
    %v912 = vmul.f32 %v763, %v789
    %v913 = vmul.f32 %v764, %v793
    %v914 = vmul.f32 %v765, %v781
    %v915 = vmul.f32 %v766, %v785
    %v916 = vmul.f32 %v767, %v789
    %v917 = vmul.f32 %v768, %v793
    %v918 = vmul.f32 %v769, %v781
    %v919 = vmul.f32 %v770, %v785
    %v920 = vmul.f32 %v771, %v789
    %v921 = vmul.f32 %v772, %v793
    %v922 = vmul.f32 %v773, %v781
    %v923 = vmul.f32 %v774, %v785
    %v924 = vmul.f32 %v775, %v789
    %v925 = vmul.f32 %v776, %v793
    %v926 = vpack.c.bf16 %v802, %v798
    %v927 = vpack.c.bf16 %v803, %v799
    %v928 = vpack.c.bf16 %v804, %v800
    %v929 = vpack.c.bf16 %v805, %v801
    %v930 = vpack.c.bf16 %v810, %v806
    %v931 = vpack.c.bf16 %v811, %v807
    %v932 = vpack.c.bf16 %v812, %v808
    %v933 = vpack.c.bf16 %v813, %v809
    %v934 = vpack.c.bf16 %v818, %v814
    %v935 = vpack.c.bf16 %v819, %v815
    %v936 = vpack.c.bf16 %v820, %v816
    %v937 = vpack.c.bf16 %v821, %v817
    %v938 = vpack.c.bf16 %v826, %v822
    %v939 = vpack.c.bf16 %v827, %v823
    %v940 = vpack.c.bf16 %v828, %v824
    %v941 = vpack.c.bf16 %v829, %v825
    %v942 = vpack.c.bf16 %v834, %v830
    %v943 = vpack.c.bf16 %v835, %v831
    %v944 = vpack.c.bf16 %v836, %v832
    %v945 = vpack.c.bf16 %v837, %v833
    %v946 = vpack.c.bf16 %v842, %v838
    %v947 = vpack.c.bf16 %v843, %v839
    %v948 = vpack.c.bf16 %v844, %v840
    %v949 = vpack.c.bf16 %v845, %v841
    %v950 = vpack.c.bf16 %v850, %v846
    %v951 = vpack.c.bf16 %v851, %v847
    %v952 = vpack.c.bf16 %v852, %v848
    %v953 = vpack.c.bf16 %v853, %v849
    %v954 = vpack.c.bf16 %v858, %v854
    %v955 = vpack.c.bf16 %v859, %v855
    %v956 = vpack.c.bf16 %v860, %v856
    %v957 = vpack.c.bf16 %v861, %v857
    %v958 = vpack.c.bf16 %v866, %v862
    %v959 = vpack.c.bf16 %v867, %v863
    %v960 = vpack.c.bf16 %v868, %v864
    %v961 = vpack.c.bf16 %v869, %v865
    %v962 = vpack.c.bf16 %v874, %v870
    %v963 = vpack.c.bf16 %v875, %v871
    %v964 = vpack.c.bf16 %v876, %v872
    %v965 = vpack.c.bf16 %v877, %v873
    %v966 = vpack.c.bf16 %v882, %v878
    %v967 = vpack.c.bf16 %v883, %v879
    %v968 = vpack.c.bf16 %v884, %v880
    %v969 = vpack.c.bf16 %v885, %v881
    %v970 = vpack.c.bf16 %v890, %v886
    %v971 = vpack.c.bf16 %v891, %v887
    %v972 = vpack.c.bf16 %v892, %v888
    %v973 = vpack.c.bf16 %v893, %v889
    %v974 = vpack.c.bf16 %v898, %v894
    %v975 = vpack.c.bf16 %v899, %v895
    %v976 = vpack.c.bf16 %v900, %v896
    %v977 = vpack.c.bf16 %v901, %v897
    %v978 = vpack.c.bf16 %v906, %v902
    %v979 = vpack.c.bf16 %v907, %v903
    %v980 = vpack.c.bf16 %v908, %v904
    %v981 = vpack.c.bf16 %v909, %v905
    %v982 = vpack.c.bf16 %v914, %v910
    %v983 = vpack.c.bf16 %v915, %v911
    %v984 = vpack.c.bf16 %v916, %v912
    %v985 = vpack.c.bf16 %v917, %v913
    %v986 = vpack.c.bf16 %v922, %v918
    %v987 = vpack.c.bf16 %v923, %v919
    %v988 = vpack.c.bf16 %v924, %v920
    %v989 = vpack.c.bf16 %v925, %v921
    %v990 = vpack.c.bf16 %v486, %v486
    %v991 = vpack.c.bf16 %v487, %v487
    %992 = vmatprep.subr.bf16.mxu0 %v927
    %993 = vmatpush1.bf16.msra.mxu0 %v926
    %994 = vmatprep.subr.bf16.mxu0 %v931
    %995 = vmatpush1.bf16.msra.mxu0 %v930
    %996 = vmatprep.subr.bf16.mxu0 %v935
    %997 = vmatpush1.bf16.msra.mxu0 %v934
    %998 = vmatprep.subr.bf16.mxu0 %v939
    %999 = vmatpush1.bf16.msra.mxu0 %v938
    %1000 = vmatprep.subr.bf16.mxu0 %v943
    %1001 = vmatpush1.bf16.msra.mxu0 %v942
    %1002 = vmatprep.subr.bf16.mxu0 %v947
    %1003 = vmatpush1.bf16.msra.mxu0 %v946
    %1004 = vmatprep.subr.bf16.mxu0 %v951
    %1005 = vmatpush1.bf16.msra.mxu0 %v950
    %1006 = vmatprep.subr.bf16.mxu0 %v955
    %1007 = vmatpush1.bf16.msra.mxu0 %v954
    %1008 = vmatprep.subr.bf16.mxu0 %v959
    %1009 = vmatpush1.bf16.msra.mxu0 %v958
    %1010 = vmatprep.subr.bf16.mxu0 %v963
    %1011 = vmatpush1.bf16.msra.mxu0 %v962
    %1012 = vmatprep.subr.bf16.mxu0 %v967
    %1013 = vmatpush1.bf16.msra.mxu0 %v966
    %1014 = vmatprep.subr.bf16.mxu0 %v971
    %1015 = vmatpush1.bf16.msra.mxu0 %v970
    %1016 = vmatprep.subr.bf16.mxu0 %v975
    %1017 = vmatpush1.bf16.msra.mxu0 %v974
    %1018 = vmatprep.subr.bf16.mxu0 %v979
    %1019 = vmatpush1.bf16.msra.mxu0 %v978
    %1020 = vmatprep.subr.bf16.mxu0 %v983
    %1021 = vmatpush1.bf16.msra.mxu0 %v982
    %1022 = vmatprep.subr.bf16.mxu0 %v987
    %1023 = vmatpush1.bf16.msra.mxu0 %v986
    %1024 = vmatprep.mubr.bf16.mxu0 %v991
    %1025 = vmatmul.mubr.bf16.gmra.mrb[0].mxu0 %v990
    %v1026 = vpop.f32.mrb[0].mxu0
    %v1027 = vadd.f32 0.0, %v1026
    %v1028 = vpop.f32.mrb[0].mxu0
    %v1029 = vadd.f32 0.0, %v1028
    %v1030 = vpop.f32.mrb[0].mxu0
    %v1031 = vpop.f32.mrb[0].mxu0
    %1032 = vdwg.mxu0
    %1033 = vmatprep.subr.bf16.mxu0 %v929
    %1034 = vmatpush1.bf16.msra.mxu0 %v928
    %1035 = vmatprep.subr.bf16.mxu0 %v933
    %1036 = vmatpush1.bf16.msra.mxu0 %v932
    %1037 = vmatprep.subr.bf16.mxu0 %v937
    %1038 = vmatpush1.bf16.msra.mxu0 %v936
    %1039 = vmatprep.subr.bf16.mxu0 %v941
    %1040 = vmatpush1.bf16.msra.mxu0 %v940
    %1041 = vmatprep.subr.bf16.mxu0 %v945
    %1042 = vmatpush1.bf16.msra.mxu0 %v944
    %1043 = vmatprep.subr.bf16.mxu0 %v949
    %1044 = vmatpush1.bf16.msra.mxu0 %v948
    %1045 = vmatprep.subr.bf16.mxu0 %v953
    %1046 = vmatpush1.bf16.msra.mxu0 %v952
    %1047 = vmatprep.subr.bf16.mxu0 %v957
    %1048 = vmatpush1.bf16.msra.mxu0 %v956
    %1049 = vmatprep.subr.bf16.mxu0 %v961
    %1050 = vmatpush1.bf16.msra.mxu0 %v960
    %1051 = vmatprep.subr.bf16.mxu0 %v965
    %1052 = vmatpush1.bf16.msra.mxu0 %v964
    %1053 = vmatprep.subr.bf16.mxu0 %v969
    %1054 = vmatpush1.bf16.msra.mxu0 %v968
    %1055 = vmatprep.subr.bf16.mxu0 %v973
    %1056 = vmatpush1.bf16.msra.mxu0 %v972
    %1057 = vmatprep.subr.bf16.mxu0 %v977
    %1058 = vmatpush1.bf16.msra.mxu0 %v976
    %1059 = vmatprep.subr.bf16.mxu0 %v981
    %1060 = vmatpush1.bf16.msra.mxu0 %v980
    %1061 = vmatprep.subr.bf16.mxu0 %v985
    %1062 = vmatpush1.bf16.msra.mxu0 %v984
    %1063 = vmatprep.subr.bf16.mxu0 %v989
    %1064 = vmatpush1.bf16.msra.mxu0 %v988
    %1065 = vmatprep.mubr.bf16.mxu0 %v991
    %1066 = vmatmul.mubr.bf16.gmra.mrb[0].mxu0 %v990
    %v1067 = vpop.f32.mrb[0].mxu0
    %v1068 = vadd.f32 0.0, %v1067
    %v1069 = vpop.f32.mrb[0].mxu0
    %v1070 = vadd.f32 0.0, %v1069
    %v1071 = vpop.f32.mrb[0].mxu0
    %v1072 = vpop.f32.mrb[0].mxu0
    %1073 = vdwg.mxu0
    %v1074 = vld [vmem:[#allocation7 + $0x8] sm:$0xf]
    %v1075 = vld [vmem:[#allocation7 + $0xc] sm:$0xf]
    %v1076 = vrot.slane %v1027, 4
    %v1077 = vadd.f32 %v1027, %v1076
    %v1078 = vrot.slane %v1077, 2
    %v1079 = vadd.f32 %v1077, %v1078
    %v1080 = vrot.slane %v1079, 1
    %v1081 = vadd.f32 %v1079, %v1080
    %v1082 = vrot.slane %v1029, 4
    %v1083 = vadd.f32 %v1029, %v1082
    %v1084 = vrot.slane %v1083, 2
    %v1085 = vadd.f32 %v1083, %v1084
    %v1086 = vrot.slane %v1085, 1
    %v1087 = vadd.f32 %v1085, %v1086
    %v1088 = vrot.slane %v1068, 4
    %v1089 = vadd.f32 %v1068, %v1088
    %v1090 = vrot.slane %v1089, 2
    %v1091 = vadd.f32 %v1089, %v1090
    %v1092 = vrot.slane %v1091, 1
    %v1093 = vadd.f32 %v1091, %v1092
    %v1094 = vrot.slane %v1070, 4
    %v1095 = vadd.f32 %v1070, %v1094
    %v1096 = vrot.slane %v1095, 2
    %v1097 = vadd.f32 %v1095, %v1096
    %v1098 = vrot.slane %v1097, 1
    %v1099 = vadd.f32 %v1097, %v1098
    %v1100 = vmul.f32 %v1081, %v250
    %v1101 = vmul.f32 %v1087, %v250
    %v1102 = vmul.f32 %v1093, %v250
    %v1103 = vmul.f32 %v1099, %v250
    %v1104 = vsub.f32 %v1027, %v1100
    %v1105 = vsub.f32 %v1029, %v1101
    %v1106 = vsub.f32 %v1068, %v1102
    %v1107 = vsub.f32 %v1070, %v1103
    %v1108 = vmul.f32 %v1104, %v1104
    %v1109 = vmul.f32 %v1105, %v1105
    %v1110 = vmul.f32 %v1106, %v1106
    %v1111 = vmul.f32 %v1107, %v1107
    %v1112 = vrot.slane %v1108, 4
    %v1113 = vadd.f32 %v1108, %v1112
    %v1114 = vrot.slane %v1113, 2
    %v1115 = vadd.f32 %v1113, %v1114
    %v1116 = vrot.slane %v1115, 1
    %v1117 = vadd.f32 %v1115, %v1116
    %v1118 = vrot.slane %v1109, 4
    %v1119 = vadd.f32 %v1109, %v1118
    %v1120 = vrot.slane %v1119, 2
    %v1121 = vadd.f32 %v1119, %v1120
    %v1122 = vrot.slane %v1121, 1
    %v1123 = vadd.f32 %v1121, %v1122
    %v1124 = vrot.slane %v1110, 4
    %v1125 = vadd.f32 %v1110, %v1124
    %v1126 = vrot.slane %v1125, 2
    %v1127 = vadd.f32 %v1125, %v1126
    %v1128 = vrot.slane %v1127, 1
    %v1129 = vadd.f32 %v1127, %v1128
    %v1130 = vrot.slane %v1111, 4
    %v1131 = vadd.f32 %v1111, %v1130
    %v1132 = vrot.slane %v1131, 2
    %v1133 = vadd.f32 %v1131, %v1132
    %v1134 = vrot.slane %v1133, 1
    %v1135 = vadd.f32 %v1133, %v1134
    %v1136 = vmul.f32 %v1117, %v250
    %v1137 = vmul.f32 %v1123, %v250
    %v1138 = vmul.f32 %v1129, %v250
    %v1139 = vmul.f32 %v1135, %v250
    %v1140 = vadd.f32 %v1136, 0.8
    %v1141 = vadd.f32 %v1137, 0.8
    %v1142 = vadd.f32 %v1138, 0.8
    %v1143 = vadd.f32 %v1139, 0.8
    %v1144 = vrsqrt.pop %v1140
    %v1145 = vrsqrt.pop %v1141
    %v1146 = vrsqrt.pop %v1142
    %v1147 = vrsqrt.pop %v1143
    %v1148 = vmul.f32 %v1104, %v1144
    %v1149 = vmul.f32 %v1105, %v1145
    %v1150 = vmul.f32 %v1106, %v1146
    %v1151 = vmul.f32 %v1107, %v1147
    %v1153 = vlaneseq
    %v1154 = vshrl.u32 %v1153, 7
    %v1155 = vsub.s32 0, %v1154
    %v1156 = vrot.slane %v1074, %v1155
    %v1157 = vlaneseq
    %v1158 = vshrl.u32 %v1157, 7
    %v1159 = vsub.s32 1, %v1158
    %v1160 = vrot.slane %v1074, %v1159
    %v1161 = vlaneseq
    %v1162 = vshrl.u32 %v1161, 7
    %v1163 = vsub.s32 2, %v1162
    %v1164 = vrot.slane %v1074, %v1163
    %v1165 = vlaneseq
    %v1166 = vshrl.u32 %v1165, 7
    %v1167 = vsub.s32 3, %v1166
    %v1168 = vrot.slane %v1074, %v1167
    %v1173 = vmul.f32 %v1148, %v1156
    %v1174 = vmul.f32 %v1149, %v1160
    %v1175 = vmul.f32 %v1150, %v1164
    %v1176 = vmul.f32 %v1151, %v1168
    %v1178 = vlaneseq
    %v1179 = vshrl.u32 %v1178, 7
    %v1180 = vsub.s32 0, %v1179
    %v1181 = vrot.slane %v1075, %v1180
    %v1182 = vlaneseq
    %v1183 = vshrl.u32 %v1182, 7
    %v1184 = vsub.s32 1, %v1183
    %v1185 = vrot.slane %v1075, %v1184
    %v1186 = vlaneseq
    %v1187 = vshrl.u32 %v1186, 7
    %v1188 = vsub.s32 2, %v1187
    %v1189 = vrot.slane %v1075, %v1188
    %v1190 = vlaneseq
    %v1191 = vshrl.u32 %v1190, 7
    %v1192 = vsub.s32 3, %v1191
    %v1193 = vrot.slane %v1075, %v1192
    %v1198 = vadd.f32 %v1173, %v1181
    %v1199 = vadd.f32 %v1174, %v1185
    %v1200 = vadd.f32 %v1175, %v1189
    %v1201 = vadd.f32 %v1176, %v1193
    %v1202 = vmul.f32 %v1198, 0.2
    %v1203 = vmul.f32 %v1199, 0.2
    %v1204 = vmul.f32 %v1200, 0.2
    %v1205 = vmul.f32 %v1201, 0.2
    %v1206 = vmax.f32 %v1198, %v1202
    %v1207 = vmax.f32 %v1199, %v1203
    %v1208 = vmax.f32 %v1200, %v1204
    %v1209 = vmax.f32 %v1201, %v1205
    %v1210 = vld [vmem:[#allocation5] sm:$0xff]
    %v1211 = vld [vmem:[#allocation5 + $0x8] sm:$0xff]
    %v1212 = vld [vmem:[#allocation5 + $0x10] sm:$0xff]
    %v1213 = vld [vmem:[#allocation5 + $0x18] sm:$0xff]
    %v1214 = vld [vmem:[#allocation5 + $0x20] sm:$0xff]
    %v1215 = vld [vmem:[#allocation5 + $0x28] sm:$0xff]
    %v1216 = vld [vmem:[#allocation5 + $0x30] sm:$0xff]
    %v1217 = vld [vmem:[#allocation5 + $0x38] sm:$0xff]
    %v1218 = vld [vmem:[#allocation5 + $0x40] sm:$0xff]
    %v1219 = vld [vmem:[#allocation5 + $0x48] sm:$0xff]
    %v1220 = vld [vmem:[#allocation5 + $0x50] sm:$0xff]
    %v1221 = vld [vmem:[#allocation5 + $0x58] sm:$0xff]
    %v1222 = vld [vmem:[#allocation5 + $0x60] sm:$0xff]
    %v1223 = vld [vmem:[#allocation5 + $0x68] sm:$0xff]
    %v1224 = vld [vmem:[#allocation5 + $0x70] sm:$0xff]
    %v1225 = vld [vmem:[#allocation5 + $0x78] sm:$0xff]
    %v1226 = vld [vmem:[#allocation5 + $0x80] sm:$0xff]
    %v1227 = vld [vmem:[#allocation5 + $0x88] sm:$0xff]
    %v1228 = vld [vmem:[#allocation5 + $0x90] sm:$0xff]
    %v1229 = vld [vmem:[#allocation5 + $0x98] sm:$0xff]
    %v1230 = vld [vmem:[#allocation5 + $0xa0] sm:$0xff]
    %v1231 = vld [vmem:[#allocation5 + $0xa8] sm:$0xff]
    %v1232 = vld [vmem:[#allocation5 + $0xb0] sm:$0xff]
    %v1233 = vld [vmem:[#allocation5 + $0xb8] sm:$0xff]
    %v1234 = vld [vmem:[#allocation5 + $0xc0] sm:$0xff]
    %v1235 = vld [vmem:[#allocation5 + $0xc8] sm:$0xff]
    %v1236 = vld [vmem:[#allocation5 + $0xd0] sm:$0xff]
    %v1237 = vld [vmem:[#allocation5 + $0xd8] sm:$0xff]
    %v1238 = vld [vmem:[#allocation5 + $0xe0] sm:$0xff]
    %v1239 = vld [vmem:[#allocation5 + $0xe8] sm:$0xff]
    %v1240 = vld [vmem:[#allocation5 + $0xf0] sm:$0xff]
    %v1241 = vld [vmem:[#allocation5 + $0xf8] sm:$0xff]
    %v1242 = vld [vmem:[#allocation5 + $0x100] sm:$0xff]
    %v1243 = vld [vmem:[#allocation5 + $0x108] sm:$0xff]
    %v1244 = vld [vmem:[#allocation5 + $0x110] sm:$0xff]
    %v1245 = vld [vmem:[#allocation5 + $0x118] sm:$0xff]
    %v1246 = vld [vmem:[#allocation5 + $0x120] sm:$0xff]
    %v1247 = vld [vmem:[#allocation5 + $0x128] sm:$0xff]
    %v1248 = vld [vmem:[#allocation5 + $0x130] sm:$0xff]
    %v1249 = vld [vmem:[#allocation5 + $0x138] sm:$0xff]
    %v1250 = vld [vmem:[#allocation5 + $0x140] sm:$0xff]
    %v1251 = vld [vmem:[#allocation5 + $0x148] sm:$0xff]
    %v1252 = vld [vmem:[#allocation5 + $0x150] sm:$0xff]
    %v1253 = vld [vmem:[#allocation5 + $0x158] sm:$0xff]
    %v1254 = vld [vmem:[#allocation5 + $0x160] sm:$0xff]
    %v1255 = vld [vmem:[#allocation5 + $0x168] sm:$0xff]
    %v1256 = vld [vmem:[#allocation5 + $0x170] sm:$0xff]
    %v1257 = vld [vmem:[#allocation5 + $0x178] sm:$0xff]
    %v1258 = vld [vmem:[#allocation5 + $0x180] sm:$0xff]
    %v1259 = vld [vmem:[#allocation5 + $0x188] sm:$0xff]
    %v1260 = vld [vmem:[#allocation5 + $0x190] sm:$0xff]
    %v1261 = vld [vmem:[#allocation5 + $0x198] sm:$0xff]
    %v1262 = vld [vmem:[#allocation5 + $0x1a0] sm:$0xff]
    %v1263 = vld [vmem:[#allocation5 + $0x1a8] sm:$0xff]
    %v1264 = vld [vmem:[#allocation5 + $0x1b0] sm:$0xff]
    %v1265 = vld [vmem:[#allocation5 + $0x1b8] sm:$0xff]
    %v1266 = vld [vmem:[#allocation5 + $0x1c0] sm:$0xff]
    %v1267 = vld [vmem:[#allocation5 + $0x1c8] sm:$0xff]
    %v1268 = vld [vmem:[#allocation5 + $0x1d0] sm:$0xff]
    %v1269 = vld [vmem:[#allocation5 + $0x1d8] sm:$0xff]
    %v1270 = vld [vmem:[#allocation5 + $0x1e0] sm:$0xff]
    %v1271 = vld [vmem:[#allocation5 + $0x1e8] sm:$0xff]
    %v1272 = vld [vmem:[#allocation5 + $0x1f0] sm:$0xff]
    %v1273 = vld [vmem:[#allocation5 + $0x1f8] sm:$0xff]
    %v1274 = vld [vmem:[#allocation5 + $0x200] sm:$0xff]
    %v1275 = vld [vmem:[#allocation5 + $0x208] sm:$0xff]
    %v1276 = vld [vmem:[#allocation5 + $0x210] sm:$0xff]
    %v1277 = vld [vmem:[#allocation5 + $0x218] sm:$0xff]
    %v1278 = vld [vmem:[#allocation5 + $0x220] sm:$0xff]
    %v1279 = vld [vmem:[#allocation5 + $0x228] sm:$0xff]
    %v1280 = vld [vmem:[#allocation5 + $0x230] sm:$0xff]
    %v1281 = vld [vmem:[#allocation5 + $0x238] sm:$0xff]
    %v1282 = vld [vmem:[#allocation5 + $0x240] sm:$0xff]
    %v1283 = vld [vmem:[#allocation5 + $0x248] sm:$0xff]
    %v1284 = vld [vmem:[#allocation5 + $0x250] sm:$0xff]
    %v1285 = vld [vmem:[#allocation5 + $0x258] sm:$0xff]
    %v1286 = vld [vmem:[#allocation5 + $0x260] sm:$0xff]
    %v1287 = vld [vmem:[#allocation5 + $0x268] sm:$0xff]
    %v1288 = vld [vmem:[#allocation5 + $0x270] sm:$0xff]
    %v1289 = vld [vmem:[#allocation5 + $0x278] sm:$0xff]
    %v1290 = vld [vmem:[#allocation5 + $0x280] sm:$0xff]
    %v1291 = vld [vmem:[#allocation5 + $0x288] sm:$0xff]
    %v1292 = vld [vmem:[#allocation5 + $0x290] sm:$0xff]
    %v1293 = vld [vmem:[#allocation5 + $0x298] sm:$0xff]
    %v1294 = vld [vmem:[#allocation5 + $0x2a0] sm:$0xff]
    %v1295 = vld [vmem:[#allocation5 + $0x2a8] sm:$0xff]
    %v1296 = vld [vmem:[#allocation5 + $0x2b0] sm:$0xff]
    %v1297 = vld [vmem:[#allocation5 + $0x2b8] sm:$0xff]
    %v1298 = vld [vmem:[#allocation5 + $0x2c0] sm:$0xff]
    %v1299 = vld [vmem:[#allocation5 + $0x2c8] sm:$0xff]
    %v1300 = vld [vmem:[#allocation5 + $0x2d0] sm:$0xff]
    %v1301 = vld [vmem:[#allocation5 + $0x2d8] sm:$0xff]
    %v1302 = vld [vmem:[#allocation5 + $0x2e0] sm:$0xff]
    %v1303 = vld [vmem:[#allocation5 + $0x2e8] sm:$0xff]
    %v1304 = vld [vmem:[#allocation5 + $0x2f0] sm:$0xff]
    %v1305 = vld [vmem:[#allocation5 + $0x2f8] sm:$0xff]
    %v1306 = vld [vmem:[#allocation5 + $0x300] sm:$0xff]
    %v1307 = vld [vmem:[#allocation5 + $0x308] sm:$0xff]
    %v1308 = vld [vmem:[#allocation5 + $0x310] sm:$0xff]
    %v1309 = vld [vmem:[#allocation5 + $0x318] sm:$0xff]
    %v1310 = vld [vmem:[#allocation5 + $0x320] sm:$0xff]
    %v1311 = vld [vmem:[#allocation5 + $0x328] sm:$0xff]
    %v1312 = vld [vmem:[#allocation5 + $0x330] sm:$0xff]
    %v1313 = vld [vmem:[#allocation5 + $0x338] sm:$0xff]
    %v1314 = vld [vmem:[#allocation5 + $0x340] sm:$0xff]
    %v1315 = vld [vmem:[#allocation5 + $0x348] sm:$0xff]
    %v1316 = vld [vmem:[#allocation5 + $0x350] sm:$0xff]
    %v1317 = vld [vmem:[#allocation5 + $0x358] sm:$0xff]
    %v1318 = vld [vmem:[#allocation5 + $0x360] sm:$0xff]
    %v1319 = vld [vmem:[#allocation5 + $0x368] sm:$0xff]
    %v1320 = vld [vmem:[#allocation5 + $0x370] sm:$0xff]
    %v1321 = vld [vmem:[#allocation5 + $0x378] sm:$0xff]
    %v1322 = vld [vmem:[#allocation5 + $0x380] sm:$0xff]
    %v1323 = vld [vmem:[#allocation5 + $0x388] sm:$0xff]
    %v1324 = vld [vmem:[#allocation5 + $0x390] sm:$0xff]
    %v1325 = vld [vmem:[#allocation5 + $0x398] sm:$0xff]
    %v1326 = vld [vmem:[#allocation5 + $0x3a0] sm:$0xff]
    %v1327 = vld [vmem:[#allocation5 + $0x3a8] sm:$0xff]
    %v1328 = vld [vmem:[#allocation5 + $0x3b0] sm:$0xff]
    %v1329 = vld [vmem:[#allocation5 + $0x3b8] sm:$0xff]
    %v1330 = vld [vmem:[#allocation5 + $0x3c0] sm:$0xff]
    %v1331 = vld [vmem:[#allocation5 + $0x3c8] sm:$0xff]
    %v1332 = vld [vmem:[#allocation5 + $0x3d0] sm:$0xff]
    %v1333 = vld [vmem:[#allocation5 + $0x3d8] sm:$0xff]
    %v1334 = vld [vmem:[#allocation5 + $0x3e0] sm:$0xff]
    %v1335 = vld [vmem:[#allocation5 + $0x3e8] sm:$0xff]
    %v1336 = vld [vmem:[#allocation5 + $0x3f0] sm:$0xff]
    %v1337 = vld [vmem:[#allocation5 + $0x3f8] sm:$0xff]
    %v1338 = vld [vmem:[#allocation7 + $0x25] sm:$0xff]
    %v1339 = vunpack.c.0.s8 %v1210
    %v1340 = vunpack.c.0.s8 %v1211
    %v1341 = vunpack.c.0.s8 %v1212
    %v1342 = vunpack.c.0.s8 %v1213
    %v1343 = vunpack.c.0.s8 %v1214
    %v1344 = vunpack.c.0.s8 %v1215
    %v1345 = vunpack.c.0.s8 %v1216
    %v1346 = vunpack.c.0.s8 %v1217
    %v1347 = vunpack.c.1.s8 %v1210
    %v1348 = vunpack.c.1.s8 %v1211
    %v1349 = vunpack.c.1.s8 %v1212
    %v1350 = vunpack.c.1.s8 %v1213
    %v1351 = vunpack.c.1.s8 %v1214
    %v1352 = vunpack.c.1.s8 %v1215
    %v1353 = vunpack.c.1.s8 %v1216
    %v1354 = vunpack.c.1.s8 %v1217
    %v1355 = vunpack.c.2.s8 %v1210
    %v1356 = vunpack.c.2.s8 %v1211
    %v1357 = vunpack.c.2.s8 %v1212
    %v1358 = vunpack.c.2.s8 %v1213
    %v1359 = vunpack.c.2.s8 %v1214
    %v1360 = vunpack.c.2.s8 %v1215
    %v1361 = vunpack.c.2.s8 %v1216
    %v1362 = vunpack.c.2.s8 %v1217
    %v1363 = vunpack.c.3.s8 %v1210
    %v1364 = vunpack.c.3.s8 %v1211
    %v1365 = vunpack.c.3.s8 %v1212
    %v1366 = vunpack.c.3.s8 %v1213
    %v1367 = vunpack.c.3.s8 %v1214
    %v1368 = vunpack.c.3.s8 %v1215
    %v1369 = vunpack.c.3.s8 %v1216
    %v1370 = vunpack.c.3.s8 %v1217
    %v1371 = vunpack.c.0.s8 %v1218
    %v1372 = vunpack.c.0.s8 %v1219
    %v1373 = vunpack.c.0.s8 %v1220
    %v1374 = vunpack.c.0.s8 %v1221
    %v1375 = vunpack.c.0.s8 %v1222
    %v1376 = vunpack.c.0.s8 %v1223
    %v1377 = vunpack.c.0.s8 %v1224
    %v1378 = vunpack.c.0.s8 %v1225
    %v1379 = vunpack.c.1.s8 %v1218
    %v1380 = vunpack.c.1.s8 %v1219
    %v1381 = vunpack.c.1.s8 %v1220
    %v1382 = vunpack.c.1.s8 %v1221
    %v1383 = vunpack.c.1.s8 %v1222
    %v1384 = vunpack.c.1.s8 %v1223
    %v1385 = vunpack.c.1.s8 %v1224
    %v1386 = vunpack.c.1.s8 %v1225
    %v1387 = vunpack.c.2.s8 %v1218
    %v1388 = vunpack.c.2.s8 %v1219
    %v1389 = vunpack.c.2.s8 %v1220
    %v1390 = vunpack.c.2.s8 %v1221
    %v1391 = vunpack.c.2.s8 %v1222
    %v1392 = vunpack.c.2.s8 %v1223
    %v1393 = vunpack.c.2.s8 %v1224
    %v1394 = vunpack.c.2.s8 %v1225
    %v1395 = vunpack.c.3.s8 %v1218
    %v1396 = vunpack.c.3.s8 %v1219
    %v1397 = vunpack.c.3.s8 %v1220
    %v1398 = vunpack.c.3.s8 %v1221
    %v1399 = vunpack.c.3.s8 %v1222
    %v1400 = vunpack.c.3.s8 %v1223
    %v1401 = vunpack.c.3.s8 %v1224
    %v1402 = vunpack.c.3.s8 %v1225
    %v1403 = vunpack.c.0.s8 %v1226
    %v1404 = vunpack.c.0.s8 %v1227
    %v1405 = vunpack.c.0.s8 %v1228
    %v1406 = vunpack.c.0.s8 %v1229
    %v1407 = vunpack.c.0.s8 %v1230
    %v1408 = vunpack.c.0.s8 %v1231
    %v1409 = vunpack.c.0.s8 %v1232
    %v1410 = vunpack.c.0.s8 %v1233
    %v1411 = vunpack.c.1.s8 %v1226
    %v1412 = vunpack.c.1.s8 %v1227
    %v1413 = vunpack.c.1.s8 %v1228
    %v1414 = vunpack.c.1.s8 %v1229
    %v1415 = vunpack.c.1.s8 %v1230
    %v1416 = vunpack.c.1.s8 %v1231
    %v1417 = vunpack.c.1.s8 %v1232
    %v1418 = vunpack.c.1.s8 %v1233
    %v1419 = vunpack.c.2.s8 %v1226
    %v1420 = vunpack.c.2.s8 %v1227
    %v1421 = vunpack.c.2.s8 %v1228
    %v1422 = vunpack.c.2.s8 %v1229
    %v1423 = vunpack.c.2.s8 %v1230
    %v1424 = vunpack.c.2.s8 %v1231
    %v1425 = vunpack.c.2.s8 %v1232
    %v1426 = vunpack.c.2.s8 %v1233
    %v1427 = vunpack.c.3.s8 %v1226
    %v1428 = vunpack.c.3.s8 %v1227
    %v1429 = vunpack.c.3.s8 %v1228
    %v1430 = vunpack.c.3.s8 %v1229
    %v1431 = vunpack.c.3.s8 %v1230
    %v1432 = vunpack.c.3.s8 %v1231
    %v1433 = vunpack.c.3.s8 %v1232
    %v1434 = vunpack.c.3.s8 %v1233
    %v1435 = vunpack.c.0.s8 %v1234
    %v1436 = vunpack.c.0.s8 %v1235
    %v1437 = vunpack.c.0.s8 %v1236
    %v1438 = vunpack.c.0.s8 %v1237
    %v1439 = vunpack.c.0.s8 %v1238
    %v1440 = vunpack.c.0.s8 %v1239
    %v1441 = vunpack.c.0.s8 %v1240
    %v1442 = vunpack.c.0.s8 %v1241
    %v1443 = vunpack.c.1.s8 %v1234
    %v1444 = vunpack.c.1.s8 %v1235
    %v1445 = vunpack.c.1.s8 %v1236
    %v1446 = vunpack.c.1.s8 %v1237
    %v1447 = vunpack.c.1.s8 %v1238
    %v1448 = vunpack.c.1.s8 %v1239
    %v1449 = vunpack.c.1.s8 %v1240
    %v1450 = vunpack.c.1.s8 %v1241
    %v1451 = vunpack.c.2.s8 %v1234
    %v1452 = vunpack.c.2.s8 %v1235
    %v1453 = vunpack.c.2.s8 %v1236
    %v1454 = vunpack.c.2.s8 %v1237
    %v1455 = vunpack.c.2.s8 %v1238
    %v1456 = vunpack.c.2.s8 %v1239
    %v1457 = vunpack.c.2.s8 %v1240
    %v1458 = vunpack.c.2.s8 %v1241
    %v1459 = vunpack.c.3.s8 %v1234
    %v1460 = vunpack.c.3.s8 %v1235
    %v1461 = vunpack.c.3.s8 %v1236
    %v1462 = vunpack.c.3.s8 %v1237
    %v1463 = vunpack.c.3.s8 %v1238
    %v1464 = vunpack.c.3.s8 %v1239
    %v1465 = vunpack.c.3.s8 %v1240
    %v1466 = vunpack.c.3.s8 %v1241
    %v1467 = vunpack.c.0.s8 %v1242
    %v1468 = vunpack.c.0.s8 %v1243
    %v1469 = vunpack.c.0.s8 %v1244
    %v1470 = vunpack.c.0.s8 %v1245
    %v1471 = vunpack.c.0.s8 %v1246
    %v1472 = vunpack.c.0.s8 %v1247
    %v1473 = vunpack.c.0.s8 %v1248
    %v1474 = vunpack.c.0.s8 %v1249
    %v1475 = vunpack.c.1.s8 %v1242
    %v1476 = vunpack.c.1.s8 %v1243
    %v1477 = vunpack.c.1.s8 %v1244
    %v1478 = vunpack.c.1.s8 %v1245
    %v1479 = vunpack.c.1.s8 %v1246
    %v1480 = vunpack.c.1.s8 %v1247
    %v1481 = vunpack.c.1.s8 %v1248
    %v1482 = vunpack.c.1.s8 %v1249
    %v1483 = vunpack.c.2.s8 %v1242
    %v1484 = vunpack.c.2.s8 %v1243
    %v1485 = vunpack.c.2.s8 %v1244
    %v1486 = vunpack.c.2.s8 %v1245
    %v1487 = vunpack.c.2.s8 %v1246
    %v1488 = vunpack.c.2.s8 %v1247
    %v1489 = vunpack.c.2.s8 %v1248
    %v1490 = vunpack.c.2.s8 %v1249
    %v1491 = vunpack.c.3.s8 %v1242
    %v1492 = vunpack.c.3.s8 %v1243
    %v1493 = vunpack.c.3.s8 %v1244
    %v1494 = vunpack.c.3.s8 %v1245
    %v1495 = vunpack.c.3.s8 %v1246
    %v1496 = vunpack.c.3.s8 %v1247
    %v1497 = vunpack.c.3.s8 %v1248
    %v1498 = vunpack.c.3.s8 %v1249
    %v1499 = vunpack.c.0.s8 %v1250
    %v1500 = vunpack.c.0.s8 %v1251
    %v1501 = vunpack.c.0.s8 %v1252
    %v1502 = vunpack.c.0.s8 %v1253
    %v1503 = vunpack.c.0.s8 %v1254
    %v1504 = vunpack.c.0.s8 %v1255
    %v1505 = vunpack.c.0.s8 %v1256
    %v1506 = vunpack.c.0.s8 %v1257
    %v1507 = vunpack.c.1.s8 %v1250
    %v1508 = vunpack.c.1.s8 %v1251
    %v1509 = vunpack.c.1.s8 %v1252
    %v1510 = vunpack.c.1.s8 %v1253
    %v1511 = vunpack.c.1.s8 %v1254
    %v1512 = vunpack.c.1.s8 %v1255
    %v1513 = vunpack.c.1.s8 %v1256
    %v1514 = vunpack.c.1.s8 %v1257
    %v1515 = vunpack.c.2.s8 %v1250
    %v1516 = vunpack.c.2.s8 %v1251
    %v1517 = vunpack.c.2.s8 %v1252
    %v1518 = vunpack.c.2.s8 %v1253
    %v1519 = vunpack.c.2.s8 %v1254
    %v1520 = vunpack.c.2.s8 %v1255
    %v1521 = vunpack.c.2.s8 %v1256
    %v1522 = vunpack.c.2.s8 %v1257
    %v1523 = vunpack.c.3.s8 %v1250
    %v1524 = vunpack.c.3.s8 %v1251
    %v1525 = vunpack.c.3.s8 %v1252
    %v1526 = vunpack.c.3.s8 %v1253
    %v1527 = vunpack.c.3.s8 %v1254
    %v1528 = vunpack.c.3.s8 %v1255
    %v1529 = vunpack.c.3.s8 %v1256
    %v1530 = vunpack.c.3.s8 %v1257
    %v1531 = vunpack.c.0.s8 %v1258
    %v1532 = vunpack.c.0.s8 %v1259
    %v1533 = vunpack.c.0.s8 %v1260
    %v1534 = vunpack.c.0.s8 %v1261
    %v1535 = vunpack.c.0.s8 %v1262
    %v1536 = vunpack.c.0.s8 %v1263
    %v1537 = vunpack.c.0.s8 %v1264
    %v1538 = vunpack.c.0.s8 %v1265
    %v1539 = vunpack.c.1.s8 %v1258
    %v1540 = vunpack.c.1.s8 %v1259
    %v1541 = vunpack.c.1.s8 %v1260
    %v1542 = vunpack.c.1.s8 %v1261
    %v1543 = vunpack.c.1.s8 %v1262
    %v1544 = vunpack.c.1.s8 %v1263
    %v1545 = vunpack.c.1.s8 %v1264
    %v1546 = vunpack.c.1.s8 %v1265
    %v1547 = vunpack.c.2.s8 %v1258
    %v1548 = vunpack.c.2.s8 %v1259
    %v1549 = vunpack.c.2.s8 %v1260
    %v1550 = vunpack.c.2.s8 %v1261
    %v1551 = vunpack.c.2.s8 %v1262
    %v1552 = vunpack.c.2.s8 %v1263
    %v1553 = vunpack.c.2.s8 %v1264
    %v1554 = vunpack.c.2.s8 %v1265
    %v1555 = vunpack.c.3.s8 %v1258
    %v1556 = vunpack.c.3.s8 %v1259
    %v1557 = vunpack.c.3.s8 %v1260
    %v1558 = vunpack.c.3.s8 %v1261
    %v1559 = vunpack.c.3.s8 %v1262
    %v1560 = vunpack.c.3.s8 %v1263
    %v1561 = vunpack.c.3.s8 %v1264
    %v1562 = vunpack.c.3.s8 %v1265
    %v1563 = vunpack.c.0.s8 %v1266
    %v1564 = vunpack.c.0.s8 %v1267
    %v1565 = vunpack.c.0.s8 %v1268
    %v1566 = vunpack.c.0.s8 %v1269
    %v1567 = vunpack.c.0.s8 %v1270
    %v1568 = vunpack.c.0.s8 %v1271
    %v1569 = vunpack.c.0.s8 %v1272
    %v1570 = vunpack.c.0.s8 %v1273
    %v1571 = vunpack.c.1.s8 %v1266
    %v1572 = vunpack.c.1.s8 %v1267
    %v1573 = vunpack.c.1.s8 %v1268
    %v1574 = vunpack.c.1.s8 %v1269
    %v1575 = vunpack.c.1.s8 %v1270
    %v1576 = vunpack.c.1.s8 %v1271
    %v1577 = vunpack.c.1.s8 %v1272
    %v1578 = vunpack.c.1.s8 %v1273
    %v1579 = vunpack.c.2.s8 %v1266
    %v1580 = vunpack.c.2.s8 %v1267
    %v1581 = vunpack.c.2.s8 %v1268
    %v1582 = vunpack.c.2.s8 %v1269
    %v1583 = vunpack.c.2.s8 %v1270
    %v1584 = vunpack.c.2.s8 %v1271
    %v1585 = vunpack.c.2.s8 %v1272
    %v1586 = vunpack.c.2.s8 %v1273
    %v1587 = vunpack.c.3.s8 %v1266
    %v1588 = vunpack.c.3.s8 %v1267
    %v1589 = vunpack.c.3.s8 %v1268
    %v1590 = vunpack.c.3.s8 %v1269
    %v1591 = vunpack.c.3.s8 %v1270
    %v1592 = vunpack.c.3.s8 %v1271
    %v1593 = vunpack.c.3.s8 %v1272
    %v1594 = vunpack.c.3.s8 %v1273
    %v1595 = vunpack.c.0.s8 %v1274
    %v1596 = vunpack.c.0.s8 %v1275
    %v1597 = vunpack.c.0.s8 %v1276
    %v1598 = vunpack.c.0.s8 %v1277
    %v1599 = vunpack.c.0.s8 %v1278
    %v1600 = vunpack.c.0.s8 %v1279
    %v1601 = vunpack.c.0.s8 %v1280
    %v1602 = vunpack.c.0.s8 %v1281
    %v1603 = vunpack.c.1.s8 %v1274
    %v1604 = vunpack.c.1.s8 %v1275
    %v1605 = vunpack.c.1.s8 %v1276
    %v1606 = vunpack.c.1.s8 %v1277
    %v1607 = vunpack.c.1.s8 %v1278
    %v1608 = vunpack.c.1.s8 %v1279
    %v1609 = vunpack.c.1.s8 %v1280
    %v1610 = vunpack.c.1.s8 %v1281
    %v1611 = vunpack.c.2.s8 %v1274
    %v1612 = vunpack.c.2.s8 %v1275
    %v1613 = vunpack.c.2.s8 %v1276
    %v1614 = vunpack.c.2.s8 %v1277
    %v1615 = vunpack.c.2.s8 %v1278
    %v1616 = vunpack.c.2.s8 %v1279
    %v1617 = vunpack.c.2.s8 %v1280
    %v1618 = vunpack.c.2.s8 %v1281
    %v1619 = vunpack.c.3.s8 %v1274
    %v1620 = vunpack.c.3.s8 %v1275
    %v1621 = vunpack.c.3.s8 %v1276
    %v1622 = vunpack.c.3.s8 %v1277
    %v1623 = vunpack.c.3.s8 %v1278
    %v1624 = vunpack.c.3.s8 %v1279
    %v1625 = vunpack.c.3.s8 %v1280
    %v1626 = vunpack.c.3.s8 %v1281
    %v1627 = vunpack.c.0.s8 %v1282
    %v1628 = vunpack.c.0.s8 %v1283
    %v1629 = vunpack.c.0.s8 %v1284
    %v1630 = vunpack.c.0.s8 %v1285
    %v1631 = vunpack.c.0.s8 %v1286
    %v1632 = vunpack.c.0.s8 %v1287
    %v1633 = vunpack.c.0.s8 %v1288
    %v1634 = vunpack.c.0.s8 %v1289
    %v1635 = vunpack.c.1.s8 %v1282
    %v1636 = vunpack.c.1.s8 %v1283
    %v1637 = vunpack.c.1.s8 %v1284
    %v1638 = vunpack.c.1.s8 %v1285
    %v1639 = vunpack.c.1.s8 %v1286
    %v1640 = vunpack.c.1.s8 %v1287
    %v1641 = vunpack.c.1.s8 %v1288
    %v1642 = vunpack.c.1.s8 %v1289
    %v1643 = vunpack.c.2.s8 %v1282
    %v1644 = vunpack.c.2.s8 %v1283
    %v1645 = vunpack.c.2.s8 %v1284
    %v1646 = vunpack.c.2.s8 %v1285
    %v1647 = vunpack.c.2.s8 %v1286
    %v1648 = vunpack.c.2.s8 %v1287
    %v1649 = vunpack.c.2.s8 %v1288
    %v1650 = vunpack.c.2.s8 %v1289
    %v1651 = vunpack.c.3.s8 %v1282
    %v1652 = vunpack.c.3.s8 %v1283
    %v1653 = vunpack.c.3.s8 %v1284
    %v1654 = vunpack.c.3.s8 %v1285
    %v1655 = vunpack.c.3.s8 %v1286
    %v1656 = vunpack.c.3.s8 %v1287
    %v1657 = vunpack.c.3.s8 %v1288
    %v1658 = vunpack.c.3.s8 %v1289
    %v1659 = vunpack.c.0.s8 %v1290
    %v1660 = vunpack.c.0.s8 %v1291
    %v1661 = vunpack.c.0.s8 %v1292
    %v1662 = vunpack.c.0.s8 %v1293
    %v1663 = vunpack.c.0.s8 %v1294
    %v1664 = vunpack.c.0.s8 %v1295
    %v1665 = vunpack.c.0.s8 %v1296
    %v1666 = vunpack.c.0.s8 %v1297
    %v1667 = vunpack.c.1.s8 %v1290
    %v1668 = vunpack.c.1.s8 %v1291
    %v1669 = vunpack.c.1.s8 %v1292
    %v1670 = vunpack.c.1.s8 %v1293
    %v1671 = vunpack.c.1.s8 %v1294
    %v1672 = vunpack.c.1.s8 %v1295
    %v1673 = vunpack.c.1.s8 %v1296
    %v1674 = vunpack.c.1.s8 %v1297
    %v1675 = vunpack.c.2.s8 %v1290
    %v1676 = vunpack.c.2.s8 %v1291
    %v1677 = vunpack.c.2.s8 %v1292
    %v1678 = vunpack.c.2.s8 %v1293
    %v1679 = vunpack.c.2.s8 %v1294
    %v1680 = vunpack.c.2.s8 %v1295
    %v1681 = vunpack.c.2.s8 %v1296
    %v1682 = vunpack.c.2.s8 %v1297
    %v1683 = vunpack.c.3.s8 %v1290
    %v1684 = vunpack.c.3.s8 %v1291
    %v1685 = vunpack.c.3.s8 %v1292
    %v1686 = vunpack.c.3.s8 %v1293
    %v1687 = vunpack.c.3.s8 %v1294
    %v1688 = vunpack.c.3.s8 %v1295
    %v1689 = vunpack.c.3.s8 %v1296
    %v1690 = vunpack.c.3.s8 %v1297
    %v1691 = vunpack.c.0.s8 %v1298
    %v1692 = vunpack.c.0.s8 %v1299
    %v1693 = vunpack.c.0.s8 %v1300
    %v1694 = vunpack.c.0.s8 %v1301
    %v1695 = vunpack.c.0.s8 %v1302
    %v1696 = vunpack.c.0.s8 %v1303
    %v1697 = vunpack.c.0.s8 %v1304
    %v1698 = vunpack.c.0.s8 %v1305
    %v1699 = vunpack.c.1.s8 %v1298
    %v1700 = vunpack.c.1.s8 %v1299
    %v1701 = vunpack.c.1.s8 %v1300
    %v1702 = vunpack.c.1.s8 %v1301
    %v1703 = vunpack.c.1.s8 %v1302
    %v1704 = vunpack.c.1.s8 %v1303
    %v1705 = vunpack.c.1.s8 %v1304
    %v1706 = vunpack.c.1.s8 %v1305
    %v1707 = vunpack.c.2.s8 %v1298
    %v1708 = vunpack.c.2.s8 %v1299
    %v1709 = vunpack.c.2.s8 %v1300
    %v1710 = vunpack.c.2.s8 %v1301
    %v1711 = vunpack.c.2.s8 %v1302
    %v1712 = vunpack.c.2.s8 %v1303
    %v1713 = vunpack.c.2.s8 %v1304
    %v1714 = vunpack.c.2.s8 %v1305
    %v1715 = vunpack.c.3.s8 %v1298
    %v1716 = vunpack.c.3.s8 %v1299
    %v1717 = vunpack.c.3.s8 %v1300
    %v1718 = vunpack.c.3.s8 %v1301
    %v1719 = vunpack.c.3.s8 %v1302
    %v1720 = vunpack.c.3.s8 %v1303
    %v1721 = vunpack.c.3.s8 %v1304
    %v1722 = vunpack.c.3.s8 %v1305
    %v1723 = vunpack.c.0.s8 %v1306
    %v1724 = vunpack.c.0.s8 %v1307
    %v1725 = vunpack.c.0.s8 %v1308
    %v1726 = vunpack.c.0.s8 %v1309
    %v1727 = vunpack.c.0.s8 %v1310
    %v1728 = vunpack.c.0.s8 %v1311
    %v1729 = vunpack.c.0.s8 %v1312
    %v1730 = vunpack.c.0.s8 %v1313
    %v1731 = vunpack.c.1.s8 %v1306
    %v1732 = vunpack.c.1.s8 %v1307
    %v1733 = vunpack.c.1.s8 %v1308
    %v1734 = vunpack.c.1.s8 %v1309
    %v1735 = vunpack.c.1.s8 %v1310
    %v1736 = vunpack.c.1.s8 %v1311
    %v1737 = vunpack.c.1.s8 %v1312
    %v1738 = vunpack.c.1.s8 %v1313
    %v1739 = vunpack.c.2.s8 %v1306
    %v1740 = vunpack.c.2.s8 %v1307
    %v1741 = vunpack.c.2.s8 %v1308
    %v1742 = vunpack.c.2.s8 %v1309
    %v1743 = vunpack.c.2.s8 %v1310
    %v1744 = vunpack.c.2.s8 %v1311
    %v1745 = vunpack.c.2.s8 %v1312
    %v1746 = vunpack.c.2.s8 %v1313
    %v1747 = vunpack.c.3.s8 %v1306
    %v1748 = vunpack.c.3.s8 %v1307
    %v1749 = vunpack.c.3.s8 %v1308
    %v1750 = vunpack.c.3.s8 %v1309
    %v1751 = vunpack.c.3.s8 %v1310
    %v1752 = vunpack.c.3.s8 %v1311
    %v1753 = vunpack.c.3.s8 %v1312
    %v1754 = vunpack.c.3.s8 %v1313
    %v1755 = vunpack.c.0.s8 %v1314
    %v1756 = vunpack.c.0.s8 %v1315
    %v1757 = vunpack.c.0.s8 %v1316
    %v1758 = vunpack.c.0.s8 %v1317
    %v1759 = vunpack.c.0.s8 %v1318
    %v1760 = vunpack.c.0.s8 %v1319
    %v1761 = vunpack.c.0.s8 %v1320
    %v1762 = vunpack.c.0.s8 %v1321
    %v1763 = vunpack.c.1.s8 %v1314
    %v1764 = vunpack.c.1.s8 %v1315
    %v1765 = vunpack.c.1.s8 %v1316
    %v1766 = vunpack.c.1.s8 %v1317
    %v1767 = vunpack.c.1.s8 %v1318
    %v1768 = vunpack.c.1.s8 %v1319
    %v1769 = vunpack.c.1.s8 %v1320
    %v1770 = vunpack.c.1.s8 %v1321
    %v1771 = vunpack.c.2.s8 %v1314
    %v1772 = vunpack.c.2.s8 %v1315
    %v1773 = vunpack.c.2.s8 %v1316
    %v1774 = vunpack.c.2.s8 %v1317
    %v1775 = vunpack.c.2.s8 %v1318
    %v1776 = vunpack.c.2.s8 %v1319
    %v1777 = vunpack.c.2.s8 %v1320
    %v1778 = vunpack.c.2.s8 %v1321
    %v1779 = vunpack.c.3.s8 %v1314
    %v1780 = vunpack.c.3.s8 %v1315
    %v1781 = vunpack.c.3.s8 %v1316
    %v1782 = vunpack.c.3.s8 %v1317
    %v1783 = vunpack.c.3.s8 %v1318
    %v1784 = vunpack.c.3.s8 %v1319
    %v1785 = vunpack.c.3.s8 %v1320
    %v1786 = vunpack.c.3.s8 %v1321
    %v1787 = vunpack.c.0.s8 %v1322
    %v1788 = vunpack.c.0.s8 %v1323
    %v1789 = vunpack.c.0.s8 %v1324
    %v1790 = vunpack.c.0.s8 %v1325
    %v1791 = vunpack.c.0.s8 %v1326
    %v1792 = vunpack.c.0.s8 %v1327
    %v1793 = vunpack.c.0.s8 %v1328
    %v1794 = vunpack.c.0.s8 %v1329
    %v1795 = vunpack.c.1.s8 %v1322
    %v1796 = vunpack.c.1.s8 %v1323
    %v1797 = vunpack.c.1.s8 %v1324
    %v1798 = vunpack.c.1.s8 %v1325
    %v1799 = vunpack.c.1.s8 %v1326
    %v1800 = vunpack.c.1.s8 %v1327
    %v1801 = vunpack.c.1.s8 %v1328
    %v1802 = vunpack.c.1.s8 %v1329
    %v1803 = vunpack.c.2.s8 %v1322
    %v1804 = vunpack.c.2.s8 %v1323
    %v1805 = vunpack.c.2.s8 %v1324
    %v1806 = vunpack.c.2.s8 %v1325
    %v1807 = vunpack.c.2.s8 %v1326
    %v1808 = vunpack.c.2.s8 %v1327
    %v1809 = vunpack.c.2.s8 %v1328
    %v1810 = vunpack.c.2.s8 %v1329
    %v1811 = vunpack.c.3.s8 %v1322
    %v1812 = vunpack.c.3.s8 %v1323
    %v1813 = vunpack.c.3.s8 %v1324
    %v1814 = vunpack.c.3.s8 %v1325
    %v1815 = vunpack.c.3.s8 %v1326
    %v1816 = vunpack.c.3.s8 %v1327
    %v1817 = vunpack.c.3.s8 %v1328
    %v1818 = vunpack.c.3.s8 %v1329
    %v1819 = vunpack.c.0.s8 %v1330
    %v1820 = vunpack.c.0.s8 %v1331
    %v1821 = vunpack.c.0.s8 %v1332
    %v1822 = vunpack.c.0.s8 %v1333
    %v1823 = vunpack.c.0.s8 %v1334
    %v1824 = vunpack.c.0.s8 %v1335
    %v1825 = vunpack.c.0.s8 %v1336
    %v1826 = vunpack.c.0.s8 %v1337
    %v1827 = vunpack.c.1.s8 %v1330
    %v1828 = vunpack.c.1.s8 %v1331
    %v1829 = vunpack.c.1.s8 %v1332
    %v1830 = vunpack.c.1.s8 %v1333
    %v1831 = vunpack.c.1.s8 %v1334
    %v1832 = vunpack.c.1.s8 %v1335
    %v1833 = vunpack.c.1.s8 %v1336
    %v1834 = vunpack.c.1.s8 %v1337
    %v1835 = vunpack.c.2.s8 %v1330
    %v1836 = vunpack.c.2.s8 %v1331
    %v1837 = vunpack.c.2.s8 %v1332
    %v1838 = vunpack.c.2.s8 %v1333
    %v1839 = vunpack.c.2.s8 %v1334
    %v1840 = vunpack.c.2.s8 %v1335
    %v1841 = vunpack.c.2.s8 %v1336
    %v1842 = vunpack.c.2.s8 %v1337
    %v1843 = vunpack.c.3.s8 %v1330
    %v1844 = vunpack.c.3.s8 %v1331
    %v1845 = vunpack.c.3.s8 %v1332
    %v1846 = vunpack.c.3.s8 %v1333
    %v1847 = vunpack.c.3.s8 %v1334
    %v1848 = vunpack.c.3.s8 %v1335
    %v1849 = vunpack.c.3.s8 %v1336
    %v1850 = vunpack.c.3.s8 %v1337
    %v1851 = vcvt.s32.f32 %v1339
    %v1852 = vcvt.s32.f32 %v1340
    %v1853 = vcvt.s32.f32 %v1341
    %v1854 = vcvt.s32.f32 %v1342
    %v1855 = vcvt.s32.f32 %v1343
    %v1856 = vcvt.s32.f32 %v1344
    %v1857 = vcvt.s32.f32 %v1345
    %v1858 = vcvt.s32.f32 %v1346
    %v1859 = vcvt.s32.f32 %v1347
    %v1860 = vcvt.s32.f32 %v1348
    %v1861 = vcvt.s32.f32 %v1349
    %v1862 = vcvt.s32.f32 %v1350
    %v1863 = vcvt.s32.f32 %v1351
    %v1864 = vcvt.s32.f32 %v1352
    %v1865 = vcvt.s32.f32 %v1353
    %v1866 = vcvt.s32.f32 %v1354
    %v1867 = vcvt.s32.f32 %v1355
    %v1868 = vcvt.s32.f32 %v1356
    %v1869 = vcvt.s32.f32 %v1357
    %v1870 = vcvt.s32.f32 %v1358
    %v1871 = vcvt.s32.f32 %v1359
    %v1872 = vcvt.s32.f32 %v1360
    %v1873 = vcvt.s32.f32 %v1361
    %v1874 = vcvt.s32.f32 %v1362
    %v1875 = vcvt.s32.f32 %v1363
    %v1876 = vcvt.s32.f32 %v1364
    %v1877 = vcvt.s32.f32 %v1365
    %v1878 = vcvt.s32.f32 %v1366
    %v1879 = vcvt.s32.f32 %v1367
    %v1880 = vcvt.s32.f32 %v1368
    %v1881 = vcvt.s32.f32 %v1369
    %v1882 = vcvt.s32.f32 %v1370
    %v1883 = vcvt.s32.f32 %v1371
    %v1884 = vcvt.s32.f32 %v1372
    %v1885 = vcvt.s32.f32 %v1373
    %v1886 = vcvt.s32.f32 %v1374
    %v1887 = vcvt.s32.f32 %v1375
    %v1888 = vcvt.s32.f32 %v1376
    %v1889 = vcvt.s32.f32 %v1377
    %v1890 = vcvt.s32.f32 %v1378
    %v1891 = vcvt.s32.f32 %v1379
    %v1892 = vcvt.s32.f32 %v1380
    %v1893 = vcvt.s32.f32 %v1381
    %v1894 = vcvt.s32.f32 %v1382
    %v1895 = vcvt.s32.f32 %v1383
    %v1896 = vcvt.s32.f32 %v1384
    %v1897 = vcvt.s32.f32 %v1385
    %v1898 = vcvt.s32.f32 %v1386
    %v1899 = vcvt.s32.f32 %v1387
    %v1900 = vcvt.s32.f32 %v1388
    %v1901 = vcvt.s32.f32 %v1389
    %v1902 = vcvt.s32.f32 %v1390
    %v1903 = vcvt.s32.f32 %v1391
    %v1904 = vcvt.s32.f32 %v1392
    %v1905 = vcvt.s32.f32 %v1393
    %v1906 = vcvt.s32.f32 %v1394
    %v1907 = vcvt.s32.f32 %v1395
    %v1908 = vcvt.s32.f32 %v1396
    %v1909 = vcvt.s32.f32 %v1397
    %v1910 = vcvt.s32.f32 %v1398
    %v1911 = vcvt.s32.f32 %v1399
    %v1912 = vcvt.s32.f32 %v1400
    %v1913 = vcvt.s32.f32 %v1401
    %v1914 = vcvt.s32.f32 %v1402
    %v1915 = vcvt.s32.f32 %v1403
    %v1916 = vcvt.s32.f32 %v1404
    %v1917 = vcvt.s32.f32 %v1405
    %v1918 = vcvt.s32.f32 %v1406
    %v1919 = vcvt.s32.f32 %v1407
    %v1920 = vcvt.s32.f32 %v1408
    %v1921 = vcvt.s32.f32 %v1409
    %v1922 = vcvt.s32.f32 %v1410
    %v1923 = vcvt.s32.f32 %v1411
    %v1924 = vcvt.s32.f32 %v1412
    %v1925 = vcvt.s32.f32 %v1413
    %v1926 = vcvt.s32.f32 %v1414
    %v1927 = vcvt.s32.f32 %v1415
    %v1928 = vcvt.s32.f32 %v1416
    %v1929 = vcvt.s32.f32 %v1417
    %v1930 = vcvt.s32.f32 %v1418
    %v1931 = vcvt.s32.f32 %v1419
    %v1932 = vcvt.s32.f32 %v1420
    %v1933 = vcvt.s32.f32 %v1421
    %v1934 = vcvt.s32.f32 %v1422
    %v1935 = vcvt.s32.f32 %v1423
    %v1936 = vcvt.s32.f32 %v1424
    %v1937 = vcvt.s32.f32 %v1425
    %v1938 = vcvt.s32.f32 %v1426
    %v1939 = vcvt.s32.f32 %v1427
    %v1940 = vcvt.s32.f32 %v1428
    %v1941 = vcvt.s32.f32 %v1429
    %v1942 = vcvt.s32.f32 %v1430
    %v1943 = vcvt.s32.f32 %v1431
    %v1944 = vcvt.s32.f32 %v1432
    %v1945 = vcvt.s32.f32 %v1433
    %v1946 = vcvt.s32.f32 %v1434
    %v1947 = vcvt.s32.f32 %v1435
    %v1948 = vcvt.s32.f32 %v1436
    %v1949 = vcvt.s32.f32 %v1437
    %v1950 = vcvt.s32.f32 %v1438
    %v1951 = vcvt.s32.f32 %v1439
    %v1952 = vcvt.s32.f32 %v1440
    %v1953 = vcvt.s32.f32 %v1441
    %v1954 = vcvt.s32.f32 %v1442
    %v1955 = vcvt.s32.f32 %v1443
    %v1956 = vcvt.s32.f32 %v1444
    %v1957 = vcvt.s32.f32 %v1445
    %v1958 = vcvt.s32.f32 %v1446
    %v1959 = vcvt.s32.f32 %v1447
    %v1960 = vcvt.s32.f32 %v1448
    %v1961 = vcvt.s32.f32 %v1449
    %v1962 = vcvt.s32.f32 %v1450
    %v1963 = vcvt.s32.f32 %v1451
    %v1964 = vcvt.s32.f32 %v1452
    %v1965 = vcvt.s32.f32 %v1453
    %v1966 = vcvt.s32.f32 %v1454
    %v1967 = vcvt.s32.f32 %v1455
    %v1968 = vcvt.s32.f32 %v1456
    %v1969 = vcvt.s32.f32 %v1457
    %v1970 = vcvt.s32.f32 %v1458
    %v1971 = vcvt.s32.f32 %v1459
    %v1972 = vcvt.s32.f32 %v1460
    %v1973 = vcvt.s32.f32 %v1461
    %v1974 = vcvt.s32.f32 %v1462
    %v1975 = vcvt.s32.f32 %v1463
    %v1976 = vcvt.s32.f32 %v1464
    %v1977 = vcvt.s32.f32 %v1465
    %v1978 = vcvt.s32.f32 %v1466
    %v1979 = vcvt.s32.f32 %v1467
    %v1980 = vcvt.s32.f32 %v1468
    %v1981 = vcvt.s32.f32 %v1469
    %v1982 = vcvt.s32.f32 %v1470
    %v1983 = vcvt.s32.f32 %v1471
    %v1984 = vcvt.s32.f32 %v1472
    %v1985 = vcvt.s32.f32 %v1473
    %v1986 = vcvt.s32.f32 %v1474
    %v1987 = vcvt.s32.f32 %v1475
    %v1988 = vcvt.s32.f32 %v1476
    %v1989 = vcvt.s32.f32 %v1477
    %v1990 = vcvt.s32.f32 %v1478
    %v1991 = vcvt.s32.f32 %v1479
    %v1992 = vcvt.s32.f32 %v1480
    %v1993 = vcvt.s32.f32 %v1481
    %v1994 = vcvt.s32.f32 %v1482
    %v1995 = vcvt.s32.f32 %v1483
    %v1996 = vcvt.s32.f32 %v1484
    %v1997 = vcvt.s32.f32 %v1485
    %v1998 = vcvt.s32.f32 %v1486
    %v1999 = vcvt.s32.f32 %v1487
    %v2000 = vcvt.s32.f32 %v1488
    %v2001 = vcvt.s32.f32 %v1489
    %v2002 = vcvt.s32.f32 %v1490
    %v2003 = vcvt.s32.f32 %v1491
    %v2004 = vcvt.s32.f32 %v1492
    %v2005 = vcvt.s32.f32 %v1493
    %v2006 = vcvt.s32.f32 %v1494
    %v2007 = vcvt.s32.f32 %v1495
    %v2008 = vcvt.s32.f32 %v1496
    %v2009 = vcvt.s32.f32 %v1497
    %v2010 = vcvt.s32.f32 %v1498
    %v2011 = vcvt.s32.f32 %v1499
    %v2012 = vcvt.s32.f32 %v1500
    %v2013 = vcvt.s32.f32 %v1501
    %v2014 = vcvt.s32.f32 %v1502
    %v2015 = vcvt.s32.f32 %v1503
    %v2016 = vcvt.s32.f32 %v1504
    %v2017 = vcvt.s32.f32 %v1505
    %v2018 = vcvt.s32.f32 %v1506
    %v2019 = vcvt.s32.f32 %v1507
    %v2020 = vcvt.s32.f32 %v1508
    %v2021 = vcvt.s32.f32 %v1509
    %v2022 = vcvt.s32.f32 %v1510
    %v2023 = vcvt.s32.f32 %v1511
    %v2024 = vcvt.s32.f32 %v1512
    %v2025 = vcvt.s32.f32 %v1513
    %v2026 = vcvt.s32.f32 %v1514
    %v2027 = vcvt.s32.f32 %v1515
    %v2028 = vcvt.s32.f32 %v1516
    %v2029 = vcvt.s32.f32 %v1517
    %v2030 = vcvt.s32.f32 %v1518
    %v2031 = vcvt.s32.f32 %v1519
    %v2032 = vcvt.s32.f32 %v1520
    %v2033 = vcvt.s32.f32 %v1521
    %v2034 = vcvt.s32.f32 %v1522
    %v2035 = vcvt.s32.f32 %v1523
    %v2036 = vcvt.s32.f32 %v1524
    %v2037 = vcvt.s32.f32 %v1525
    %v2038 = vcvt.s32.f32 %v1526
    %v2039 = vcvt.s32.f32 %v1527
    %v2040 = vcvt.s32.f32 %v1528
    %v2041 = vcvt.s32.f32 %v1529
    %v2042 = vcvt.s32.f32 %v1530
    %v2043 = vcvt.s32.f32 %v1531
    %v2044 = vcvt.s32.f32 %v1532
    %v2045 = vcvt.s32.f32 %v1533
    %v2046 = vcvt.s32.f32 %v1534
    %v2047 = vcvt.s32.f32 %v1535
    %v2048 = vcvt.s32.f32 %v1536
    %v2049 = vcvt.s32.f32 %v1537
    %v2050 = vcvt.s32.f32 %v1538
    %v2051 = vcvt.s32.f32 %v1539
    %v2052 = vcvt.s32.f32 %v1540
    %v2053 = vcvt.s32.f32 %v1541
    %v2054 = vcvt.s32.f32 %v1542
    %v2055 = vcvt.s32.f32 %v1543
    %v2056 = vcvt.s32.f32 %v1544
    %v2057 = vcvt.s32.f32 %v1545
    %v2058 = vcvt.s32.f32 %v1546
    %v2059 = vcvt.s32.f32 %v1547
    %v2060 = vcvt.s32.f32 %v1548
    %v2061 = vcvt.s32.f32 %v1549
    %v2062 = vcvt.s32.f32 %v1550
    %v2063 = vcvt.s32.f32 %v1551
    %v2064 = vcvt.s32.f32 %v1552
    %v2065 = vcvt.s32.f32 %v1553
    %v2066 = vcvt.s32.f32 %v1554
    %v2067 = vcvt.s32.f32 %v1555
    %v2068 = vcvt.s32.f32 %v1556
    %v2069 = vcvt.s32.f32 %v1557
    %v2070 = vcvt.s32.f32 %v1558
    %v2071 = vcvt.s32.f32 %v1559
    %v2072 = vcvt.s32.f32 %v1560
    %v2073 = vcvt.s32.f32 %v1561
    %v2074 = vcvt.s32.f32 %v1562
    %v2075 = vcvt.s32.f32 %v1563
    %v2076 = vcvt.s32.f32 %v1564
    %v2077 = vcvt.s32.f32 %v1565
    %v2078 = vcvt.s32.f32 %v1566
    %v2079 = vcvt.s32.f32 %v1567
    %v2080 = vcvt.s32.f32 %v1568
    %v2081 = vcvt.s32.f32 %v1569
    %v2082 = vcvt.s32.f32 %v1570
    %v2083 = vcvt.s32.f32 %v1571
    %v2084 = vcvt.s32.f32 %v1572
    %v2085 = vcvt.s32.f32 %v1573
    %v2086 = vcvt.s32.f32 %v1574
    %v2087 = vcvt.s32.f32 %v1575
    %v2088 = vcvt.s32.f32 %v1576
    %v2089 = vcvt.s32.f32 %v1577
    %v2090 = vcvt.s32.f32 %v1578
    %v2091 = vcvt.s32.f32 %v1579
    %v2092 = vcvt.s32.f32 %v1580
    %v2093 = vcvt.s32.f32 %v1581
    %v2094 = vcvt.s32.f32 %v1582
    %v2095 = vcvt.s32.f32 %v1583
    %v2096 = vcvt.s32.f32 %v1584
    %v2097 = vcvt.s32.f32 %v1585
    %v2098 = vcvt.s32.f32 %v1586
    %v2099 = vcvt.s32.f32 %v1587
    %v2100 = vcvt.s32.f32 %v1588
    %v2101 = vcvt.s32.f32 %v1589
    %v2102 = vcvt.s32.f32 %v1590
    %v2103 = vcvt.s32.f32 %v1591
    %v2104 = vcvt.s32.f32 %v1592
    %v2105 = vcvt.s32.f32 %v1593
    %v2106 = vcvt.s32.f32 %v1594
    %v2107 = vcvt.s32.f32 %v1595
    %v2108 = vcvt.s32.f32 %v1596
    %v2109 = vcvt.s32.f32 %v1597
    %v2110 = vcvt.s32.f32 %v1598
    %v2111 = vcvt.s32.f32 %v1599
    %v2112 = vcvt.s32.f32 %v1600
    %v2113 = vcvt.s32.f32 %v1601
    %v2114 = vcvt.s32.f32 %v1602
    %v2115 = vcvt.s32.f32 %v1603
    %v2116 = vcvt.s32.f32 %v1604
    %v2117 = vcvt.s32.f32 %v1605
    %v2118 = vcvt.s32.f32 %v1606
    %v2119 = vcvt.s32.f32 %v1607
    %v2120 = vcvt.s32.f32 %v1608
    %v2121 = vcvt.s32.f32 %v1609
    %v2122 = vcvt.s32.f32 %v1610
    %v2123 = vcvt.s32.f32 %v1611
    %v2124 = vcvt.s32.f32 %v1612
    %v2125 = vcvt.s32.f32 %v1613
    %v2126 = vcvt.s32.f32 %v1614
    %v2127 = vcvt.s32.f32 %v1615
    %v2128 = vcvt.s32.f32 %v1616
    %v2129 = vcvt.s32.f32 %v1617
    %v2130 = vcvt.s32.f32 %v1618
    %v2131 = vcvt.s32.f32 %v1619
    %v2132 = vcvt.s32.f32 %v1620
    %v2133 = vcvt.s32.f32 %v1621
    %v2134 = vcvt.s32.f32 %v1622
    %v2135 = vcvt.s32.f32 %v1623
    %v2136 = vcvt.s32.f32 %v1624
    %v2137 = vcvt.s32.f32 %v1625
    %v2138 = vcvt.s32.f32 %v1626
    %v2139 = vcvt.s32.f32 %v1627
    %v2140 = vcvt.s32.f32 %v1628
    %v2141 = vcvt.s32.f32 %v1629
    %v2142 = vcvt.s32.f32 %v1630
    %v2143 = vcvt.s32.f32 %v1631
    %v2144 = vcvt.s32.f32 %v1632
    %v2145 = vcvt.s32.f32 %v1633
    %v2146 = vcvt.s32.f32 %v1634
    %v2147 = vcvt.s32.f32 %v1635
    %v2148 = vcvt.s32.f32 %v1636
    %v2149 = vcvt.s32.f32 %v1637
    %v2150 = vcvt.s32.f32 %v1638
    %v2151 = vcvt.s32.f32 %v1639
    %v2152 = vcvt.s32.f32 %v1640
    %v2153 = vcvt.s32.f32 %v1641
    %v2154 = vcvt.s32.f32 %v1642
    %v2155 = vcvt.s32.f32 %v1643
    %v2156 = vcvt.s32.f32 %v1644
    %v2157 = vcvt.s32.f32 %v1645
    %v2158 = vcvt.s32.f32 %v1646
    %v2159 = vcvt.s32.f32 %v1647
    %v2160 = vcvt.s32.f32 %v1648
    %v2161 = vcvt.s32.f32 %v1649
    %v2162 = vcvt.s32.f32 %v1650
    %v2163 = vcvt.s32.f32 %v1651
    %v2164 = vcvt.s32.f32 %v1652
    %v2165 = vcvt.s32.f32 %v1653
    %v2166 = vcvt.s32.f32 %v1654
    %v2167 = vcvt.s32.f32 %v1655
    %v2168 = vcvt.s32.f32 %v1656
    %v2169 = vcvt.s32.f32 %v1657
    %v2170 = vcvt.s32.f32 %v1658
    %v2171 = vcvt.s32.f32 %v1659
    %v2172 = vcvt.s32.f32 %v1660
    %v2173 = vcvt.s32.f32 %v1661
    %v2174 = vcvt.s32.f32 %v1662
    %v2175 = vcvt.s32.f32 %v1663
    %v2176 = vcvt.s32.f32 %v1664
    %v2177 = vcvt.s32.f32 %v1665
    %v2178 = vcvt.s32.f32 %v1666
    %v2179 = vcvt.s32.f32 %v1667
    %v2180 = vcvt.s32.f32 %v1668
    %v2181 = vcvt.s32.f32 %v1669
    %v2182 = vcvt.s32.f32 %v1670
    %v2183 = vcvt.s32.f32 %v1671
    %v2184 = vcvt.s32.f32 %v1672
    %v2185 = vcvt.s32.f32 %v1673
    %v2186 = vcvt.s32.f32 %v1674
    %v2187 = vcvt.s32.f32 %v1675
    %v2188 = vcvt.s32.f32 %v1676
    %v2189 = vcvt.s32.f32 %v1677
    %v2190 = vcvt.s32.f32 %v1678
    %v2191 = vcvt.s32.f32 %v1679
    %v2192 = vcvt.s32.f32 %v1680
    %v2193 = vcvt.s32.f32 %v1681
    %v2194 = vcvt.s32.f32 %v1682
    %v2195 = vcvt.s32.f32 %v1683
    %v2196 = vcvt.s32.f32 %v1684
    %v2197 = vcvt.s32.f32 %v1685
    %v2198 = vcvt.s32.f32 %v1686
    %v2199 = vcvt.s32.f32 %v1687
    %v2200 = vcvt.s32.f32 %v1688
    %v2201 = vcvt.s32.f32 %v1689
    %v2202 = vcvt.s32.f32 %v1690
    %v2203 = vcvt.s32.f32 %v1691
    %v2204 = vcvt.s32.f32 %v1692
    %v2205 = vcvt.s32.f32 %v1693
    %v2206 = vcvt.s32.f32 %v1694
    %v2207 = vcvt.s32.f32 %v1695
    %v2208 = vcvt.s32.f32 %v1696
    %v2209 = vcvt.s32.f32 %v1697
    %v2210 = vcvt.s32.f32 %v1698
    %v2211 = vcvt.s32.f32 %v1699
    %v2212 = vcvt.s32.f32 %v1700
    %v2213 = vcvt.s32.f32 %v1701
    %v2214 = vcvt.s32.f32 %v1702
    %v2215 = vcvt.s32.f32 %v1703
    %v2216 = vcvt.s32.f32 %v1704
    %v2217 = vcvt.s32.f32 %v1705
    %v2218 = vcvt.s32.f32 %v1706
    %v2219 = vcvt.s32.f32 %v1707
    %v2220 = vcvt.s32.f32 %v1708
    %v2221 = vcvt.s32.f32 %v1709
    %v2222 = vcvt.s32.f32 %v1710
    %v2223 = vcvt.s32.f32 %v1711
    %v2224 = vcvt.s32.f32 %v1712
    %v2225 = vcvt.s32.f32 %v1713
    %v2226 = vcvt.s32.f32 %v1714
    %v2227 = vcvt.s32.f32 %v1715
    %v2228 = vcvt.s32.f32 %v1716
    %v2229 = vcvt.s32.f32 %v1717
    %v2230 = vcvt.s32.f32 %v1718
    %v2231 = vcvt.s32.f32 %v1719
    %v2232 = vcvt.s32.f32 %v1720
    %v2233 = vcvt.s32.f32 %v1721
    %v2234 = vcvt.s32.f32 %v1722
    %v2235 = vcvt.s32.f32 %v1723
    %v2236 = vcvt.s32.f32 %v1724
    %v2237 = vcvt.s32.f32 %v1725
    %v2238 = vcvt.s32.f32 %v1726
    %v2239 = vcvt.s32.f32 %v1727
    %v2240 = vcvt.s32.f32 %v1728
    %v2241 = vcvt.s32.f32 %v1729
    %v2242 = vcvt.s32.f32 %v1730
    %v2243 = vcvt.s32.f32 %v1731
    %v2244 = vcvt.s32.f32 %v1732
    %v2245 = vcvt.s32.f32 %v1733
    %v2246 = vcvt.s32.f32 %v1734
    %v2247 = vcvt.s32.f32 %v1735
    %v2248 = vcvt.s32.f32 %v1736
    %v2249 = vcvt.s32.f32 %v1737
    %v2250 = vcvt.s32.f32 %v1738
    %v2251 = vcvt.s32.f32 %v1739
    %v2252 = vcvt.s32.f32 %v1740
    %v2253 = vcvt.s32.f32 %v1741
    %v2254 = vcvt.s32.f32 %v1742
    %v2255 = vcvt.s32.f32 %v1743
    %v2256 = vcvt.s32.f32 %v1744
    %v2257 = vcvt.s32.f32 %v1745
    %v2258 = vcvt.s32.f32 %v1746
    %v2259 = vcvt.s32.f32 %v1747
    %v2260 = vcvt.s32.f32 %v1748
    %v2261 = vcvt.s32.f32 %v1749
    %v2262 = vcvt.s32.f32 %v1750
    %v2263 = vcvt.s32.f32 %v1751
    %v2264 = vcvt.s32.f32 %v1752
    %v2265 = vcvt.s32.f32 %v1753
    %v2266 = vcvt.s32.f32 %v1754
    %v2267 = vcvt.s32.f32 %v1755
    %v2268 = vcvt.s32.f32 %v1756
    %v2269 = vcvt.s32.f32 %v1757
    %v2270 = vcvt.s32.f32 %v1758
    %v2271 = vcvt.s32.f32 %v1759
    %v2272 = vcvt.s32.f32 %v1760
    %v2273 = vcvt.s32.f32 %v1761
    %v2274 = vcvt.s32.f32 %v1762
    %v2275 = vcvt.s32.f32 %v1763
    %v2276 = vcvt.s32.f32 %v1764
    %v2277 = vcvt.s32.f32 %v1765
    %v2278 = vcvt.s32.f32 %v1766
    %v2279 = vcvt.s32.f32 %v1767
    %v2280 = vcvt.s32.f32 %v1768
    %v2281 = vcvt.s32.f32 %v1769
    %v2282 = vcvt.s32.f32 %v1770
    %v2283 = vcvt.s32.f32 %v1771
    %v2284 = vcvt.s32.f32 %v1772
    %v2285 = vcvt.s32.f32 %v1773
    %v2286 = vcvt.s32.f32 %v1774
    %v2287 = vcvt.s32.f32 %v1775
    %v2288 = vcvt.s32.f32 %v1776
    %v2289 = vcvt.s32.f32 %v1777
    %v2290 = vcvt.s32.f32 %v1778
    %v2291 = vcvt.s32.f32 %v1779
    %v2292 = vcvt.s32.f32 %v1780
    %v2293 = vcvt.s32.f32 %v1781
    %v2294 = vcvt.s32.f32 %v1782
    %v2295 = vcvt.s32.f32 %v1783
    %v2296 = vcvt.s32.f32 %v1784
    %v2297 = vcvt.s32.f32 %v1785
    %v2298 = vcvt.s32.f32 %v1786
    %v2299 = vcvt.s32.f32 %v1787
    %v2300 = vcvt.s32.f32 %v1788
    %v2301 = vcvt.s32.f32 %v1789
    %v2302 = vcvt.s32.f32 %v1790
    %v2303 = vcvt.s32.f32 %v1791
    %v2304 = vcvt.s32.f32 %v1792
    %v2305 = vcvt.s32.f32 %v1793
    %v2306 = vcvt.s32.f32 %v1794
    %v2307 = vcvt.s32.f32 %v1795
    %v2308 = vcvt.s32.f32 %v1796
    %v2309 = vcvt.s32.f32 %v1797
    %v2310 = vcvt.s32.f32 %v1798
    %v2311 = vcvt.s32.f32 %v1799
    %v2312 = vcvt.s32.f32 %v1800
    %v2313 = vcvt.s32.f32 %v1801
    %v2314 = vcvt.s32.f32 %v1802
    %v2315 = vcvt.s32.f32 %v1803
    %v2316 = vcvt.s32.f32 %v1804
    %v2317 = vcvt.s32.f32 %v1805
    %v2318 = vcvt.s32.f32 %v1806
    %v2319 = vcvt.s32.f32 %v1807
    %v2320 = vcvt.s32.f32 %v1808
    %v2321 = vcvt.s32.f32 %v1809
    %v2322 = vcvt.s32.f32 %v1810
    %v2323 = vcvt.s32.f32 %v1811
    %v2324 = vcvt.s32.f32 %v1812
    %v2325 = vcvt.s32.f32 %v1813
    %v2326 = vcvt.s32.f32 %v1814
    %v2327 = vcvt.s32.f32 %v1815
    %v2328 = vcvt.s32.f32 %v1816
    %v2329 = vcvt.s32.f32 %v1817
    %v2330 = vcvt.s32.f32 %v1818
    %v2331 = vcvt.s32.f32 %v1819
    %v2332 = vcvt.s32.f32 %v1820
    %v2333 = vcvt.s32.f32 %v1821
    %v2334 = vcvt.s32.f32 %v1822
    %v2335 = vcvt.s32.f32 %v1823
    %v2336 = vcvt.s32.f32 %v1824
    %v2337 = vcvt.s32.f32 %v1825
    %v2338 = vcvt.s32.f32 %v1826
    %v2339 = vcvt.s32.f32 %v1827
    %v2340 = vcvt.s32.f32 %v1828
    %v2341 = vcvt.s32.f32 %v1829
    %v2342 = vcvt.s32.f32 %v1830
    %v2343 = vcvt.s32.f32 %v1831
    %v2344 = vcvt.s32.f32 %v1832
    %v2345 = vcvt.s32.f32 %v1833
    %v2346 = vcvt.s32.f32 %v1834
    %v2347 = vcvt.s32.f32 %v1835
    %v2348 = vcvt.s32.f32 %v1836
    %v2349 = vcvt.s32.f32 %v1837
    %v2350 = vcvt.s32.f32 %v1838
    %v2351 = vcvt.s32.f32 %v1839
    %v2352 = vcvt.s32.f32 %v1840
    %v2353 = vcvt.s32.f32 %v1841
    %v2354 = vcvt.s32.f32 %v1842
    %v2355 = vcvt.s32.f32 %v1843
    %v2356 = vcvt.s32.f32 %v1844
    %v2357 = vcvt.s32.f32 %v1845
    %v2358 = vcvt.s32.f32 %v1846
    %v2359 = vcvt.s32.f32 %v1847
    %v2360 = vcvt.s32.f32 %v1848
    %v2361 = vcvt.s32.f32 %v1849
    %v2362 = vcvt.s32.f32 %v1850
    %v2364 = vlaneseq
    %v2365 = vshrl.u32 %v2364, 7
    %v2366 = vsub.s32 0, %v2365
    %v2367 = vrot.slane %v1338, %v2366
    %v2368 = vlaneseq
    %v2369 = vshrl.u32 %v2368, 7
    %v2370 = vsub.s32 1, %v2369
    %v2371 = vrot.slane %v1338, %v2370
    %v2372 = vlaneseq
    %v2373 = vshrl.u32 %v2372, 7
    %v2374 = vsub.s32 2, %v2373
    %v2375 = vrot.slane %v1338, %v2374
    %v2376 = vlaneseq
    %v2377 = vshrl.u32 %v2376, 7
    %v2378 = vsub.s32 3, %v2377
    %v2379 = vrot.slane %v1338, %v2378
    %v2380 = vlaneseq
    %v2381 = vshrl.u32 %v2380, 7
    %v2382 = vsub.s32 4, %v2381
    %v2383 = vrot.slane %v1338, %v2382
    %v2384 = vlaneseq
    %v2385 = vshrl.u32 %v2384, 7
    %v2386 = vsub.s32 5, %v2385
    %v2387 = vrot.slane %v1338, %v2386
    %v2388 = vlaneseq
    %v2389 = vshrl.u32 %v2388, 7
    %v2390 = vsub.s32 6, %v2389
    %v2391 = vrot.slane %v1338, %v2390
    %v2392 = vlaneseq
    %v2393 = vshrl.u32 %v2392, 7
    %v2394 = vsub.s32 7, %v2393
    %v2395 = vrot.slane %v1338, %v2394
    %v2404 = vmul.f32 %v1851, %v2367
    %v2405 = vmul.f32 %v1852, %v2371
    %v2406 = vmul.f32 %v1853, %v2375
    %v2407 = vmul.f32 %v1854, %v2379
    %v2408 = vmul.f32 %v1855, %v2383
    %v2409 = vmul.f32 %v1856, %v2387
    %v2410 = vmul.f32 %v1857, %v2391
    %v2411 = vmul.f32 %v1858, %v2395
    %v2412 = vmul.f32 %v1859, %v2367
    %v2413 = vmul.f32 %v1860, %v2371
    %v2414 = vmul.f32 %v1861, %v2375
    %v2415 = vmul.f32 %v1862, %v2379
    %v2416 = vmul.f32 %v1863, %v2383
    %v2417 = vmul.f32 %v1864, %v2387
    %v2418 = vmul.f32 %v1865, %v2391
    %v2419 = vmul.f32 %v1866, %v2395
    %v2420 = vmul.f32 %v1867, %v2367
    %v2421 = vmul.f32 %v1868, %v2371
    %v2422 = vmul.f32 %v1869, %v2375
    %v2423 = vmul.f32 %v1870, %v2379
    %v2424 = vmul.f32 %v1871, %v2383
    %v2425 = vmul.f32 %v1872, %v2387
    %v2426 = vmul.f32 %v1873, %v2391
    %v2427 = vmul.f32 %v1874, %v2395
    %v2428 = vmul.f32 %v1875, %v2367
    %v2429 = vmul.f32 %v1876, %v2371
    %v2430 = vmul.f32 %v1877, %v2375
    %v2431 = vmul.f32 %v1878, %v2379
    %v2432 = vmul.f32 %v1879, %v2383
    %v2433 = vmul.f32 %v1880, %v2387
    %v2434 = vmul.f32 %v1881, %v2391
    %v2435 = vmul.f32 %v1882, %v2395
    %v2436 = vmul.f32 %v1883, %v2367
    %v2437 = vmul.f32 %v1884, %v2371
    %v2438 = vmul.f32 %v1885, %v2375
    %v2439 = vmul.f32 %v1886, %v2379
    %v2440 = vmul.f32 %v1887, %v2383
    %v2441 = vmul.f32 %v1888, %v2387
    %v2442 = vmul.f32 %v1889, %v2391
    %v2443 = vmul.f32 %v1890, %v2395
    %v2444 = vmul.f32 %v1891, %v2367
    %v2445 = vmul.f32 %v1892, %v2371
    %v2446 = vmul.f32 %v1893, %v2375
    %v2447 = vmul.f32 %v1894, %v2379
    %v2448 = vmul.f32 %v1895, %v2383
    %v2449 = vmul.f32 %v1896, %v2387
    %v2450 = vmul.f32 %v1897, %v2391
    %v2451 = vmul.f32 %v1898, %v2395
    %v2452 = vmul.f32 %v1899, %v2367
    %v2453 = vmul.f32 %v1900, %v2371
    %v2454 = vmul.f32 %v1901, %v2375
    %v2455 = vmul.f32 %v1902, %v2379
    %v2456 = vmul.f32 %v1903, %v2383
    %v2457 = vmul.f32 %v1904, %v2387
    %v2458 = vmul.f32 %v1905, %v2391
    %v2459 = vmul.f32 %v1906, %v2395
    %v2460 = vmul.f32 %v1907, %v2367
    %v2461 = vmul.f32 %v1908, %v2371
    %v2462 = vmul.f32 %v1909, %v2375
    %v2463 = vmul.f32 %v1910, %v2379
    %v2464 = vmul.f32 %v1911, %v2383
    %v2465 = vmul.f32 %v1912, %v2387
    %v2466 = vmul.f32 %v1913, %v2391
    %v2467 = vmul.f32 %v1914, %v2395
    %v2468 = vmul.f32 %v1915, %v2367
    %v2469 = vmul.f32 %v1916, %v2371
    %v2470 = vmul.f32 %v1917, %v2375
    %v2471 = vmul.f32 %v1918, %v2379
    %v2472 = vmul.f32 %v1919, %v2383
    %v2473 = vmul.f32 %v1920, %v2387
    %v2474 = vmul.f32 %v1921, %v2391
    %v2475 = vmul.f32 %v1922, %v2395
    %v2476 = vmul.f32 %v1923, %v2367
    %v2477 = vmul.f32 %v1924, %v2371
    %v2478 = vmul.f32 %v1925, %v2375
    %v2479 = vmul.f32 %v1926, %v2379
    %v2480 = vmul.f32 %v1927, %v2383
    %v2481 = vmul.f32 %v1928, %v2387
    %v2482 = vmul.f32 %v1929, %v2391
    %v2483 = vmul.f32 %v1930, %v2395
    %v2484 = vmul.f32 %v1931, %v2367
    %v2485 = vmul.f32 %v1932, %v2371
    %v2486 = vmul.f32 %v1933, %v2375
    %v2487 = vmul.f32 %v1934, %v2379
    %v2488 = vmul.f32 %v1935, %v2383
    %v2489 = vmul.f32 %v1936, %v2387
    %v2490 = vmul.f32 %v1937, %v2391
    %v2491 = vmul.f32 %v1938, %v2395
    %v2492 = vmul.f32 %v1939, %v2367
    %v2493 = vmul.f32 %v1940, %v2371
    %v2494 = vmul.f32 %v1941, %v2375
    %v2495 = vmul.f32 %v1942, %v2379
    %v2496 = vmul.f32 %v1943, %v2383
    %v2497 = vmul.f32 %v1944, %v2387
    %v2498 = vmul.f32 %v1945, %v2391
    %v2499 = vmul.f32 %v1946, %v2395
    %v2500 = vmul.f32 %v1947, %v2367
    %v2501 = vmul.f32 %v1948, %v2371
    %v2502 = vmul.f32 %v1949, %v2375
    %v2503 = vmul.f32 %v1950, %v2379
    %v2504 = vmul.f32 %v1951, %v2383
    %v2505 = vmul.f32 %v1952, %v2387
    %v2506 = vmul.f32 %v1953, %v2391
    %v2507 = vmul.f32 %v1954, %v2395
    %v2508 = vmul.f32 %v1955, %v2367
    %v2509 = vmul.f32 %v1956, %v2371
    %v2510 = vmul.f32 %v1957, %v2375
    %v2511 = vmul.f32 %v1958, %v2379
    %v2512 = vmul.f32 %v1959, %v2383
    %v2513 = vmul.f32 %v1960, %v2387
    %v2514 = vmul.f32 %v1961, %v2391
    %v2515 = vmul.f32 %v1962, %v2395
    %v2516 = vmul.f32 %v1963, %v2367
    %v2517 = vmul.f32 %v1964, %v2371
    %v2518 = vmul.f32 %v1965, %v2375
    %v2519 = vmul.f32 %v1966, %v2379
    %v2520 = vmul.f32 %v1967, %v2383
    %v2521 = vmul.f32 %v1968, %v2387
    %v2522 = vmul.f32 %v1969, %v2391
    %v2523 = vmul.f32 %v1970, %v2395
    %v2524 = vmul.f32 %v1971, %v2367
    %v2525 = vmul.f32 %v1972, %v2371
    %v2526 = vmul.f32 %v1973, %v2375
    %v2527 = vmul.f32 %v1974, %v2379
    %v2528 = vmul.f32 %v1975, %v2383
    %v2529 = vmul.f32 %v1976, %v2387
    %v2530 = vmul.f32 %v1977, %v2391
    %v2531 = vmul.f32 %v1978, %v2395
    %v2532 = vmul.f32 %v1979, %v2367
    %v2533 = vmul.f32 %v1980, %v2371
    %v2534 = vmul.f32 %v1981, %v2375
    %v2535 = vmul.f32 %v1982, %v2379
    %v2536 = vmul.f32 %v1983, %v2383
    %v2537 = vmul.f32 %v1984, %v2387
    %v2538 = vmul.f32 %v1985, %v2391
    %v2539 = vmul.f32 %v1986, %v2395
    %v2540 = vmul.f32 %v1987, %v2367
    %v2541 = vmul.f32 %v1988, %v2371
    %v2542 = vmul.f32 %v1989, %v2375
    %v2543 = vmul.f32 %v1990, %v2379
    %v2544 = vmul.f32 %v1991, %v2383
    %v2545 = vmul.f32 %v1992, %v2387
    %v2546 = vmul.f32 %v1993, %v2391
    %v2547 = vmul.f32 %v1994, %v2395
    %v2548 = vmul.f32 %v1995, %v2367
    %v2549 = vmul.f32 %v1996, %v2371
    %v2550 = vmul.f32 %v1997, %v2375
    %v2551 = vmul.f32 %v1998, %v2379
    %v2552 = vmul.f32 %v1999, %v2383
    %v2553 = vmul.f32 %v2000, %v2387
    %v2554 = vmul.f32 %v2001, %v2391
    %v2555 = vmul.f32 %v2002, %v2395
    %v2556 = vmul.f32 %v2003, %v2367
    %v2557 = vmul.f32 %v2004, %v2371
    %v2558 = vmul.f32 %v2005, %v2375
    %v2559 = vmul.f32 %v2006, %v2379
    %v2560 = vmul.f32 %v2007, %v2383
    %v2561 = vmul.f32 %v2008, %v2387
    %v2562 = vmul.f32 %v2009, %v2391
    %v2563 = vmul.f32 %v2010, %v2395
    %v2564 = vmul.f32 %v2011, %v2367
    %v2565 = vmul.f32 %v2012, %v2371
    %v2566 = vmul.f32 %v2013, %v2375
    %v2567 = vmul.f32 %v2014, %v2379
    %v2568 = vmul.f32 %v2015, %v2383
    %v2569 = vmul.f32 %v2016, %v2387
    %v2570 = vmul.f32 %v2017, %v2391
    %v2571 = vmul.f32 %v2018, %v2395
    %v2572 = vmul.f32 %v2019, %v2367
    %v2573 = vmul.f32 %v2020, %v2371
    %v2574 = vmul.f32 %v2021, %v2375
    %v2575 = vmul.f32 %v2022, %v2379
    %v2576 = vmul.f32 %v2023, %v2383
    %v2577 = vmul.f32 %v2024, %v2387
    %v2578 = vmul.f32 %v2025, %v2391
    %v2579 = vmul.f32 %v2026, %v2395
    %v2580 = vmul.f32 %v2027, %v2367
    %v2581 = vmul.f32 %v2028, %v2371
    %v2582 = vmul.f32 %v2029, %v2375
    %v2583 = vmul.f32 %v2030, %v2379
    %v2584 = vmul.f32 %v2031, %v2383
    %v2585 = vmul.f32 %v2032, %v2387
    %v2586 = vmul.f32 %v2033, %v2391
    %v2587 = vmul.f32 %v2034, %v2395
    %v2588 = vmul.f32 %v2035, %v2367
    %v2589 = vmul.f32 %v2036, %v2371
    %v2590 = vmul.f32 %v2037, %v2375
    %v2591 = vmul.f32 %v2038, %v2379
    %v2592 = vmul.f32 %v2039, %v2383
    %v2593 = vmul.f32 %v2040, %v2387
    %v2594 = vmul.f32 %v2041, %v2391
    %v2595 = vmul.f32 %v2042, %v2395
    %v2596 = vmul.f32 %v2043, %v2367
    %v2597 = vmul.f32 %v2044, %v2371
    %v2598 = vmul.f32 %v2045, %v2375
    %v2599 = vmul.f32 %v2046, %v2379
    %v2600 = vmul.f32 %v2047, %v2383
    %v2601 = vmul.f32 %v2048, %v2387
    %v2602 = vmul.f32 %v2049, %v2391
    %v2603 = vmul.f32 %v2050, %v2395
    %v2604 = vmul.f32 %v2051, %v2367
    %v2605 = vmul.f32 %v2052, %v2371
    %v2606 = vmul.f32 %v2053, %v2375
    %v2607 = vmul.f32 %v2054, %v2379
    %v2608 = vmul.f32 %v2055, %v2383
    %v2609 = vmul.f32 %v2056, %v2387
    %v2610 = vmul.f32 %v2057, %v2391
    %v2611 = vmul.f32 %v2058, %v2395
    %v2612 = vmul.f32 %v2059, %v2367
    %v2613 = vmul.f32 %v2060, %v2371
    %v2614 = vmul.f32 %v2061, %v2375
    %v2615 = vmul.f32 %v2062, %v2379
    %v2616 = vmul.f32 %v2063, %v2383
    %v2617 = vmul.f32 %v2064, %v2387
    %v2618 = vmul.f32 %v2065, %v2391
    %v2619 = vmul.f32 %v2066, %v2395
    %v2620 = vmul.f32 %v2067, %v2367
    %v2621 = vmul.f32 %v2068, %v2371
    %v2622 = vmul.f32 %v2069, %v2375
    %v2623 = vmul.f32 %v2070, %v2379
    %v2624 = vmul.f32 %v2071, %v2383
    %v2625 = vmul.f32 %v2072, %v2387
    %v2626 = vmul.f32 %v2073, %v2391
    %v2627 = vmul.f32 %v2074, %v2395
    %v2628 = vmul.f32 %v2075, %v2367
    %v2629 = vmul.f32 %v2076, %v2371
    %v2630 = vmul.f32 %v2077, %v2375
    %v2631 = vmul.f32 %v2078, %v2379
    %v2632 = vmul.f32 %v2079, %v2383
    %v2633 = vmul.f32 %v2080, %v2387
    %v2634 = vmul.f32 %v2081, %v2391
    %v2635 = vmul.f32 %v2082, %v2395
    %v2636 = vmul.f32 %v2083, %v2367
    %v2637 = vmul.f32 %v2084, %v2371
    %v2638 = vmul.f32 %v2085, %v2375
    %v2639 = vmul.f32 %v2086, %v2379
    %v2640 = vmul.f32 %v2087, %v2383
    %v2641 = vmul.f32 %v2088, %v2387
    %v2642 = vmul.f32 %v2089, %v2391
    %v2643 = vmul.f32 %v2090, %v2395
    %v2644 = vmul.f32 %v2091, %v2367
    %v2645 = vmul.f32 %v2092, %v2371
    %v2646 = vmul.f32 %v2093, %v2375
    %v2647 = vmul.f32 %v2094, %v2379
    %v2648 = vmul.f32 %v2095, %v2383
    %v2649 = vmul.f32 %v2096, %v2387
    %v2650 = vmul.f32 %v2097, %v2391
    %v2651 = vmul.f32 %v2098, %v2395
    %v2652 = vmul.f32 %v2099, %v2367
    %v2653 = vmul.f32 %v2100, %v2371
    %v2654 = vmul.f32 %v2101, %v2375
    %v2655 = vmul.f32 %v2102, %v2379
    %v2656 = vmul.f32 %v2103, %v2383
    %v2657 = vmul.f32 %v2104, %v2387
    %v2658 = vmul.f32 %v2105, %v2391
    %v2659 = vmul.f32 %v2106, %v2395
    %v2660 = vmul.f32 %v2107, %v2367
    %v2661 = vmul.f32 %v2108, %v2371
    %v2662 = vmul.f32 %v2109, %v2375
    %v2663 = vmul.f32 %v2110, %v2379
    %v2664 = vmul.f32 %v2111, %v2383
    %v2665 = vmul.f32 %v2112, %v2387
    %v2666 = vmul.f32 %v2113, %v2391
    %v2667 = vmul.f32 %v2114, %v2395
    %v2668 = vmul.f32 %v2115, %v2367
    %v2669 = vmul.f32 %v2116, %v2371
    %v2670 = vmul.f32 %v2117, %v2375
    %v2671 = vmul.f32 %v2118, %v2379
    %v2672 = vmul.f32 %v2119, %v2383
    %v2673 = vmul.f32 %v2120, %v2387
    %v2674 = vmul.f32 %v2121, %v2391
    %v2675 = vmul.f32 %v2122, %v2395
    %v2676 = vmul.f32 %v2123, %v2367
    %v2677 = vmul.f32 %v2124, %v2371
    %v2678 = vmul.f32 %v2125, %v2375
    %v2679 = vmul.f32 %v2126, %v2379
    %v2680 = vmul.f32 %v2127, %v2383
    %v2681 = vmul.f32 %v2128, %v2387
    %v2682 = vmul.f32 %v2129, %v2391
    %v2683 = vmul.f32 %v2130, %v2395
    %v2684 = vmul.f32 %v2131, %v2367
    %v2685 = vmul.f32 %v2132, %v2371
    %v2686 = vmul.f32 %v2133, %v2375
    %v2687 = vmul.f32 %v2134, %v2379
    %v2688 = vmul.f32 %v2135, %v2383
    %v2689 = vmul.f32 %v2136, %v2387
    %v2690 = vmul.f32 %v2137, %v2391
    %v2691 = vmul.f32 %v2138, %v2395
    %v2692 = vmul.f32 %v2139, %v2367
    %v2693 = vmul.f32 %v2140, %v2371
    %v2694 = vmul.f32 %v2141, %v2375
    %v2695 = vmul.f32 %v2142, %v2379
    %v2696 = vmul.f32 %v2143, %v2383
    %v2697 = vmul.f32 %v2144, %v2387
    %v2698 = vmul.f32 %v2145, %v2391
    %v2699 = vmul.f32 %v2146, %v2395
    %v2700 = vmul.f32 %v2147, %v2367
    %v2701 = vmul.f32 %v2148, %v2371
    %v2702 = vmul.f32 %v2149, %v2375
    %v2703 = vmul.f32 %v2150, %v2379
    %v2704 = vmul.f32 %v2151, %v2383
    %v2705 = vmul.f32 %v2152, %v2387
    %v2706 = vmul.f32 %v2153, %v2391
    %v2707 = vmul.f32 %v2154, %v2395
    %v2708 = vmul.f32 %v2155, %v2367
    %v2709 = vmul.f32 %v2156, %v2371
    %v2710 = vmul.f32 %v2157, %v2375
    %v2711 = vmul.f32 %v2158, %v2379
    %v2712 = vmul.f32 %v2159, %v2383
    %v2713 = vmul.f32 %v2160, %v2387
    %v2714 = vmul.f32 %v2161, %v2391
    %v2715 = vmul.f32 %v2162, %v2395
    %v2716 = vmul.f32 %v2163, %v2367
    %v2717 = vmul.f32 %v2164, %v2371
    %v2718 = vmul.f32 %v2165, %v2375
    %v2719 = vmul.f32 %v2166, %v2379
    %v2720 = vmul.f32 %v2167, %v2383
    %v2721 = vmul.f32 %v2168, %v2387
    %v2722 = vmul.f32 %v2169, %v2391
    %v2723 = vmul.f32 %v2170, %v2395
    %v2724 = vmul.f32 %v2171, %v2367
    %v2725 = vmul.f32 %v2172, %v2371
    %v2726 = vmul.f32 %v2173, %v2375
    %v2727 = vmul.f32 %v2174, %v2379
    %v2728 = vmul.f32 %v2175, %v2383
    %v2729 = vmul.f32 %v2176, %v2387
    %v2730 = vmul.f32 %v2177, %v2391
    %v2731 = vmul.f32 %v2178, %v2395
    %v2732 = vmul.f32 %v2179, %v2367
    %v2733 = vmul.f32 %v2180, %v2371
    %v2734 = vmul.f32 %v2181, %v2375
    %v2735 = vmul.f32 %v2182, %v2379
    %v2736 = vmul.f32 %v2183, %v2383
    %v2737 = vmul.f32 %v2184, %v2387
    %v2738 = vmul.f32 %v2185, %v2391
    %v2739 = vmul.f32 %v2186, %v2395
    %v2740 = vmul.f32 %v2187, %v2367
    %v2741 = vmul.f32 %v2188, %v2371
    %v2742 = vmul.f32 %v2189, %v2375
    %v2743 = vmul.f32 %v2190, %v2379
    %v2744 = vmul.f32 %v2191, %v2383
    %v2745 = vmul.f32 %v2192, %v2387
    %v2746 = vmul.f32 %v2193, %v2391
    %v2747 = vmul.f32 %v2194, %v2395
    %v2748 = vmul.f32 %v2195, %v2367
    %v2749 = vmul.f32 %v2196, %v2371
    %v2750 = vmul.f32 %v2197, %v2375
    %v2751 = vmul.f32 %v2198, %v2379
    %v2752 = vmul.f32 %v2199, %v2383
    %v2753 = vmul.f32 %v2200, %v2387
    %v2754 = vmul.f32 %v2201, %v2391
    %v2755 = vmul.f32 %v2202, %v2395
    %v2756 = vmul.f32 %v2203, %v2367
    %v2757 = vmul.f32 %v2204, %v2371
    %v2758 = vmul.f32 %v2205, %v2375
    %v2759 = vmul.f32 %v2206, %v2379
    %v2760 = vmul.f32 %v2207, %v2383
    %v2761 = vmul.f32 %v2208, %v2387
    %v2762 = vmul.f32 %v2209, %v2391
    %v2763 = vmul.f32 %v2210, %v2395
    %v2764 = vmul.f32 %v2211, %v2367
    %v2765 = vmul.f32 %v2212, %v2371
    %v2766 = vmul.f32 %v2213, %v2375
    %v2767 = vmul.f32 %v2214, %v2379
    %v2768 = vmul.f32 %v2215, %v2383
    %v2769 = vmul.f32 %v2216, %v2387
    %v2770 = vmul.f32 %v2217, %v2391
    %v2771 = vmul.f32 %v2218, %v2395
    %v2772 = vmul.f32 %v2219, %v2367
    %v2773 = vmul.f32 %v2220, %v2371
    %v2774 = vmul.f32 %v2221, %v2375
    %v2775 = vmul.f32 %v2222, %v2379
    %v2776 = vmul.f32 %v2223, %v2383
    %v2777 = vmul.f32 %v2224, %v2387
    %v2778 = vmul.f32 %v2225, %v2391
    %v2779 = vmul.f32 %v2226, %v2395
    %v2780 = vmul.f32 %v2227, %v2367
    %v2781 = vmul.f32 %v2228, %v2371
    %v2782 = vmul.f32 %v2229, %v2375
    %v2783 = vmul.f32 %v2230, %v2379
    %v2784 = vmul.f32 %v2231, %v2383
    %v2785 = vmul.f32 %v2232, %v2387
    %v2786 = vmul.f32 %v2233, %v2391
    %v2787 = vmul.f32 %v2234, %v2395
    %v2788 = vmul.f32 %v2235, %v2367
    %v2789 = vmul.f32 %v2236, %v2371
    %v2790 = vmul.f32 %v2237, %v2375
    %v2791 = vmul.f32 %v2238, %v2379
    %v2792 = vmul.f32 %v2239, %v2383
    %v2793 = vmul.f32 %v2240, %v2387
    %v2794 = vmul.f32 %v2241, %v2391
    %v2795 = vmul.f32 %v2242, %v2395
    %v2796 = vmul.f32 %v2243, %v2367
    %v2797 = vmul.f32 %v2244, %v2371
    %v2798 = vmul.f32 %v2245, %v2375
    %v2799 = vmul.f32 %v2246, %v2379
    %v2800 = vmul.f32 %v2247, %v2383
    %v2801 = vmul.f32 %v2248, %v2387
    %v2802 = vmul.f32 %v2249, %v2391
    %v2803 = vmul.f32 %v2250, %v2395
    %v2804 = vmul.f32 %v2251, %v2367
    %v2805 = vmul.f32 %v2252, %v2371
    %v2806 = vmul.f32 %v2253, %v2375
    %v2807 = vmul.f32 %v2254, %v2379
    %v2808 = vmul.f32 %v2255, %v2383
    %v2809 = vmul.f32 %v2256, %v2387
    %v2810 = vmul.f32 %v2257, %v2391
    %v2811 = vmul.f32 %v2258, %v2395
    %v2812 = vmul.f32 %v2259, %v2367
    %v2813 = vmul.f32 %v2260, %v2371
    %v2814 = vmul.f32 %v2261, %v2375
    %v2815 = vmul.f32 %v2262, %v2379
    %v2816 = vmul.f32 %v2263, %v2383
    %v2817 = vmul.f32 %v2264, %v2387
    %v2818 = vmul.f32 %v2265, %v2391
    %v2819 = vmul.f32 %v2266, %v2395
    %v2820 = vmul.f32 %v2267, %v2367
    %v2821 = vmul.f32 %v2268, %v2371
    %v2822 = vmul.f32 %v2269, %v2375
    %v2823 = vmul.f32 %v2270, %v2379
    %v2824 = vmul.f32 %v2271, %v2383
    %v2825 = vmul.f32 %v2272, %v2387
    %v2826 = vmul.f32 %v2273, %v2391
    %v2827 = vmul.f32 %v2274, %v2395
    %v2828 = vmul.f32 %v2275, %v2367
    %v2829 = vmul.f32 %v2276, %v2371
    %v2830 = vmul.f32 %v2277, %v2375
    %v2831 = vmul.f32 %v2278, %v2379
    %v2832 = vmul.f32 %v2279, %v2383
    %v2833 = vmul.f32 %v2280, %v2387
    %v2834 = vmul.f32 %v2281, %v2391
    %v2835 = vmul.f32 %v2282, %v2395
    %v2836 = vmul.f32 %v2283, %v2367
    %v2837 = vmul.f32 %v2284, %v2371
    %v2838 = vmul.f32 %v2285, %v2375
    %v2839 = vmul.f32 %v2286, %v2379
    %v2840 = vmul.f32 %v2287, %v2383
    %v2841 = vmul.f32 %v2288, %v2387
    %v2842 = vmul.f32 %v2289, %v2391
    %v2843 = vmul.f32 %v2290, %v2395
    %v2844 = vmul.f32 %v2291, %v2367
    %v2845 = vmul.f32 %v2292, %v2371
    %v2846 = vmul.f32 %v2293, %v2375
    %v2847 = vmul.f32 %v2294, %v2379
    %v2848 = vmul.f32 %v2295, %v2383
    %v2849 = vmul.f32 %v2296, %v2387
    %v2850 = vmul.f32 %v2297, %v2391
    %v2851 = vmul.f32 %v2298, %v2395
    %v2852 = vmul.f32 %v2299, %v2367
    %v2853 = vmul.f32 %v2300, %v2371
    %v2854 = vmul.f32 %v2301, %v2375
    %v2855 = vmul.f32 %v2302, %v2379
    %v2856 = vmul.f32 %v2303, %v2383
    %v2857 = vmul.f32 %v2304, %v2387
    %v2858 = vmul.f32 %v2305, %v2391
    %v2859 = vmul.f32 %v2306, %v2395
    %v2860 = vmul.f32 %v2307, %v2367
    %v2861 = vmul.f32 %v2308, %v2371
    %v2862 = vmul.f32 %v2309, %v2375
    %v2863 = vmul.f32 %v2310, %v2379
    %v2864 = vmul.f32 %v2311, %v2383
    %v2865 = vmul.f32 %v2312, %v2387
    %v2866 = vmul.f32 %v2313, %v2391
    %v2867 = vmul.f32 %v2314, %v2395
    %v2868 = vmul.f32 %v2315, %v2367
    %v2869 = vmul.f32 %v2316, %v2371
    %v2870 = vmul.f32 %v2317, %v2375
    %v2871 = vmul.f32 %v2318, %v2379
    %v2872 = vmul.f32 %v2319, %v2383
    %v2873 = vmul.f32 %v2320, %v2387
    %v2874 = vmul.f32 %v2321, %v2391
    %v2875 = vmul.f32 %v2322, %v2395
    %v2876 = vmul.f32 %v2323, %v2367
    %v2877 = vmul.f32 %v2324, %v2371
    %v2878 = vmul.f32 %v2325, %v2375
    %v2879 = vmul.f32 %v2326, %v2379
    %v2880 = vmul.f32 %v2327, %v2383
    %v2881 = vmul.f32 %v2328, %v2387
    %v2882 = vmul.f32 %v2329, %v2391
    %v2883 = vmul.f32 %v2330, %v2395
    %v2884 = vmul.f32 %v2331, %v2367
    %v2885 = vmul.f32 %v2332, %v2371
    %v2886 = vmul.f32 %v2333, %v2375
    %v2887 = vmul.f32 %v2334, %v2379
    %v2888 = vmul.f32 %v2335, %v2383
    %v2889 = vmul.f32 %v2336, %v2387
    %v2890 = vmul.f32 %v2337, %v2391
    %v2891 = vmul.f32 %v2338, %v2395
    %v2892 = vmul.f32 %v2339, %v2367
    %v2893 = vmul.f32 %v2340, %v2371
    %v2894 = vmul.f32 %v2341, %v2375
    %v2895 = vmul.f32 %v2342, %v2379
    %v2896 = vmul.f32 %v2343, %v2383
    %v2897 = vmul.f32 %v2344, %v2387
    %v2898 = vmul.f32 %v2345, %v2391
    %v2899 = vmul.f32 %v2346, %v2395
    %v2900 = vmul.f32 %v2347, %v2367
    %v2901 = vmul.f32 %v2348, %v2371
    %v2902 = vmul.f32 %v2349, %v2375
    %v2903 = vmul.f32 %v2350, %v2379
    %v2904 = vmul.f32 %v2351, %v2383
    %v2905 = vmul.f32 %v2352, %v2387
    %v2906 = vmul.f32 %v2353, %v2391
    %v2907 = vmul.f32 %v2354, %v2395
    %v2908 = vmul.f32 %v2355, %v2367
    %v2909 = vmul.f32 %v2356, %v2371
    %v2910 = vmul.f32 %v2357, %v2375
    %v2911 = vmul.f32 %v2358, %v2379
    %v2912 = vmul.f32 %v2359, %v2383
    %v2913 = vmul.f32 %v2360, %v2387
    %v2914 = vmul.f32 %v2361, %v2391
    %v2915 = vmul.f32 %v2362, %v2395
    %v2916 = vpack.c.bf16 %v2412, %v2404
    %v2917 = vpack.c.bf16 %v2413, %v2405
    %v2918 = vpack.c.bf16 %v2414, %v2406
    %v2919 = vpack.c.bf16 %v2415, %v2407
    %v2920 = vpack.c.bf16 %v2416, %v2408
    %v2921 = vpack.c.bf16 %v2417, %v2409
    %v2922 = vpack.c.bf16 %v2418, %v2410
    %v2923 = vpack.c.bf16 %v2419, %v2411
    %v2924 = vpack.c.bf16 %v2428, %v2420
    %v2925 = vpack.c.bf16 %v2429, %v2421
    %v2926 = vpack.c.bf16 %v2430, %v2422
    %v2927 = vpack.c.bf16 %v2431, %v2423
    %v2928 = vpack.c.bf16 %v2432, %v2424
    %v2929 = vpack.c.bf16 %v2433, %v2425
    %v2930 = vpack.c.bf16 %v2434, %v2426
    %v2931 = vpack.c.bf16 %v2435, %v2427
    %v2932 = vpack.c.bf16 %v2444, %v2436
    %v2933 = vpack.c.bf16 %v2445, %v2437
    %v2934 = vpack.c.bf16 %v2446, %v2438
    %v2935 = vpack.c.bf16 %v2447, %v2439
    %v2936 = vpack.c.bf16 %v2448, %v2440
    %v2937 = vpack.c.bf16 %v2449, %v2441
    %v2938 = vpack.c.bf16 %v2450, %v2442
    %v2939 = vpack.c.bf16 %v2451, %v2443
    %v2940 = vpack.c.bf16 %v2460, %v2452
    %v2941 = vpack.c.bf16 %v2461, %v2453
    %v2942 = vpack.c.bf16 %v2462, %v2454
    %v2943 = vpack.c.bf16 %v2463, %v2455
    %v2944 = vpack.c.bf16 %v2464, %v2456
    %v2945 = vpack.c.bf16 %v2465, %v2457
    %v2946 = vpack.c.bf16 %v2466, %v2458
    %v2947 = vpack.c.bf16 %v2467, %v2459
    %v2948 = vpack.c.bf16 %v2476, %v2468
    %v2949 = vpack.c.bf16 %v2477, %v2469
    %v2950 = vpack.c.bf16 %v2478, %v2470
    %v2951 = vpack.c.bf16 %v2479, %v2471
    %v2952 = vpack.c.bf16 %v2480, %v2472
    %v2953 = vpack.c.bf16 %v2481, %v2473
    %v2954 = vpack.c.bf16 %v2482, %v2474
    %v2955 = vpack.c.bf16 %v2483, %v2475
    %v2956 = vpack.c.bf16 %v2492, %v2484
    %v2957 = vpack.c.bf16 %v2493, %v2485
    %v2958 = vpack.c.bf16 %v2494, %v2486
    %v2959 = vpack.c.bf16 %v2495, %v2487
    %v2960 = vpack.c.bf16 %v2496, %v2488
    %v2961 = vpack.c.bf16 %v2497, %v2489
    %v2962 = vpack.c.bf16 %v2498, %v2490
    %v2963 = vpack.c.bf16 %v2499, %v2491
    %v2964 = vpack.c.bf16 %v2508, %v2500
    %v2965 = vpack.c.bf16 %v2509, %v2501
    %v2966 = vpack.c.bf16 %v2510, %v2502
    %v2967 = vpack.c.bf16 %v2511, %v2503
    %v2968 = vpack.c.bf16 %v2512, %v2504
    %v2969 = vpack.c.bf16 %v2513, %v2505
    %v2970 = vpack.c.bf16 %v2514, %v2506
    %v2971 = vpack.c.bf16 %v2515, %v2507
    %v2972 = vpack.c.bf16 %v2524, %v2516
    %v2973 = vpack.c.bf16 %v2525, %v2517
    %v2974 = vpack.c.bf16 %v2526, %v2518
    %v2975 = vpack.c.bf16 %v2527, %v2519
    %v2976 = vpack.c.bf16 %v2528, %v2520
    %v2977 = vpack.c.bf16 %v2529, %v2521
    %v2978 = vpack.c.bf16 %v2530, %v2522
    %v2979 = vpack.c.bf16 %v2531, %v2523
    %v2980 = vpack.c.bf16 %v2540, %v2532
    %v2981 = vpack.c.bf16 %v2541, %v2533
    %v2982 = vpack.c.bf16 %v2542, %v2534
    %v2983 = vpack.c.bf16 %v2543, %v2535
    %v2984 = vpack.c.bf16 %v2544, %v2536
    %v2985 = vpack.c.bf16 %v2545, %v2537
    %v2986 = vpack.c.bf16 %v2546, %v2538
    %v2987 = vpack.c.bf16 %v2547, %v2539
    %v2988 = vpack.c.bf16 %v2556, %v2548
    %v2989 = vpack.c.bf16 %v2557, %v2549
    %v2990 = vpack.c.bf16 %v2558, %v2550
    %v2991 = vpack.c.bf16 %v2559, %v2551
    %v2992 = vpack.c.bf16 %v2560, %v2552
    %v2993 = vpack.c.bf16 %v2561, %v2553
    %v2994 = vpack.c.bf16 %v2562, %v2554
    %v2995 = vpack.c.bf16 %v2563, %v2555
    %v2996 = vpack.c.bf16 %v2572, %v2564
    %v2997 = vpack.c.bf16 %v2573, %v2565
    %v2998 = vpack.c.bf16 %v2574, %v2566
    %v2999 = vpack.c.bf16 %v2575, %v2567
    %v3000 = vpack.c.bf16 %v2576, %v2568
    %v3001 = vpack.c.bf16 %v2577, %v2569
    %v3002 = vpack.c.bf16 %v2578, %v2570
    %v3003 = vpack.c.bf16 %v2579, %v2571
    %v3004 = vpack.c.bf16 %v2588, %v2580
    %v3005 = vpack.c.bf16 %v2589, %v2581
    %v3006 = vpack.c.bf16 %v2590, %v2582
    %v3007 = vpack.c.bf16 %v2591, %v2583
    %v3008 = vpack.c.bf16 %v2592, %v2584
    %v3009 = vpack.c.bf16 %v2593, %v2585
    %v3010 = vpack.c.bf16 %v2594, %v2586
    %v3011 = vpack.c.bf16 %v2595, %v2587
    %v3012 = vpack.c.bf16 %v2604, %v2596
    %v3013 = vpack.c.bf16 %v2605, %v2597
    %v3014 = vpack.c.bf16 %v2606, %v2598
    %v3015 = vpack.c.bf16 %v2607, %v2599
    %v3016 = vpack.c.bf16 %v2608, %v2600
    %v3017 = vpack.c.bf16 %v2609, %v2601
    %v3018 = vpack.c.bf16 %v2610, %v2602
    %v3019 = vpack.c.bf16 %v2611, %v2603
    %v3020 = vpack.c.bf16 %v2620, %v2612
    %v3021 = vpack.c.bf16 %v2621, %v2613
    %v3022 = vpack.c.bf16 %v2622, %v2614
    %v3023 = vpack.c.bf16 %v2623, %v2615
    %v3024 = vpack.c.bf16 %v2624, %v2616
    %v3025 = vpack.c.bf16 %v2625, %v2617
    %v3026 = vpack.c.bf16 %v2626, %v2618
    %v3027 = vpack.c.bf16 %v2627, %v2619
    %v3028 = vpack.c.bf16 %v2636, %v2628
    %v3029 = vpack.c.bf16 %v2637, %v2629
    %v3030 = vpack.c.bf16 %v2638, %v2630
    %v3031 = vpack.c.bf16 %v2639, %v2631
    %v3032 = vpack.c.bf16 %v2640, %v2632
    %v3033 = vpack.c.bf16 %v2641, %v2633
    %v3034 = vpack.c.bf16 %v2642, %v2634
    %v3035 = vpack.c.bf16 %v2643, %v2635
    %v3036 = vpack.c.bf16 %v2652, %v2644
    %v3037 = vpack.c.bf16 %v2653, %v2645
    %v3038 = vpack.c.bf16 %v2654, %v2646
    %v3039 = vpack.c.bf16 %v2655, %v2647
    %v3040 = vpack.c.bf16 %v2656, %v2648
    %v3041 = vpack.c.bf16 %v2657, %v2649
    %v3042 = vpack.c.bf16 %v2658, %v2650
    %v3043 = vpack.c.bf16 %v2659, %v2651
    %v3044 = vpack.c.bf16 %v2668, %v2660
    %v3045 = vpack.c.bf16 %v2669, %v2661
    %v3046 = vpack.c.bf16 %v2670, %v2662
    %v3047 = vpack.c.bf16 %v2671, %v2663
    %v3048 = vpack.c.bf16 %v2672, %v2664
    %v3049 = vpack.c.bf16 %v2673, %v2665
    %v3050 = vpack.c.bf16 %v2674, %v2666
    %v3051 = vpack.c.bf16 %v2675, %v2667
    %v3052 = vpack.c.bf16 %v2684, %v2676
    %v3053 = vpack.c.bf16 %v2685, %v2677
    %v3054 = vpack.c.bf16 %v2686, %v2678
    %v3055 = vpack.c.bf16 %v2687, %v2679
    %v3056 = vpack.c.bf16 %v2688, %v2680
    %v3057 = vpack.c.bf16 %v2689, %v2681
    %v3058 = vpack.c.bf16 %v2690, %v2682
    %v3059 = vpack.c.bf16 %v2691, %v2683
    %v3060 = vpack.c.bf16 %v2700, %v2692
    %v3061 = vpack.c.bf16 %v2701, %v2693
    %v3062 = vpack.c.bf16 %v2702, %v2694
    %v3063 = vpack.c.bf16 %v2703, %v2695
    %v3064 = vpack.c.bf16 %v2704, %v2696
    %v3065 = vpack.c.bf16 %v2705, %v2697
    %v3066 = vpack.c.bf16 %v2706, %v2698
    %v3067 = vpack.c.bf16 %v2707, %v2699
    %v3068 = vpack.c.bf16 %v2716, %v2708
    %v3069 = vpack.c.bf16 %v2717, %v2709
    %v3070 = vpack.c.bf16 %v2718, %v2710
    %v3071 = vpack.c.bf16 %v2719, %v2711
    %v3072 = vpack.c.bf16 %v2720, %v2712
    %v3073 = vpack.c.bf16 %v2721, %v2713
    %v3074 = vpack.c.bf16 %v2722, %v2714
    %v3075 = vpack.c.bf16 %v2723, %v2715
    %v3076 = vpack.c.bf16 %v2732, %v2724
    %v3077 = vpack.c.bf16 %v2733, %v2725
    %v3078 = vpack.c.bf16 %v2734, %v2726
    %v3079 = vpack.c.bf16 %v2735, %v2727
    %v3080 = vpack.c.bf16 %v2736, %v2728
    %v3081 = vpack.c.bf16 %v2737, %v2729
    %v3082 = vpack.c.bf16 %v2738, %v2730
    %v3083 = vpack.c.bf16 %v2739, %v2731
    %v3084 = vpack.c.bf16 %v2748, %v2740
    %v3085 = vpack.c.bf16 %v2749, %v2741
    %v3086 = vpack.c.bf16 %v2750, %v2742
    %v3087 = vpack.c.bf16 %v2751, %v2743
    %v3088 = vpack.c.bf16 %v2752, %v2744
    %v3089 = vpack.c.bf16 %v2753, %v2745
    %v3090 = vpack.c.bf16 %v2754, %v2746
    %v3091 = vpack.c.bf16 %v2755, %v2747
    %v3092 = vpack.c.bf16 %v2764, %v2756
    %v3093 = vpack.c.bf16 %v2765, %v2757
    %v3094 = vpack.c.bf16 %v2766, %v2758
    %v3095 = vpack.c.bf16 %v2767, %v2759
    %v3096 = vpack.c.bf16 %v2768, %v2760
    %v3097 = vpack.c.bf16 %v2769, %v2761
    %v3098 = vpack.c.bf16 %v2770, %v2762
    %v3099 = vpack.c.bf16 %v2771, %v2763
    %v3100 = vpack.c.bf16 %v2780, %v2772
    %v3101 = vpack.c.bf16 %v2781, %v2773
    %v3102 = vpack.c.bf16 %v2782, %v2774
    %v3103 = vpack.c.bf16 %v2783, %v2775
    %v3104 = vpack.c.bf16 %v2784, %v2776
    %v3105 = vpack.c.bf16 %v2785, %v2777
    %v3106 = vpack.c.bf16 %v2786, %v2778
    %v3107 = vpack.c.bf16 %v2787, %v2779
    %v3108 = vpack.c.bf16 %v2796, %v2788
    %v3109 = vpack.c.bf16 %v2797, %v2789
    %v3110 = vpack.c.bf16 %v2798, %v2790
    %v3111 = vpack.c.bf16 %v2799, %v2791
    %v3112 = vpack.c.bf16 %v2800, %v2792
    %v3113 = vpack.c.bf16 %v2801, %v2793
    %v3114 = vpack.c.bf16 %v2802, %v2794
    %v3115 = vpack.c.bf16 %v2803, %v2795
    %v3116 = vpack.c.bf16 %v2812, %v2804
    %v3117 = vpack.c.bf16 %v2813, %v2805
    %v3118 = vpack.c.bf16 %v2814, %v2806
    %v3119 = vpack.c.bf16 %v2815, %v2807
    %v3120 = vpack.c.bf16 %v2816, %v2808
    %v3121 = vpack.c.bf16 %v2817, %v2809
    %v3122 = vpack.c.bf16 %v2818, %v2810
    %v3123 = vpack.c.bf16 %v2819, %v2811
    %v3124 = vpack.c.bf16 %v2828, %v2820
    %v3125 = vpack.c.bf16 %v2829, %v2821
    %v3126 = vpack.c.bf16 %v2830, %v2822
    %v3127 = vpack.c.bf16 %v2831, %v2823
    %v3128 = vpack.c.bf16 %v2832, %v2824
    %v3129 = vpack.c.bf16 %v2833, %v2825
    %v3130 = vpack.c.bf16 %v2834, %v2826
    %v3131 = vpack.c.bf16 %v2835, %v2827
    %v3132 = vpack.c.bf16 %v2844, %v2836
    %v3133 = vpack.c.bf16 %v2845, %v2837
    %v3134 = vpack.c.bf16 %v2846, %v2838
    %v3135 = vpack.c.bf16 %v2847, %v2839
    %v3136 = vpack.c.bf16 %v2848, %v2840
    %v3137 = vpack.c.bf16 %v2849, %v2841
    %v3138 = vpack.c.bf16 %v2850, %v2842
    %v3139 = vpack.c.bf16 %v2851, %v2843
    %v3140 = vpack.c.bf16 %v2860, %v2852
    %v3141 = vpack.c.bf16 %v2861, %v2853
    %v3142 = vpack.c.bf16 %v2862, %v2854
    %v3143 = vpack.c.bf16 %v2863, %v2855
    %v3144 = vpack.c.bf16 %v2864, %v2856
    %v3145 = vpack.c.bf16 %v2865, %v2857
    %v3146 = vpack.c.bf16 %v2866, %v2858
    %v3147 = vpack.c.bf16 %v2867, %v2859
    %v3148 = vpack.c.bf16 %v2876, %v2868
    %v3149 = vpack.c.bf16 %v2877, %v2869
    %v3150 = vpack.c.bf16 %v2878, %v2870
    %v3151 = vpack.c.bf16 %v2879, %v2871
    %v3152 = vpack.c.bf16 %v2880, %v2872
    %v3153 = vpack.c.bf16 %v2881, %v2873
    %v3154 = vpack.c.bf16 %v2882, %v2874
    %v3155 = vpack.c.bf16 %v2883, %v2875
    %v3156 = vpack.c.bf16 %v2892, %v2884
    %v3157 = vpack.c.bf16 %v2893, %v2885
    %v3158 = vpack.c.bf16 %v2894, %v2886
    %v3159 = vpack.c.bf16 %v2895, %v2887
    %v3160 = vpack.c.bf16 %v2896, %v2888
    %v3161 = vpack.c.bf16 %v2897, %v2889
    %v3162 = vpack.c.bf16 %v2898, %v2890
    %v3163 = vpack.c.bf16 %v2899, %v2891
    %v3164 = vpack.c.bf16 %v2908, %v2900
    %v3165 = vpack.c.bf16 %v2909, %v2901
    %v3166 = vpack.c.bf16 %v2910, %v2902
    %v3167 = vpack.c.bf16 %v2911, %v2903
    %v3168 = vpack.c.bf16 %v2912, %v2904
    %v3169 = vpack.c.bf16 %v2913, %v2905
    %v3170 = vpack.c.bf16 %v2914, %v2906
    %v3171 = vpack.c.bf16 %v2915, %v2907
    %v3172 = vpack.c.bf16 %v1206, %v1206
    %v3173 = vpack.c.bf16 %v1207, %v1207
    %v3174 = vpack.c.bf16 %v1208, %v1208
    %v3175 = vpack.c.bf16 %v1209, %v1209
    %3176 = vmatprep.subr.bf16.mxu0 %v2917
    %3177 = vmatpush1.bf16.msra.mxu0 %v2916
    %3178 = vmatprep.subr.bf16.mxu0 %v2925
    %3179 = vmatpush1.bf16.msra.mxu0 %v2924
    %3180 = vmatprep.subr.bf16.mxu0 %v2933
    %3181 = vmatpush1.bf16.msra.mxu0 %v2932
    %3182 = vmatprep.subr.bf16.mxu0 %v2941
    %3183 = vmatpush1.bf16.msra.mxu0 %v2940
    %3184 = vmatprep.subr.bf16.mxu0 %v2949
    %3185 = vmatpush1.bf16.msra.mxu0 %v2948
    %3186 = vmatprep.subr.bf16.mxu0 %v2957
    %3187 = vmatpush1.bf16.msra.mxu0 %v2956
    %3188 = vmatprep.subr.bf16.mxu0 %v2965
    %3189 = vmatpush1.bf16.msra.mxu0 %v2964
    %3190 = vmatprep.subr.bf16.mxu0 %v2973
    %3191 = vmatpush1.bf16.msra.mxu0 %v2972
    %3192 = vmatprep.subr.bf16.mxu0 %v2981
    %3193 = vmatpush1.bf16.msra.mxu0 %v2980
    %3194 = vmatprep.subr.bf16.mxu0 %v2989
    %3195 = vmatpush1.bf16.msra.mxu0 %v2988
    %3196 = vmatprep.subr.bf16.mxu0 %v2997
    %3197 = vmatpush1.bf16.msra.mxu0 %v2996
    %3198 = vmatprep.subr.bf16.mxu0 %v3005
    %3199 = vmatpush1.bf16.msra.mxu0 %v3004
    %3200 = vmatprep.subr.bf16.mxu0 %v3013
    %3201 = vmatpush1.bf16.msra.mxu0 %v3012
    %3202 = vmatprep.subr.bf16.mxu0 %v3021
    %3203 = vmatpush1.bf16.msra.mxu0 %v3020
    %3204 = vmatprep.subr.bf16.mxu0 %v3029
    %3205 = vmatpush1.bf16.msra.mxu0 %v3028
    %3206 = vmatprep.subr.bf16.mxu0 %v3037
    %3207 = vmatpush1.bf16.msra.mxu0 %v3036
    %3208 = vmatprep.mubr.bf16.mxu0 %v3173
    %3209 = vmatmul.mubr.bf16.gmra.mrb[0].mxu0 %v3172
    %v3210 = vpop.f32.mrb[0].mxu0
    %v3211 = vadd.f32 0.0, %v3210
    %v3212 = vpop.f32.mrb[0].mxu0
    %v3213 = vadd.f32 0.0, %v3212
    %v3214 = vpop.f32.mrb[0].mxu0
    %v3215 = vpop.f32.mrb[0].mxu0
    %3216 = vdwg.mxu0
    %3217 = vmatprep.subr.bf16.mxu0 %v3045
    %3218 = vmatpush1.bf16.msra.mxu0 %v3044
    %3219 = vmatprep.subr.bf16.mxu0 %v3053
    %3220 = vmatpush1.bf16.msra.mxu0 %v3052
    %3221 = vmatprep.subr.bf16.mxu0 %v3061
    %3222 = vmatpush1.bf16.msra.mxu0 %v3060
    %3223 = vmatprep.subr.bf16.mxu0 %v3069
    %3224 = vmatpush1.bf16.msra.mxu0 %v3068
    %3225 = vmatprep.subr.bf16.mxu0 %v3077
    %3226 = vmatpush1.bf16.msra.mxu0 %v3076
    %3227 = vmatprep.subr.bf16.mxu0 %v3085
    %3228 = vmatpush1.bf16.msra.mxu0 %v3084
    %3229 = vmatprep.subr.bf16.mxu0 %v3093
    %3230 = vmatpush1.bf16.msra.mxu0 %v3092
    %3231 = vmatprep.subr.bf16.mxu0 %v3101
    %3232 = vmatpush1.bf16.msra.mxu0 %v3100
    %3233 = vmatprep.subr.bf16.mxu0 %v3109
    %3234 = vmatpush1.bf16.msra.mxu0 %v3108
    %3235 = vmatprep.subr.bf16.mxu0 %v3117
    %3236 = vmatpush1.bf16.msra.mxu0 %v3116
    %3237 = vmatprep.subr.bf16.mxu0 %v3125
    %3238 = vmatpush1.bf16.msra.mxu0 %v3124
    %3239 = vmatprep.subr.bf16.mxu0 %v3133
    %3240 = vmatpush1.bf16.msra.mxu0 %v3132
    %3241 = vmatprep.subr.bf16.mxu0 %v3141
    %3242 = vmatpush1.bf16.msra.mxu0 %v3140
    %3243 = vmatprep.subr.bf16.mxu0 %v3149
    %3244 = vmatpush1.bf16.msra.mxu0 %v3148
    %3245 = vmatprep.subr.bf16.mxu0 %v3157
    %3246 = vmatpush1.bf16.msra.mxu0 %v3156
    %3247 = vmatprep.subr.bf16.mxu0 %v3165
    %3248 = vmatpush1.bf16.msra.mxu0 %v3164
    %3249 = vmatprep.mubr.bf16.mxu0 %v3175
    %3250 = vmatmul.mubr.bf16.gmra.mrb[0].mxu0 %v3174
    %v3251 = vpop.f32.mrb[0].mxu0
    %v3252 = vadd.f32 %v3211, %v3251
    %v3253 = vpop.f32.mrb[0].mxu0
    %v3254 = vadd.f32 %v3213, %v3253
    %v3255 = vpop.f32.mrb[0].mxu0
    %v3256 = vpop.f32.mrb[0].mxu0
    %3257 = vdwg.mxu0
    %3258 = vmatprep.subr.bf16.mxu0 %v2919
    %3259 = vmatpush1.bf16.msra.mxu0 %v2918
    %3260 = vmatprep.subr.bf16.mxu0 %v2927
    %3261 = vmatpush1.bf16.msra.mxu0 %v2926
    %3262 = vmatprep.subr.bf16.mxu0 %v2935
    %3263 = vmatpush1.bf16.msra.mxu0 %v2934
    %3264 = vmatprep.subr.bf16.mxu0 %v2943
    %3265 = vmatpush1.bf16.msra.mxu0 %v2942
    %3266 = vmatprep.subr.bf16.mxu0 %v2951
    %3267 = vmatpush1.bf16.msra.mxu0 %v2950
    %3268 = vmatprep.subr.bf16.mxu0 %v2959
    %3269 = vmatpush1.bf16.msra.mxu0 %v2958
    %3270 = vmatprep.subr.bf16.mxu0 %v2967
    %3271 = vmatpush1.bf16.msra.mxu0 %v2966
    %3272 = vmatprep.subr.bf16.mxu0 %v2975
    %3273 = vmatpush1.bf16.msra.mxu0 %v2974
    %3274 = vmatprep.subr.bf16.mxu0 %v2983
    %3275 = vmatpush1.bf16.msra.mxu0 %v2982
    %3276 = vmatprep.subr.bf16.mxu0 %v2991
    %3277 = vmatpush1.bf16.msra.mxu0 %v2990
    %3278 = vmatprep.subr.bf16.mxu0 %v2999
    %3279 = vmatpush1.bf16.msra.mxu0 %v2998
    %3280 = vmatprep.subr.bf16.mxu0 %v3007
    %3281 = vmatpush1.bf16.msra.mxu0 %v3006
    %3282 = vmatprep.subr.bf16.mxu0 %v3015
    %3283 = vmatpush1.bf16.msra.mxu0 %v3014
    %3284 = vmatprep.subr.bf16.mxu0 %v3023
    %3285 = vmatpush1.bf16.msra.mxu0 %v3022
    %3286 = vmatprep.subr.bf16.mxu0 %v3031
    %3287 = vmatpush1.bf16.msra.mxu0 %v3030
    %3288 = vmatprep.subr.bf16.mxu0 %v3039
    %3289 = vmatpush1.bf16.msra.mxu0 %v3038
    %3290 = vmatprep.mubr.bf16.mxu0 %v3173
    %3291 = vmatmul.mubr.bf16.gmra.mrb[0].mxu0 %v3172
    %v3292 = vpop.f32.mrb[0].mxu0
    %v3293 = vadd.f32 0.0, %v3292
    %v3294 = vpop.f32.mrb[0].mxu0
    %v3295 = vadd.f32 0.0, %v3294
    %v3296 = vpop.f32.mrb[0].mxu0
    %v3297 = vpop.f32.mrb[0].mxu0
    %3298 = vdwg.mxu0
    %3299 = vmatprep.subr.bf16.mxu0 %v3047
    %3300 = vmatpush1.bf16.msra.mxu0 %v3046
    %3301 = vmatprep.subr.bf16.mxu0 %v3055
    %3302 = vmatpush1.bf16.msra.mxu0 %v3054
    %3303 = vmatprep.subr.bf16.mxu0 %v3063
    %3304 = vmatpush1.bf16.msra.mxu0 %v3062
    %3305 = vmatprep.subr.bf16.mxu0 %v3071
    %3306 = vmatpush1.bf16.msra.mxu0 %v3070
    %3307 = vmatprep.subr.bf16.mxu0 %v3079
    %3308 = vmatpush1.bf16.msra.mxu0 %v3078
    %3309 = vmatprep.subr.bf16.mxu0 %v3087
    %3310 = vmatpush1.bf16.msra.mxu0 %v3086
    %3311 = vmatprep.subr.bf16.mxu0 %v3095
    %3312 = vmatpush1.bf16.msra.mxu0 %v3094
    %3313 = vmatprep.subr.bf16.mxu0 %v3103
    %3314 = vmatpush1.bf16.msra.mxu0 %v3102
    %3315 = vmatprep.subr.bf16.mxu0 %v3111
    %3316 = vmatpush1.bf16.msra.mxu0 %v3110
    %3317 = vmatprep.subr.bf16.mxu0 %v3119
    %3318 = vmatpush1.bf16.msra.mxu0 %v3118
    %3319 = vmatprep.subr.bf16.mxu0 %v3127
    %3320 = vmatpush1.bf16.msra.mxu0 %v3126
    %3321 = vmatprep.subr.bf16.mxu0 %v3135
    %3322 = vmatpush1.bf16.msra.mxu0 %v3134
    %3323 = vmatprep.subr.bf16.mxu0 %v3143
    %3324 = vmatpush1.bf16.msra.mxu0 %v3142
    %3325 = vmatprep.subr.bf16.mxu0 %v3151
    %3326 = vmatpush1.bf16.msra.mxu0 %v3150
    %3327 = vmatprep.subr.bf16.mxu0 %v3159
    %3328 = vmatpush1.bf16.msra.mxu0 %v3158
    %3329 = vmatprep.subr.bf16.mxu0 %v3167
    %3330 = vmatpush1.bf16.msra.mxu0 %v3166
    %3331 = vmatprep.mubr.bf16.mxu0 %v3175
    %3332 = vmatmul.mubr.bf16.gmra.mrb[0].mxu0 %v3174
    %v3333 = vpop.f32.mrb[0].mxu0
    %v3334 = vadd.f32 %v3293, %v3333
    %v3335 = vpop.f32.mrb[0].mxu0
    %v3336 = vadd.f32 %v3295, %v3335
    %v3337 = vpop.f32.mrb[0].mxu0
    %v3338 = vpop.f32.mrb[0].mxu0
    %3339 = vdwg.mxu0
    %3340 = vmatprep.subr.bf16.mxu0 %v2921
    %3341 = vmatpush1.bf16.msra.mxu0 %v2920
    %3342 = vmatprep.subr.bf16.mxu0 %v2929
    %3343 = vmatpush1.bf16.msra.mxu0 %v2928
    %3344 = vmatprep.subr.bf16.mxu0 %v2937
    %3345 = vmatpush1.bf16.msra.mxu0 %v2936
    %3346 = vmatprep.subr.bf16.mxu0 %v2945
    %3347 = vmatpush1.bf16.msra.mxu0 %v2944
    %3348 = vmatprep.subr.bf16.mxu0 %v2953
    %3349 = vmatpush1.bf16.msra.mxu0 %v2952
    %3350 = vmatprep.subr.bf16.mxu0 %v2961
    %3351 = vmatpush1.bf16.msra.mxu0 %v2960
    %3352 = vmatprep.subr.bf16.mxu0 %v2969
    %3353 = vmatpush1.bf16.msra.mxu0 %v2968
    %3354 = vmatprep.subr.bf16.mxu0 %v2977
    %3355 = vmatpush1.bf16.msra.mxu0 %v2976
    %3356 = vmatprep.subr.bf16.mxu0 %v2985
    %3357 = vmatpush1.bf16.msra.mxu0 %v2984
    %3358 = vmatprep.subr.bf16.mxu0 %v2993
    %3359 = vmatpush1.bf16.msra.mxu0 %v2992
    %3360 = vmatprep.subr.bf16.mxu0 %v3001
    %3361 = vmatpush1.bf16.msra.mxu0 %v3000
    %3362 = vmatprep.subr.bf16.mxu0 %v3009
    %3363 = vmatpush1.bf16.msra.mxu0 %v3008
    %3364 = vmatprep.subr.bf16.mxu0 %v3017
    %3365 = vmatpush1.bf16.msra.mxu0 %v3016
    %3366 = vmatprep.subr.bf16.mxu0 %v3025
    %3367 = vmatpush1.bf16.msra.mxu0 %v3024
    %3368 = vmatprep.subr.bf16.mxu0 %v3033
    %3369 = vmatpush1.bf16.msra.mxu0 %v3032
    %3370 = vmatprep.subr.bf16.mxu0 %v3041
    %3371 = vmatpush1.bf16.msra.mxu0 %v3040
    %3372 = vmatprep.mubr.bf16.mxu0 %v3173
    %3373 = vmatmul.mubr.bf16.gmra.mrb[0].mxu0 %v3172
    %v3374 = vpop.f32.mrb[0].mxu0
    %v3375 = vadd.f32 0.0, %v3374
    %v3376 = vpop.f32.mrb[0].mxu0
    %v3377 = vadd.f32 0.0, %v3376
    %v3378 = vpop.f32.mrb[0].mxu0
    %v3379 = vpop.f32.mrb[0].mxu0
    %3380 = vdwg.mxu0
    %3381 = vmatprep.subr.bf16.mxu0 %v3049
    %3382 = vmatpush1.bf16.msra.mxu0 %v3048
    %3383 = vmatprep.subr.bf16.mxu0 %v3057
    %3384 = vmatpush1.bf16.msra.mxu0 %v3056
    %3385 = vmatprep.subr.bf16.mxu0 %v3065
    %3386 = vmatpush1.bf16.msra.mxu0 %v3064
    %3387 = vmatprep.subr.bf16.mxu0 %v3073
    %3388 = vmatpush1.bf16.msra.mxu0 %v3072
    %3389 = vmatprep.subr.bf16.mxu0 %v3081
    %3390 = vmatpush1.bf16.msra.mxu0 %v3080
    %3391 = vmatprep.subr.bf16.mxu0 %v3089
    %3392 = vmatpush1.bf16.msra.mxu0 %v3088
    %3393 = vmatprep.subr.bf16.mxu0 %v3097
    %3394 = vmatpush1.bf16.msra.mxu0 %v3096
    %3395 = vmatprep.subr.bf16.mxu0 %v3105
    %3396 = vmatpush1.bf16.msra.mxu0 %v3104
    %3397 = vmatprep.subr.bf16.mxu0 %v3113
    %3398 = vmatpush1.bf16.msra.mxu0 %v3112
    %3399 = vmatprep.subr.bf16.mxu0 %v3121
    %3400 = vmatpush1.bf16.msra.mxu0 %v3120
    %3401 = vmatprep.subr.bf16.mxu0 %v3129
    %3402 = vmatpush1.bf16.msra.mxu0 %v3128
    %3403 = vmatprep.subr.bf16.mxu0 %v3137
    %3404 = vmatpush1.bf16.msra.mxu0 %v3136
    %3405 = vmatprep.subr.bf16.mxu0 %v3145
    %3406 = vmatpush1.bf16.msra.mxu0 %v3144
    %3407 = vmatprep.subr.bf16.mxu0 %v3153
    %3408 = vmatpush1.bf16.msra.mxu0 %v3152
    %3409 = vmatprep.subr.bf16.mxu0 %v3161
    %3410 = vmatpush1.bf16.msra.mxu0 %v3160
    %3411 = vmatprep.subr.bf16.mxu0 %v3169
    %3412 = vmatpush1.bf16.msra.mxu0 %v3168
    %3413 = vmatprep.mubr.bf16.mxu0 %v3175
    %3414 = vmatmul.mubr.bf16.gmra.mrb[0].mxu0 %v3174
    %v3415 = vpop.f32.mrb[0].mxu0
    %v3416 = vadd.f32 %v3375, %v3415
    %v3417 = vpop.f32.mrb[0].mxu0
    %v3418 = vadd.f32 %v3377, %v3417
    %v3419 = vpop.f32.mrb[0].mxu0
    %v3420 = vpop.f32.mrb[0].mxu0
    %3421 = vdwg.mxu0
    %3422 = vmatprep.subr.bf16.mxu0 %v2923
    %3423 = vmatpush1.bf16.msra.mxu0 %v2922
    %3424 = vmatprep.subr.bf16.mxu0 %v2931
    %3425 = vmatpush1.bf16.msra.mxu0 %v2930
    %3426 = vmatprep.subr.bf16.mxu0 %v2939
    %3427 = vmatpush1.bf16.msra.mxu0 %v2938
    %3428 = vmatprep.subr.bf16.mxu0 %v2947
    %3429 = vmatpush1.bf16.msra.mxu0 %v2946
    %3430 = vmatprep.subr.bf16.mxu0 %v2955
    %3431 = vmatpush1.bf16.msra.mxu0 %v2954
    %3432 = vmatprep.subr.bf16.mxu0 %v2963
    %3433 = vmatpush1.bf16.msra.mxu0 %v2962
    %3434 = vmatprep.subr.bf16.mxu0 %v2971
    %3435 = vmatpush1.bf16.msra.mxu0 %v2970
    %3436 = vmatprep.subr.bf16.mxu0 %v2979
    %3437 = vmatpush1.bf16.msra.mxu0 %v2978
    %3438 = vmatprep.subr.bf16.mxu0 %v2987
    %3439 = vmatpush1.bf16.msra.mxu0 %v2986
    %3440 = vmatprep.subr.bf16.mxu0 %v2995
    %3441 = vmatpush1.bf16.msra.mxu0 %v2994
    %3442 = vmatprep.subr.bf16.mxu0 %v3003
    %3443 = vmatpush1.bf16.msra.mxu0 %v3002
    %3444 = vmatprep.subr.bf16.mxu0 %v3011
    %3445 = vmatpush1.bf16.msra.mxu0 %v3010
    %3446 = vmatprep.subr.bf16.mxu0 %v3019
    %3447 = vmatpush1.bf16.msra.mxu0 %v3018
    %3448 = vmatprep.subr.bf16.mxu0 %v3027
    %3449 = vmatpush1.bf16.msra.mxu0 %v3026
    %3450 = vmatprep.subr.bf16.mxu0 %v3035
    %3451 = vmatpush1.bf16.msra.mxu0 %v3034
    %3452 = vmatprep.subr.bf16.mxu0 %v3043
    %3453 = vmatpush1.bf16.msra.mxu0 %v3042
    %3454 = vmatprep.mubr.bf16.mxu0 %v3173
    %3455 = vmatmul.mubr.bf16.gmra.mrb[0].mxu0 %v3172
    %v3456 = vpop.f32.mrb[0].mxu0
    %v3457 = vadd.f32 0.0, %v3456
    %v3458 = vpop.f32.mrb[0].mxu0
    %v3459 = vadd.f32 0.0, %v3458
    %v3460 = vpop.f32.mrb[0].mxu0
    %v3461 = vpop.f32.mrb[0].mxu0
    %3462 = vdwg.mxu0
    %3463 = vmatprep.subr.bf16.mxu0 %v3051
    %3464 = vmatpush1.bf16.msra.mxu0 %v3050
    %3465 = vmatprep.subr.bf16.mxu0 %v3059
    %3466 = vmatpush1.bf16.msra.mxu0 %v3058
    %3467 = vmatprep.subr.bf16.mxu0 %v3067
    %3468 = vmatpush1.bf16.msra.mxu0 %v3066
    %3469 = vmatprep.subr.bf16.mxu0 %v3075
    %3470 = vmatpush1.bf16.msra.mxu0 %v3074
    %3471 = vmatprep.subr.bf16.mxu0 %v3083
    %3472 = vmatpush1.bf16.msra.mxu0 %v3082
    %3473 = vmatprep.subr.bf16.mxu0 %v3091
    %3474 = vmatpush1.bf16.msra.mxu0 %v3090
    %3475 = vmatprep.subr.bf16.mxu0 %v3099
    %3476 = vmatpush1.bf16.msra.mxu0 %v3098
    %3477 = vmatprep.subr.bf16.mxu0 %v3107
    %3478 = vmatpush1.bf16.msra.mxu0 %v3106
    %3479 = vmatprep.subr.bf16.mxu0 %v3115
    %3480 = vmatpush1.bf16.msra.mxu0 %v3114
    %3481 = vmatprep.subr.bf16.mxu0 %v3123
    %3482 = vmatpush1.bf16.msra.mxu0 %v3122
    %3483 = vmatprep.subr.bf16.mxu0 %v3131
    %3484 = vmatpush1.bf16.msra.mxu0 %v3130
    %3485 = vmatprep.subr.bf16.mxu0 %v3139
    %3486 = vmatpush1.bf16.msra.mxu0 %v3138
    %3487 = vmatprep.subr.bf16.mxu0 %v3147
    %3488 = vmatpush1.bf16.msra.mxu0 %v3146
    %3489 = vmatprep.subr.bf16.mxu0 %v3155
    %3490 = vmatpush1.bf16.msra.mxu0 %v3154
    %3491 = vmatprep.subr.bf16.mxu0 %v3163
    %3492 = vmatpush1.bf16.msra.mxu0 %v3162
    %3493 = vmatprep.subr.bf16.mxu0 %v3171
    %3494 = vmatpush1.bf16.msra.mxu0 %v3170
    %3495 = vmatprep.mubr.bf16.mxu0 %v3175
    %3496 = vmatmul.mubr.bf16.gmra.mrb[0].mxu0 %v3174
    %v3497 = vpop.f32.mrb[0].mxu0
    %v3498 = vadd.f32 %v3457, %v3497
    %v3499 = vpop.f32.mrb[0].mxu0
    %v3500 = vadd.f32 %v3459, %v3499
    %v3501 = vpop.f32.mrb[0].mxu0
    %v3502 = vpop.f32.mrb[0].mxu0
    %3503 = vdwg.mxu0
    %v3504 = vld [vmem:[#allocation7 + $0x10] sm:$0xff]
    %v3505 = vld [vmem:[#allocation7 + $0x18] sm:$0xff]
    %v3506 = vrot.slane %v3252, 4
    %v3507 = vadd.f32 %v3252, %v3506
    %v3508 = vrot.slane %v3507, 2
    %v3509 = vadd.f32 %v3507, %v3508
    %v3510 = vrot.slane %v3509, 1
    %v3511 = vadd.f32 %v3509, %v3510
    %v3512 = vrot.slane %v3254, 4
    %v3513 = vadd.f32 %v3254, %v3512
    %v3514 = vrot.slane %v3513, 2
    %v3515 = vadd.f32 %v3513, %v3514
    %v3516 = vrot.slane %v3515, 1
    %v3517 = vadd.f32 %v3515, %v3516
    %v3518 = vrot.slane %v3334, 4
    %v3519 = vadd.f32 %v3334, %v3518
    %v3520 = vrot.slane %v3519, 2
    %v3521 = vadd.f32 %v3519, %v3520
    %v3522 = vrot.slane %v3521, 1
    %v3523 = vadd.f32 %v3521, %v3522
    %v3524 = vrot.slane %v3336, 4
    %v3525 = vadd.f32 %v3336, %v3524
    %v3526 = vrot.slane %v3525, 2
    %v3527 = vadd.f32 %v3525, %v3526
    %v3528 = vrot.slane %v3527, 1
    %v3529 = vadd.f32 %v3527, %v3528
    %v3530 = vrot.slane %v3416, 4
    %v3531 = vadd.f32 %v3416, %v3530
    %v3532 = vrot.slane %v3531, 2
    %v3533 = vadd.f32 %v3531, %v3532
    %v3534 = vrot.slane %v3533, 1
    %v3535 = vadd.f32 %v3533, %v3534
    %v3536 = vrot.slane %v3418, 4
    %v3537 = vadd.f32 %v3418, %v3536
    %v3538 = vrot.slane %v3537, 2
    %v3539 = vadd.f32 %v3537, %v3538
    %v3540 = vrot.slane %v3539, 1
    %v3541 = vadd.f32 %v3539, %v3540
    %v3542 = vrot.slane %v3498, 4
    %v3543 = vadd.f32 %v3498, %v3542
    %v3544 = vrot.slane %v3543, 2
    %v3545 = vadd.f32 %v3543, %v3544
    %v3546 = vrot.slane %v3545, 1
    %v3547 = vadd.f32 %v3545, %v3546
    %v3548 = vrot.slane %v3500, 4
    %v3549 = vadd.f32 %v3500, %v3548
    %v3550 = vrot.slane %v3549, 2
    %v3551 = vadd.f32 %v3549, %v3550
    %v3552 = vrot.slane %v3551, 1
    %v3553 = vadd.f32 %v3551, %v3552
    %v3554 = vmul.f32 %v3511, %v250
    %v3555 = vmul.f32 %v3517, %v250
    %v3556 = vmul.f32 %v3523, %v250
    %v3557 = vmul.f32 %v3529, %v250
    %v3558 = vmul.f32 %v3535, %v250
    %v3559 = vmul.f32 %v3541, %v250
    %v3560 = vmul.f32 %v3547, %v250
    %v3561 = vmul.f32 %v3553, %v250
    %v3562 = vsub.f32 %v3252, %v3554
    %v3563 = vsub.f32 %v3254, %v3555
    %v3564 = vsub.f32 %v3334, %v3556
    %v3565 = vsub.f32 %v3336, %v3557
    %v3566 = vsub.f32 %v3416, %v3558
    %v3567 = vsub.f32 %v3418, %v3559
    %v3568 = vsub.f32 %v3498, %v3560
    %v3569 = vsub.f32 %v3500, %v3561
    %v3570 = vmul.f32 %v3562, %v3562
    %v3571 = vmul.f32 %v3563, %v3563
    %v3572 = vmul.f32 %v3564, %v3564
    %v3573 = vmul.f32 %v3565, %v3565
    %v3574 = vmul.f32 %v3566, %v3566
    %v3575 = vmul.f32 %v3567, %v3567
    %v3576 = vmul.f32 %v3568, %v3568
    %v3577 = vmul.f32 %v3569, %v3569
    %v3578 = vrot.slane %v3570, 4
    %v3579 = vadd.f32 %v3570, %v3578
    %v3580 = vrot.slane %v3579, 2
    %v3581 = vadd.f32 %v3579, %v3580
    %v3582 = vrot.slane %v3581, 1
    %v3583 = vadd.f32 %v3581, %v3582
    %v3584 = vrot.slane %v3571, 4
    %v3585 = vadd.f32 %v3571, %v3584
    %v3586 = vrot.slane %v3585, 2
    %v3587 = vadd.f32 %v3585, %v3586
    %v3588 = vrot.slane %v3587, 1
    %v3589 = vadd.f32 %v3587, %v3588
    %v3590 = vrot.slane %v3572, 4
    %v3591 = vadd.f32 %v3572, %v3590
    %v3592 = vrot.slane %v3591, 2
    %v3593 = vadd.f32 %v3591, %v3592
    %v3594 = vrot.slane %v3593, 1
    %v3595 = vadd.f32 %v3593, %v3594
    %v3596 = vrot.slane %v3573, 4
    %v3597 = vadd.f32 %v3573, %v3596
    %v3598 = vrot.slane %v3597, 2
    %v3599 = vadd.f32 %v3597, %v3598
    %v3600 = vrot.slane %v3599, 1
    %v3601 = vadd.f32 %v3599, %v3600
    %v3602 = vrot.slane %v3574, 4
    %v3603 = vadd.f32 %v3574, %v3602
    %v3604 = vrot.slane %v3603, 2
    %v3605 = vadd.f32 %v3603, %v3604
    %v3606 = vrot.slane %v3605, 1
    %v3607 = vadd.f32 %v3605, %v3606
    %v3608 = vrot.slane %v3575, 4
    %v3609 = vadd.f32 %v3575, %v3608
    %v3610 = vrot.slane %v3609, 2
    %v3611 = vadd.f32 %v3609, %v3610
    %v3612 = vrot.slane %v3611, 1
    %v3613 = vadd.f32 %v3611, %v3612
    %v3614 = vrot.slane %v3576, 4
    %v3615 = vadd.f32 %v3576, %v3614
    %v3616 = vrot.slane %v3615, 2
    %v3617 = vadd.f32 %v3615, %v3616
    %v3618 = vrot.slane %v3617, 1
    %v3619 = vadd.f32 %v3617, %v3618
    %v3620 = vrot.slane %v3577, 4
    %v3621 = vadd.f32 %v3577, %v3620
    %v3622 = vrot.slane %v3621, 2
    %v3623 = vadd.f32 %v3621, %v3622
    %v3624 = vrot.slane %v3623, 1
    %v3625 = vadd.f32 %v3623, %v3624
    %v3626 = vmul.f32 %v3583, %v250
    %v3627 = vmul.f32 %v3589, %v250
    %v3628 = vmul.f32 %v3595, %v250
    %v3629 = vmul.f32 %v3601, %v250
    %v3630 = vmul.f32 %v3607, %v250
    %v3631 = vmul.f32 %v3613, %v250
    %v3632 = vmul.f32 %v3619, %v250
    %v3633 = vmul.f32 %v3625, %v250
    %v3634 = vadd.f32 %v3626, 0.8
    %v3635 = vadd.f32 %v3627, 0.8
    %v3636 = vadd.f32 %v3628, 0.8
    %v3637 = vadd.f32 %v3629, 0.8
    %v3638 = vadd.f32 %v3630, 0.8
    %v3639 = vadd.f32 %v3631, 0.8
    %v3640 = vadd.f32 %v3632, 0.8
    %v3641 = vadd.f32 %v3633, 0.8
    %v3642 = vrsqrt.pop %v3634
    %v3643 = vrsqrt.pop %v3635
    %v3644 = vrsqrt.pop %v3636
    %v3645 = vrsqrt.pop %v3637
    %v3646 = vrsqrt.pop %v3638
    %v3647 = vrsqrt.pop %v3639
    %v3648 = vrsqrt.pop %v3640
    %v3649 = vrsqrt.pop %v3641
    %v3650 = vmul.f32 %v3562, %v3642
    %v3651 = vmul.f32 %v3563, %v3643
    %v3652 = vmul.f32 %v3564, %v3644
    %v3653 = vmul.f32 %v3565, %v3645
    %v3654 = vmul.f32 %v3566, %v3646
    %v3655 = vmul.f32 %v3567, %v3647
    %v3656 = vmul.f32 %v3568, %v3648
    %v3657 = vmul.f32 %v3569, %v3649
    %v3659 = vlaneseq
    %v3660 = vshrl.u32 %v3659, 7
    %v3661 = vsub.s32 0, %v3660
    %v3662 = vrot.slane %v3504, %v3661
    %v3663 = vlaneseq
    %v3664 = vshrl.u32 %v3663, 7
    %v3665 = vsub.s32 1, %v3664
    %v3666 = vrot.slane %v3504, %v3665
    %v3667 = vlaneseq
    %v3668 = vshrl.u32 %v3667, 7
    %v3669 = vsub.s32 2, %v3668
    %v3670 = vrot.slane %v3504, %v3669
    %v3671 = vlaneseq
    %v3672 = vshrl.u32 %v3671, 7
    %v3673 = vsub.s32 3, %v3672
    %v3674 = vrot.slane %v3504, %v3673
    %v3675 = vlaneseq
    %v3676 = vshrl.u32 %v3675, 7
    %v3677 = vsub.s32 4, %v3676
    %v3678 = vrot.slane %v3504, %v3677
    %v3679 = vlaneseq
    %v3680 = vshrl.u32 %v3679, 7
    %v3681 = vsub.s32 5, %v3680
    %v3682 = vrot.slane %v3504, %v3681
    %v3683 = vlaneseq
    %v3684 = vshrl.u32 %v3683, 7
    %v3685 = vsub.s32 6, %v3684
    %v3686 = vrot.slane %v3504, %v3685
    %v3687 = vlaneseq
    %v3688 = vshrl.u32 %v3687, 7
    %v3689 = vsub.s32 7, %v3688
    %v3690 = vrot.slane %v3504, %v3689
    %v3699 = vmul.f32 %v3650, %v3662
    %v3700 = vmul.f32 %v3651, %v3666
    %v3701 = vmul.f32 %v3652, %v3670
    %v3702 = vmul.f32 %v3653, %v3674
    %v3703 = vmul.f32 %v3654, %v3678
    %v3704 = vmul.f32 %v3655, %v3682
    %v3705 = vmul.f32 %v3656, %v3686
    %v3706 = vmul.f32 %v3657, %v3690
    %v3708 = vlaneseq
    %v3709 = vshrl.u32 %v3708, 7
    %v3710 = vsub.s32 0, %v3709
    %v3711 = vrot.slane %v3505, %v3710
    %v3712 = vlaneseq
    %v3713 = vshrl.u32 %v3712, 7
    %v3714 = vsub.s32 1, %v3713
    %v3715 = vrot.slane %v3505, %v3714
    %v3716 = vlaneseq
    %v3717 = vshrl.u32 %v3716, 7
    %v3718 = vsub.s32 2, %v3717
    %v3719 = vrot.slane %v3505, %v3718
    %v3720 = vlaneseq
    %v3721 = vshrl.u32 %v3720, 7
    %v3722 = vsub.s32 3, %v3721
    %v3723 = vrot.slane %v3505, %v3722
    %v3724 = vlaneseq
    %v3725 = vshrl.u32 %v3724, 7
    %v3726 = vsub.s32 4, %v3725
    %v3727 = vrot.slane %v3505, %v3726
    %v3728 = vlaneseq
    %v3729 = vshrl.u32 %v3728, 7
    %v3730 = vsub.s32 5, %v3729
    %v3731 = vrot.slane %v3505, %v3730
    %v3732 = vlaneseq
    %v3733 = vshrl.u32 %v3732, 7
    %v3734 = vsub.s32 6, %v3733
    %v3735 = vrot.slane %v3505, %v3734
    %v3736 = vlaneseq
    %v3737 = vshrl.u32 %v3736, 7
    %v3738 = vsub.s32 7, %v3737
    %v3739 = vrot.slane %v3505, %v3738
    %v3748 = vadd.f32 %v3699, %v3711
    %v3749 = vadd.f32 %v3700, %v3715
    %v3750 = vadd.f32 %v3701, %v3719
    %v3751 = vadd.f32 %v3702, %v3723
    %v3752 = vadd.f32 %v3703, %v3727
    %v3753 = vadd.f32 %v3704, %v3731
    %v3754 = vadd.f32 %v3705, %v3735
    %v3755 = vadd.f32 %v3706, %v3739
    %v3756 = vmul.f32 %v3748, 0.2
    %v3757 = vmul.f32 %v3749, 0.2
    %v3758 = vmul.f32 %v3750, 0.2
    %v3759 = vmul.f32 %v3751, 0.2
    %v3760 = vmul.f32 %v3752, 0.2
    %v3761 = vmul.f32 %v3753, 0.2
    %v3762 = vmul.f32 %v3754, 0.2
    %v3763 = vmul.f32 %v3755, 0.2
    %v3764 = vmax.f32 %v3748, %v3756
    %v3765 = vmax.f32 %v3749, %v3757
    %v3766 = vmax.f32 %v3750, %v3758
    %v3767 = vmax.f32 %v3751, %v3759
    %v3768 = vmax.f32 %v3752, %v3760
    %v3769 = vmax.f32 %v3753, %v3761
    %v3770 = vmax.f32 %v3754, %v3762
    %v3771 = vmax.f32 %v3755, %v3763
    %v3772 = vld [vmem:[%s7] sm:$0xff]
    %v3773 = vld [vmem:[%s7 + $0x8] sm:$0xff]
    %v3774 = vld [vmem:[%s7 + $0x10] sm:$0xff]
    %v3775 = vld [vmem:[%s7 + $0x18] sm:$0xff]
    %v3776 = vld [vmem:[%s7 + $0x20] sm:$0xff]
    %v3777 = vld [vmem:[%s7 + $0x28] sm:$0xff]
    %v3778 = vld [vmem:[%s7 + $0x30] sm:$0xff]
    %v3779 = vld [vmem:[%s7 + $0x38] sm:$0xff]
    %v3780 = vld [vmem:[%s7 + $0x40] sm:$0xff]
    %v3781 = vld [vmem:[%s7 + $0x48] sm:$0xff]
    %v3782 = vld [vmem:[%s7 + $0x50] sm:$0xff]
    %v3783 = vld [vmem:[%s7 + $0x58] sm:$0xff]
    %v3784 = vld [vmem:[%s7 + $0x60] sm:$0xff]
    %v3785 = vld [vmem:[%s7 + $0x68] sm:$0xff]
    %v3786 = vld [vmem:[%s7 + $0x70] sm:$0xff]
    %v3787 = vld [vmem:[%s7 + $0x78] sm:$0xff]
    %v3788 = vld [vmem:[%s7 + $0x80] sm:$0xff]
    %v3789 = vld [vmem:[%s7 + $0x88] sm:$0xff]
    %v3790 = vld [vmem:[%s7 + $0x90] sm:$0xff]
    %v3791 = vld [vmem:[%s7 + $0x98] sm:$0xff]
    %v3792 = vld [vmem:[%s7 + $0xa0] sm:$0xff]
    %v3793 = vld [vmem:[%s7 + $0xa8] sm:$0xff]
    %v3794 = vld [vmem:[%s7 + $0xb0] sm:$0xff]
    %v3795 = vld [vmem:[%s7 + $0xb8] sm:$0xff]
    %v3796 = vld [vmem:[%s7 + $0xc0] sm:$0xff]
    %v3797 = vld [vmem:[%s7 + $0xc8] sm:$0xff]
    %v3798 = vld [vmem:[%s7 + $0xd0] sm:$0xff]
    %v3799 = vld [vmem:[%s7 + $0xd8] sm:$0xff]
    %v3800 = vld [vmem:[%s7 + $0xe0] sm:$0xff]
    %v3801 = vld [vmem:[%s7 + $0xe8] sm:$0xff]
    %v3802 = vld [vmem:[%s7 + $0xf0] sm:$0xff]
    %v3803 = vld [vmem:[%s7 + $0xf8] sm:$0xff]
    %v3804 = vld [vmem:[#allocation7 + $0x2d] sm:$0x1]
    %v3805 = vunpack.c.0.s8 %v3772
    %v3806 = vunpack.c.1.s8 %v3772
    %v3807 = vunpack.c.2.s8 %v3772
    %v3808 = vunpack.c.3.s8 %v3772
    %v3809 = vunpack.c.0.s8 %v3773
    %v3810 = vunpack.c.1.s8 %v3773
    %v3811 = vunpack.c.2.s8 %v3773
    %v3812 = vunpack.c.3.s8 %v3773
    %v3813 = vunpack.c.0.s8 %v3774
    %v3814 = vunpack.c.1.s8 %v3774
    %v3815 = vunpack.c.2.s8 %v3774
    %v3816 = vunpack.c.3.s8 %v3774
    %v3817 = vunpack.c.0.s8 %v3775
    %v3818 = vunpack.c.1.s8 %v3775
    %v3819 = vunpack.c.2.s8 %v3775
    %v3820 = vunpack.c.3.s8 %v3775
    %v3821 = vunpack.c.0.s8 %v3776
    %v3822 = vunpack.c.1.s8 %v3776
    %v3823 = vunpack.c.2.s8 %v3776
    %v3824 = vunpack.c.3.s8 %v3776
    %v3825 = vunpack.c.0.s8 %v3777
    %v3826 = vunpack.c.1.s8 %v3777
    %v3827 = vunpack.c.2.s8 %v3777
    %v3828 = vunpack.c.3.s8 %v3777
    %v3829 = vunpack.c.0.s8 %v3778
    %v3830 = vunpack.c.1.s8 %v3778
    %v3831 = vunpack.c.2.s8 %v3778
    %v3832 = vunpack.c.3.s8 %v3778
    %v3833 = vunpack.c.0.s8 %v3779
    %v3834 = vunpack.c.1.s8 %v3779
    %v3835 = vunpack.c.2.s8 %v3779
    %v3836 = vunpack.c.3.s8 %v3779
    %v3837 = vunpack.c.0.s8 %v3780
    %v3838 = vunpack.c.1.s8 %v3780
    %v3839 = vunpack.c.2.s8 %v3780
    %v3840 = vunpack.c.3.s8 %v3780
    %v3841 = vunpack.c.0.s8 %v3781
    %v3842 = vunpack.c.1.s8 %v3781
    %v3843 = vunpack.c.2.s8 %v3781
    %v3844 = vunpack.c.3.s8 %v3781
    %v3845 = vunpack.c.0.s8 %v3782
    %v3846 = vunpack.c.1.s8 %v3782
    %v3847 = vunpack.c.2.s8 %v3782
    %v3848 = vunpack.c.3.s8 %v3782
    %v3849 = vunpack.c.0.s8 %v3783
    %v3850 = vunpack.c.1.s8 %v3783
    %v3851 = vunpack.c.2.s8 %v3783
    %v3852 = vunpack.c.3.s8 %v3783
    %v3853 = vunpack.c.0.s8 %v3784
    %v3854 = vunpack.c.1.s8 %v3784
    %v3855 = vunpack.c.2.s8 %v3784
    %v3856 = vunpack.c.3.s8 %v3784
    %v3857 = vunpack.c.0.s8 %v3785
    %v3858 = vunpack.c.1.s8 %v3785
    %v3859 = vunpack.c.2.s8 %v3785
    %v3860 = vunpack.c.3.s8 %v3785
    %v3861 = vunpack.c.0.s8 %v3786
    %v3862 = vunpack.c.1.s8 %v3786
    %v3863 = vunpack.c.2.s8 %v3786
    %v3864 = vunpack.c.3.s8 %v3786
    %v3865 = vunpack.c.0.s8 %v3787
    %v3866 = vunpack.c.1.s8 %v3787
    %v3867 = vunpack.c.2.s8 %v3787
    %v3868 = vunpack.c.3.s8 %v3787
    %v3869 = vunpack.c.0.s8 %v3788
    %v3870 = vunpack.c.1.s8 %v3788
    %v3871 = vunpack.c.2.s8 %v3788
    %v3872 = vunpack.c.3.s8 %v3788
    %v3873 = vunpack.c.0.s8 %v3789
    %v3874 = vunpack.c.1.s8 %v3789
    %v3875 = vunpack.c.2.s8 %v3789
    %v3876 = vunpack.c.3.s8 %v3789
    %v3877 = vunpack.c.0.s8 %v3790
    %v3878 = vunpack.c.1.s8 %v3790
    %v3879 = vunpack.c.2.s8 %v3790
    %v3880 = vunpack.c.3.s8 %v3790
    %v3881 = vunpack.c.0.s8 %v3791
    %v3882 = vunpack.c.1.s8 %v3791
    %v3883 = vunpack.c.2.s8 %v3791
    %v3884 = vunpack.c.3.s8 %v3791
    %v3885 = vunpack.c.0.s8 %v3792
    %v3886 = vunpack.c.1.s8 %v3792
    %v3887 = vunpack.c.2.s8 %v3792
    %v3888 = vunpack.c.3.s8 %v3792
    %v3889 = vunpack.c.0.s8 %v3793
    %v3890 = vunpack.c.1.s8 %v3793
    %v3891 = vunpack.c.2.s8 %v3793
    %v3892 = vunpack.c.3.s8 %v3793
    %v3893 = vunpack.c.0.s8 %v3794
    %v3894 = vunpack.c.1.s8 %v3794
    %v3895 = vunpack.c.2.s8 %v3794
    %v3896 = vunpack.c.3.s8 %v3794
    %v3897 = vunpack.c.0.s8 %v3795
    %v3898 = vunpack.c.1.s8 %v3795
    %v3899 = vunpack.c.2.s8 %v3795
    %v3900 = vunpack.c.3.s8 %v3795
    %v3901 = vunpack.c.0.s8 %v3796
    %v3902 = vunpack.c.1.s8 %v3796
    %v3903 = vunpack.c.2.s8 %v3796
    %v3904 = vunpack.c.3.s8 %v3796
    %v3905 = vunpack.c.0.s8 %v3797
    %v3906 = vunpack.c.1.s8 %v3797
    %v3907 = vunpack.c.2.s8 %v3797
    %v3908 = vunpack.c.3.s8 %v3797
    %v3909 = vunpack.c.0.s8 %v3798
    %v3910 = vunpack.c.1.s8 %v3798
    %v3911 = vunpack.c.2.s8 %v3798
    %v3912 = vunpack.c.3.s8 %v3798
    %v3913 = vunpack.c.0.s8 %v3799
    %v3914 = vunpack.c.1.s8 %v3799
    %v3915 = vunpack.c.2.s8 %v3799
    %v3916 = vunpack.c.3.s8 %v3799
    %v3917 = vunpack.c.0.s8 %v3800
    %v3918 = vunpack.c.1.s8 %v3800
    %v3919 = vunpack.c.2.s8 %v3800
    %v3920 = vunpack.c.3.s8 %v3800
    %v3921 = vunpack.c.0.s8 %v3801
    %v3922 = vunpack.c.1.s8 %v3801
    %v3923 = vunpack.c.2.s8 %v3801
    %v3924 = vunpack.c.3.s8 %v3801
    %v3925 = vunpack.c.0.s8 %v3802
    %v3926 = vunpack.c.1.s8 %v3802
    %v3927 = vunpack.c.2.s8 %v3802
    %v3928 = vunpack.c.3.s8 %v3802
    %v3929 = vunpack.c.0.s8 %v3803
    %v3930 = vunpack.c.1.s8 %v3803
    %v3931 = vunpack.c.2.s8 %v3803
    %v3932 = vunpack.c.3.s8 %v3803
    %v3933 = vcvt.s32.f32 %v3805
    %v3934 = vcvt.s32.f32 %v3806
    %v3935 = vcvt.s32.f32 %v3807
    %v3936 = vcvt.s32.f32 %v3808
    %v3937 = vcvt.s32.f32 %v3809
    %v3938 = vcvt.s32.f32 %v3810
    %v3939 = vcvt.s32.f32 %v3811
    %v3940 = vcvt.s32.f32 %v3812
    %v3941 = vcvt.s32.f32 %v3813
    %v3942 = vcvt.s32.f32 %v3814
    %v3943 = vcvt.s32.f32 %v3815
    %v3944 = vcvt.s32.f32 %v3816
    %v3945 = vcvt.s32.f32 %v3817
    %v3946 = vcvt.s32.f32 %v3818
    %v3947 = vcvt.s32.f32 %v3819
    %v3948 = vcvt.s32.f32 %v3820
    %v3949 = vcvt.s32.f32 %v3821
    %v3950 = vcvt.s32.f32 %v3822
    %v3951 = vcvt.s32.f32 %v3823
    %v3952 = vcvt.s32.f32 %v3824
    %v3953 = vcvt.s32.f32 %v3825
    %v3954 = vcvt.s32.f32 %v3826
    %v3955 = vcvt.s32.f32 %v3827
    %v3956 = vcvt.s32.f32 %v3828
    %v3957 = vcvt.s32.f32 %v3829
    %v3958 = vcvt.s32.f32 %v3830
    %v3959 = vcvt.s32.f32 %v3831
    %v3960 = vcvt.s32.f32 %v3832
    %v3961 = vcvt.s32.f32 %v3833
    %v3962 = vcvt.s32.f32 %v3834
    %v3963 = vcvt.s32.f32 %v3835
    %v3964 = vcvt.s32.f32 %v3836
    %v3965 = vcvt.s32.f32 %v3837
    %v3966 = vcvt.s32.f32 %v3838
    %v3967 = vcvt.s32.f32 %v3839
    %v3968 = vcvt.s32.f32 %v3840
    %v3969 = vcvt.s32.f32 %v3841
    %v3970 = vcvt.s32.f32 %v3842
    %v3971 = vcvt.s32.f32 %v3843
    %v3972 = vcvt.s32.f32 %v3844
    %v3973 = vcvt.s32.f32 %v3845
    %v3974 = vcvt.s32.f32 %v3846
    %v3975 = vcvt.s32.f32 %v3847
    %v3976 = vcvt.s32.f32 %v3848
    %v3977 = vcvt.s32.f32 %v3849
    %v3978 = vcvt.s32.f32 %v3850
    %v3979 = vcvt.s32.f32 %v3851
    %v3980 = vcvt.s32.f32 %v3852
    %v3981 = vcvt.s32.f32 %v3853
    %v3982 = vcvt.s32.f32 %v3854
    %v3983 = vcvt.s32.f32 %v3855
    %v3984 = vcvt.s32.f32 %v3856
    %v3985 = vcvt.s32.f32 %v3857
    %v3986 = vcvt.s32.f32 %v3858
    %v3987 = vcvt.s32.f32 %v3859
    %v3988 = vcvt.s32.f32 %v3860
    %v3989 = vcvt.s32.f32 %v3861
    %v3990 = vcvt.s32.f32 %v3862
    %v3991 = vcvt.s32.f32 %v3863
    %v3992 = vcvt.s32.f32 %v3864
    %v3993 = vcvt.s32.f32 %v3865
    %v3994 = vcvt.s32.f32 %v3866
    %v3995 = vcvt.s32.f32 %v3867
    %v3996 = vcvt.s32.f32 %v3868
    %v3997 = vcvt.s32.f32 %v3869
    %v3998 = vcvt.s32.f32 %v3870
    %v3999 = vcvt.s32.f32 %v3871
    %v4000 = vcvt.s32.f32 %v3872
    %v4001 = vcvt.s32.f32 %v3873
    %v4002 = vcvt.s32.f32 %v3874
    %v4003 = vcvt.s32.f32 %v3875
    %v4004 = vcvt.s32.f32 %v3876
    %v4005 = vcvt.s32.f32 %v3877
    %v4006 = vcvt.s32.f32 %v3878
    %v4007 = vcvt.s32.f32 %v3879
    %v4008 = vcvt.s32.f32 %v3880
    %v4009 = vcvt.s32.f32 %v3881
    %v4010 = vcvt.s32.f32 %v3882
    %v4011 = vcvt.s32.f32 %v3883
    %v4012 = vcvt.s32.f32 %v3884
    %v4013 = vcvt.s32.f32 %v3885
    %v4014 = vcvt.s32.f32 %v3886
    %v4015 = vcvt.s32.f32 %v3887
    %v4016 = vcvt.s32.f32 %v3888
    %v4017 = vcvt.s32.f32 %v3889
    %v4018 = vcvt.s32.f32 %v3890
    %v4019 = vcvt.s32.f32 %v3891
    %v4020 = vcvt.s32.f32 %v3892
    %v4021 = vcvt.s32.f32 %v3893
    %v4022 = vcvt.s32.f32 %v3894
    %v4023 = vcvt.s32.f32 %v3895
    %v4024 = vcvt.s32.f32 %v3896
    %v4025 = vcvt.s32.f32 %v3897
    %v4026 = vcvt.s32.f32 %v3898
    %v4027 = vcvt.s32.f32 %v3899
    %v4028 = vcvt.s32.f32 %v3900
    %v4029 = vcvt.s32.f32 %v3901
    %v4030 = vcvt.s32.f32 %v3902
    %v4031 = vcvt.s32.f32 %v3903
    %v4032 = vcvt.s32.f32 %v3904
    %v4033 = vcvt.s32.f32 %v3905
    %v4034 = vcvt.s32.f32 %v3906
    %v4035 = vcvt.s32.f32 %v3907
    %v4036 = vcvt.s32.f32 %v3908
    %v4037 = vcvt.s32.f32 %v3909
    %v4038 = vcvt.s32.f32 %v3910
    %v4039 = vcvt.s32.f32 %v3911
    %v4040 = vcvt.s32.f32 %v3912
    %v4041 = vcvt.s32.f32 %v3913
    %v4042 = vcvt.s32.f32 %v3914
    %v4043 = vcvt.s32.f32 %v3915
    %v4044 = vcvt.s32.f32 %v3916
    %v4045 = vcvt.s32.f32 %v3917
    %v4046 = vcvt.s32.f32 %v3918
    %v4047 = vcvt.s32.f32 %v3919
    %v4048 = vcvt.s32.f32 %v3920
    %v4049 = vcvt.s32.f32 %v3921
    %v4050 = vcvt.s32.f32 %v3922
    %v4051 = vcvt.s32.f32 %v3923
    %v4052 = vcvt.s32.f32 %v3924
    %v4053 = vcvt.s32.f32 %v3925
    %v4054 = vcvt.s32.f32 %v3926
    %v4055 = vcvt.s32.f32 %v3927
    %v4056 = vcvt.s32.f32 %v3928
    %v4057 = vcvt.s32.f32 %v3929
    %v4058 = vcvt.s32.f32 %v3930
    %v4059 = vcvt.s32.f32 %v3931
    %v4060 = vcvt.s32.f32 %v3932
    %v4062 = vlaneseq
    %v4063 = vshrl.u32 %v4062, 7
    %v4064 = vsub.s32 0, %v4063
    %v4065 = vrot.slane %v3804, %v4064
    %v4067 = vmul.f32 %v3933, %v4065
    %v4068 = vmul.f32 %v3934, %v4065
    %v4069 = vmul.f32 %v3935, %v4065
    %v4070 = vmul.f32 %v3936, %v4065
    %v4071 = vmul.f32 %v3937, %v4065
    %v4072 = vmul.f32 %v3938, %v4065
    %v4073 = vmul.f32 %v3939, %v4065
    %v4074 = vmul.f32 %v3940, %v4065
    %v4075 = vmul.f32 %v3941, %v4065
    %v4076 = vmul.f32 %v3942, %v4065
    %v4077 = vmul.f32 %v3943, %v4065
    %v4078 = vmul.f32 %v3944, %v4065
    %v4079 = vmul.f32 %v3945, %v4065
    %v4080 = vmul.f32 %v3946, %v4065
    %v4081 = vmul.f32 %v3947, %v4065
    %v4082 = vmul.f32 %v3948, %v4065
    %v4083 = vmul.f32 %v3949, %v4065
    %v4084 = vmul.f32 %v3950, %v4065
    %v4085 = vmul.f32 %v3951, %v4065
    %v4086 = vmul.f32 %v3952, %v4065
    %v4087 = vmul.f32 %v3953, %v4065
    %v4088 = vmul.f32 %v3954, %v4065
    %v4089 = vmul.f32 %v3955, %v4065
    %v4090 = vmul.f32 %v3956, %v4065
    %v4091 = vmul.f32 %v3957, %v4065
    %v4092 = vmul.f32 %v3958, %v4065
    %v4093 = vmul.f32 %v3959, %v4065
    %v4094 = vmul.f32 %v3960, %v4065
    %v4095 = vmul.f32 %v3961, %v4065
    %v4096 = vmul.f32 %v3962, %v4065
    %v4097 = vmul.f32 %v3963, %v4065
    %v4098 = vmul.f32 %v3964, %v4065
    %v4099 = vmul.f32 %v3965, %v4065
    %v4100 = vmul.f32 %v3966, %v4065
    %v4101 = vmul.f32 %v3967, %v4065
    %v4102 = vmul.f32 %v3968, %v4065
    %v4103 = vmul.f32 %v3969, %v4065
    %v4104 = vmul.f32 %v3970, %v4065
    %v4105 = vmul.f32 %v3971, %v4065
    %v4106 = vmul.f32 %v3972, %v4065
    %v4107 = vmul.f32 %v3973, %v4065
    %v4108 = vmul.f32 %v3974, %v4065
    %v4109 = vmul.f32 %v3975, %v4065
    %v4110 = vmul.f32 %v3976, %v4065
    %v4111 = vmul.f32 %v3977, %v4065
    %v4112 = vmul.f32 %v3978, %v4065
    %v4113 = vmul.f32 %v3979, %v4065
    %v4114 = vmul.f32 %v3980, %v4065
    %v4115 = vmul.f32 %v3981, %v4065
    %v4116 = vmul.f32 %v3982, %v4065
    %v4117 = vmul.f32 %v3983, %v4065
    %v4118 = vmul.f32 %v3984, %v4065
    %v4119 = vmul.f32 %v3985, %v4065
    %v4120 = vmul.f32 %v3986, %v4065
    %v4121 = vmul.f32 %v3987, %v4065
    %v4122 = vmul.f32 %v3988, %v4065
    %v4123 = vmul.f32 %v3989, %v4065
    %v4124 = vmul.f32 %v3990, %v4065
    %v4125 = vmul.f32 %v3991, %v4065
    %v4126 = vmul.f32 %v3992, %v4065
    %v4127 = vmul.f32 %v3993, %v4065
    %v4128 = vmul.f32 %v3994, %v4065
    %v4129 = vmul.f32 %v3995, %v4065
    %v4130 = vmul.f32 %v3996, %v4065
    %v4131 = vmul.f32 %v3997, %v4065
    %v4132 = vmul.f32 %v3998, %v4065
    %v4133 = vmul.f32 %v3999, %v4065
    %v4134 = vmul.f32 %v4000, %v4065
    %v4135 = vmul.f32 %v4001, %v4065
    %v4136 = vmul.f32 %v4002, %v4065
    %v4137 = vmul.f32 %v4003, %v4065
    %v4138 = vmul.f32 %v4004, %v4065
    %v4139 = vmul.f32 %v4005, %v4065
    %v4140 = vmul.f32 %v4006, %v4065
    %v4141 = vmul.f32 %v4007, %v4065
    %v4142 = vmul.f32 %v4008, %v4065
    %v4143 = vmul.f32 %v4009, %v4065
    %v4144 = vmul.f32 %v4010, %v4065
    %v4145 = vmul.f32 %v4011, %v4065
    %v4146 = vmul.f32 %v4012, %v4065
    %v4147 = vmul.f32 %v4013, %v4065
    %v4148 = vmul.f32 %v4014, %v4065
    %v4149 = vmul.f32 %v4015, %v4065
    %v4150 = vmul.f32 %v4016, %v4065
    %v4151 = vmul.f32 %v4017, %v4065
    %v4152 = vmul.f32 %v4018, %v4065
    %v4153 = vmul.f32 %v4019, %v4065
    %v4154 = vmul.f32 %v4020, %v4065
    %v4155 = vmul.f32 %v4021, %v4065
    %v4156 = vmul.f32 %v4022, %v4065
    %v4157 = vmul.f32 %v4023, %v4065
    %v4158 = vmul.f32 %v4024, %v4065
    %v4159 = vmul.f32 %v4025, %v4065
    %v4160 = vmul.f32 %v4026, %v4065
    %v4161 = vmul.f32 %v4027, %v4065
    %v4162 = vmul.f32 %v4028, %v4065
    %v4163 = vmul.f32 %v4029, %v4065
    %v4164 = vmul.f32 %v4030, %v4065
    %v4165 = vmul.f32 %v4031, %v4065
    %v4166 = vmul.f32 %v4032, %v4065
    %v4167 = vmul.f32 %v4033, %v4065
    %v4168 = vmul.f32 %v4034, %v4065
    %v4169 = vmul.f32 %v4035, %v4065
    %v4170 = vmul.f32 %v4036, %v4065
    %v4171 = vmul.f32 %v4037, %v4065
    %v4172 = vmul.f32 %v4038, %v4065
    %v4173 = vmul.f32 %v4039, %v4065
    %v4174 = vmul.f32 %v4040, %v4065
    %v4175 = vmul.f32 %v4041, %v4065
    %v4176 = vmul.f32 %v4042, %v4065
    %v4177 = vmul.f32 %v4043, %v4065
    %v4178 = vmul.f32 %v4044, %v4065
    %v4179 = vmul.f32 %v4045, %v4065
    %v4180 = vmul.f32 %v4046, %v4065
    %v4181 = vmul.f32 %v4047, %v4065
    %v4182 = vmul.f32 %v4048, %v4065
    %v4183 = vmul.f32 %v4049, %v4065
    %v4184 = vmul.f32 %v4050, %v4065
    %v4185 = vmul.f32 %v4051, %v4065
    %v4186 = vmul.f32 %v4052, %v4065
    %v4187 = vmul.f32 %v4053, %v4065
    %v4188 = vmul.f32 %v4054, %v4065
    %v4189 = vmul.f32 %v4055, %v4065
    %v4190 = vmul.f32 %v4056, %v4065
    %v4191 = vmul.f32 %v4057, %v4065
    %v4192 = vmul.f32 %v4058, %v4065
    %v4193 = vmul.f32 %v4059, %v4065
    %v4194 = vmul.f32 %v4060, %v4065
    %v4195 = vpack.c.bf16 %v4068, %v4067
    %v4196 = vpack.c.bf16 %v4070, %v4069
    %v4197 = vpack.c.bf16 %v4072, %v4071
    %v4198 = vpack.c.bf16 %v4074, %v4073
    %v4199 = vpack.c.bf16 %v4076, %v4075
    %v4200 = vpack.c.bf16 %v4078, %v4077
    %v4201 = vpack.c.bf16 %v4080, %v4079
    %v4202 = vpack.c.bf16 %v4082, %v4081
    %v4203 = vpack.c.bf16 %v4084, %v4083
    %v4204 = vpack.c.bf16 %v4086, %v4085
    %v4205 = vpack.c.bf16 %v4088, %v4087
    %v4206 = vpack.c.bf16 %v4090, %v4089
    %v4207 = vpack.c.bf16 %v4092, %v4091
    %v4208 = vpack.c.bf16 %v4094, %v4093
    %v4209 = vpack.c.bf16 %v4096, %v4095
    %v4210 = vpack.c.bf16 %v4098, %v4097
    %v4211 = vpack.c.bf16 %v4100, %v4099
    %v4212 = vpack.c.bf16 %v4102, %v4101
    %v4213 = vpack.c.bf16 %v4104, %v4103
    %v4214 = vpack.c.bf16 %v4106, %v4105
    %v4215 = vpack.c.bf16 %v4108, %v4107
    %v4216 = vpack.c.bf16 %v4110, %v4109
    %v4217 = vpack.c.bf16 %v4112, %v4111
    %v4218 = vpack.c.bf16 %v4114, %v4113
    %v4219 = vpack.c.bf16 %v4116, %v4115
    %v4220 = vpack.c.bf16 %v4118, %v4117
    %v4221 = vpack.c.bf16 %v4120, %v4119
    %v4222 = vpack.c.bf16 %v4122, %v4121
    %v4223 = vpack.c.bf16 %v4124, %v4123
    %v4224 = vpack.c.bf16 %v4126, %v4125
    %v4225 = vpack.c.bf16 %v4128, %v4127
    %v4226 = vpack.c.bf16 %v4130, %v4129
    %v4227 = vpack.c.bf16 %v4132, %v4131
    %v4228 = vpack.c.bf16 %v4134, %v4133
    %v4229 = vpack.c.bf16 %v4136, %v4135
    %v4230 = vpack.c.bf16 %v4138, %v4137
    %v4231 = vpack.c.bf16 %v4140, %v4139
    %v4232 = vpack.c.bf16 %v4142, %v4141
    %v4233 = vpack.c.bf16 %v4144, %v4143
    %v4234 = vpack.c.bf16 %v4146, %v4145
    %v4235 = vpack.c.bf16 %v4148, %v4147
    %v4236 = vpack.c.bf16 %v4150, %v4149
    %v4237 = vpack.c.bf16 %v4152, %v4151
    %v4238 = vpack.c.bf16 %v4154, %v4153
    %v4239 = vpack.c.bf16 %v4156, %v4155
    %v4240 = vpack.c.bf16 %v4158, %v4157
    %v4241 = vpack.c.bf16 %v4160, %v4159
    %v4242 = vpack.c.bf16 %v4162, %v4161
    %v4243 = vpack.c.bf16 %v4164, %v4163
    %v4244 = vpack.c.bf16 %v4166, %v4165
    %v4245 = vpack.c.bf16 %v4168, %v4167
    %v4246 = vpack.c.bf16 %v4170, %v4169
    %v4247 = vpack.c.bf16 %v4172, %v4171
    %v4248 = vpack.c.bf16 %v4174, %v4173
    %v4249 = vpack.c.bf16 %v4176, %v4175
    %v4250 = vpack.c.bf16 %v4178, %v4177
    %v4251 = vpack.c.bf16 %v4180, %v4179
    %v4252 = vpack.c.bf16 %v4182, %v4181
    %v4253 = vpack.c.bf16 %v4184, %v4183
    %v4254 = vpack.c.bf16 %v4186, %v4185
    %v4255 = vpack.c.bf16 %v4188, %v4187
    %v4256 = vpack.c.bf16 %v4190, %v4189
    %v4257 = vpack.c.bf16 %v4192, %v4191
    %v4258 = vpack.c.bf16 %v4194, %v4193
    %v4259 = vpack.c.bf16 %v3764, %v3764
    %v4260 = vpack.c.bf16 %v3765, %v3765
    %v4261 = vpack.c.bf16 %v3766, %v3766
    %v4262 = vpack.c.bf16 %v3767, %v3767
    %v4263 = vpack.c.bf16 %v3768, %v3768
    %v4264 = vpack.c.bf16 %v3769, %v3769
    %v4265 = vpack.c.bf16 %v3770, %v3770
    %v4266 = vpack.c.bf16 %v3771, %v3771
    %v4267 = vld [vmem:[#allocation7 + $0x20] sm:$0x1]
    %v4269 = vlaneseq
    %v4270 = vshrl.u32 %v4269, 7
    %v4271 = vsub.s32 0, %v4270
    %v4272 = vrot.slane %v4267, %v4271
    %4274 = vmatprep.subr.bf16.mxu0 0
    %4275 = vmatpush1.bf16.msra.mxu0 %v4195
    %4276 = vmatprep.subr.bf16.mxu0 0
    %4277 = vmatpush1.bf16.msra.mxu0 %v4196
    %4278 = vmatprep.subr.bf16.mxu0 0
    %4279 = vmatpush1.bf16.msra.mxu0 %v4197
    %4280 = vmatprep.subr.bf16.mxu0 0
    %4281 = vmatpush1.bf16.msra.mxu0 %v4198
    %4282 = vmatprep.subr.bf16.mxu0 0
    %4283 = vmatpush1.bf16.msra.mxu0 %v4199
    %4284 = vmatprep.subr.bf16.mxu0 0
    %4285 = vmatpush1.bf16.msra.mxu0 %v4200
    %4286 = vmatprep.subr.bf16.mxu0 0
    %4287 = vmatpush1.bf16.msra.mxu0 %v4201
    %4288 = vmatprep.subr.bf16.mxu0 0
    %4289 = vmatpush1.bf16.msra.mxu0 %v4202
    %4290 = vmatprep.subr.bf16.mxu0 0
    %4291 = vmatpush1.bf16.msra.mxu0 %v4203
    %4292 = vmatprep.subr.bf16.mxu0 0
    %4293 = vmatpush1.bf16.msra.mxu0 %v4204
    %4294 = vmatprep.subr.bf16.mxu0 0
    %4295 = vmatpush1.bf16.msra.mxu0 %v4205
    %4296 = vmatprep.subr.bf16.mxu0 0
    %4297 = vmatpush1.bf16.msra.mxu0 %v4206
    %4298 = vmatprep.subr.bf16.mxu0 0
    %4299 = vmatpush1.bf16.msra.mxu0 %v4207
    %4300 = vmatprep.subr.bf16.mxu0 0
    %4301 = vmatpush1.bf16.msra.mxu0 %v4208
    %4302 = vmatprep.subr.bf16.mxu0 0
    %4303 = vmatpush1.bf16.msra.mxu0 %v4209
    %4304 = vmatprep.subr.bf16.mxu0 0
    %4305 = vmatpush1.bf16.msra.mxu0 %v4210
    %4306 = vmatprep.mubr.bf16.mxu0 %v4260
    %4307 = vmatmul.mubr.bf16.gmra.mrb[0].mxu0 %v4259
    %v4308 = vpop.f32.mrb[0].mxu0
    %v4309 = vadd.f32 %v4272, %v4308
    %v4310 = vpop.f32.mrb[0].mxu0
    %v4311 = vpop.f32.mrb[0].mxu0
    %v4312 = vpop.f32.mrb[0].mxu0
    %4313 = vdwg.mxu0
    %4314 = vmatprep.subr.bf16.mxu0 0
    %4315 = vmatpush1.bf16.msra.mxu0 %v4211
    %4316 = vmatprep.subr.bf16.mxu0 0
    %4317 = vmatpush1.bf16.msra.mxu0 %v4212
    %4318 = vmatprep.subr.bf16.mxu0 0
    %4319 = vmatpush1.bf16.msra.mxu0 %v4213
    %4320 = vmatprep.subr.bf16.mxu0 0
    %4321 = vmatpush1.bf16.msra.mxu0 %v4214
    %4322 = vmatprep.subr.bf16.mxu0 0
    %4323 = vmatpush1.bf16.msra.mxu0 %v4215
    %4324 = vmatprep.subr.bf16.mxu0 0
    %4325 = vmatpush1.bf16.msra.mxu0 %v4216
    %4326 = vmatprep.subr.bf16.mxu0 0
    %4327 = vmatpush1.bf16.msra.mxu0 %v4217
    %4328 = vmatprep.subr.bf16.mxu0 0
    %4329 = vmatpush1.bf16.msra.mxu0 %v4218
    %4330 = vmatprep.subr.bf16.mxu0 0
    %4331 = vmatpush1.bf16.msra.mxu0 %v4219
    %4332 = vmatprep.subr.bf16.mxu0 0
    %4333 = vmatpush1.bf16.msra.mxu0 %v4220
    %4334 = vmatprep.subr.bf16.mxu0 0
    %4335 = vmatpush1.bf16.msra.mxu0 %v4221
    %4336 = vmatprep.subr.bf16.mxu0 0
    %4337 = vmatpush1.bf16.msra.mxu0 %v4222
    %4338 = vmatprep.subr.bf16.mxu0 0
    %4339 = vmatpush1.bf16.msra.mxu0 %v4223
    %4340 = vmatprep.subr.bf16.mxu0 0
    %4341 = vmatpush1.bf16.msra.mxu0 %v4224
    %4342 = vmatprep.subr.bf16.mxu0 0
    %4343 = vmatpush1.bf16.msra.mxu0 %v4225
    %4344 = vmatprep.subr.bf16.mxu0 0
    %4345 = vmatpush1.bf16.msra.mxu0 %v4226
    %4346 = vmatprep.mubr.bf16.mxu0 %v4262
    %4347 = vmatmul.mubr.bf16.gmra.mrb[0].mxu0 %v4261
    %v4348 = vpop.f32.mrb[0].mxu0
    %v4349 = vadd.f32 %v4309, %v4348
    %v4350 = vpop.f32.mrb[0].mxu0
    %v4351 = vpop.f32.mrb[0].mxu0
    %v4352 = vpop.f32.mrb[0].mxu0
    %4353 = vdwg.mxu0
    %4354 = vmatprep.subr.bf16.mxu0 0
    %4355 = vmatpush1.bf16.msra.mxu0 %v4227
    %4356 = vmatprep.subr.bf16.mxu0 0
    %4357 = vmatpush1.bf16.msra.mxu0 %v4228
    %4358 = vmatprep.subr.bf16.mxu0 0
    %4359 = vmatpush1.bf16.msra.mxu0 %v4229
    %4360 = vmatprep.subr.bf16.mxu0 0
    %4361 = vmatpush1.bf16.msra.mxu0 %v4230
    %4362 = vmatprep.subr.bf16.mxu0 0
    %4363 = vmatpush1.bf16.msra.mxu0 %v4231
    %4364 = vmatprep.subr.bf16.mxu0 0
    %4365 = vmatpush1.bf16.msra.mxu0 %v4232
    %4366 = vmatprep.subr.bf16.mxu0 0
    %4367 = vmatpush1.bf16.msra.mxu0 %v4233
    %4368 = vmatprep.subr.bf16.mxu0 0
    %4369 = vmatpush1.bf16.msra.mxu0 %v4234
    %4370 = vmatprep.subr.bf16.mxu0 0
    %4371 = vmatpush1.bf16.msra.mxu0 %v4235
    %4372 = vmatprep.subr.bf16.mxu0 0
    %4373 = vmatpush1.bf16.msra.mxu0 %v4236
    %4374 = vmatprep.subr.bf16.mxu0 0
    %4375 = vmatpush1.bf16.msra.mxu0 %v4237
    %4376 = vmatprep.subr.bf16.mxu0 0
    %4377 = vmatpush1.bf16.msra.mxu0 %v4238
    %4378 = vmatprep.subr.bf16.mxu0 0
    %4379 = vmatpush1.bf16.msra.mxu0 %v4239
    %4380 = vmatprep.subr.bf16.mxu0 0
    %4381 = vmatpush1.bf16.msra.mxu0 %v4240
    %4382 = vmatprep.subr.bf16.mxu0 0
    %4383 = vmatpush1.bf16.msra.mxu0 %v4241
    %4384 = vmatprep.subr.bf16.mxu0 0
    %4385 = vmatpush1.bf16.msra.mxu0 %v4242
    %4386 = vmatprep.mubr.bf16.mxu0 %v4264
    %4387 = vmatmul.mubr.bf16.gmra.mrb[0].mxu0 %v4263
    %v4388 = vpop.f32.mrb[0].mxu0
    %v4389 = vadd.f32 %v4349, %v4388
    %v4390 = vpop.f32.mrb[0].mxu0
    %v4391 = vpop.f32.mrb[0].mxu0
    %v4392 = vpop.f32.mrb[0].mxu0
    %4393 = vdwg.mxu0
    %4394 = vmatprep.subr.bf16.mxu0 0
    %4395 = vmatpush1.bf16.msra.mxu0 %v4243
    %4396 = vmatprep.subr.bf16.mxu0 0
    %4397 = vmatpush1.bf16.msra.mxu0 %v4244
    %4398 = vmatprep.subr.bf16.mxu0 0
    %4399 = vmatpush1.bf16.msra.mxu0 %v4245
    %4400 = vmatprep.subr.bf16.mxu0 0
    %4401 = vmatpush1.bf16.msra.mxu0 %v4246
    %4402 = vmatprep.subr.bf16.mxu0 0
    %4403 = vmatpush1.bf16.msra.mxu0 %v4247
    %4404 = vmatprep.subr.bf16.mxu0 0
    %4405 = vmatpush1.bf16.msra.mxu0 %v4248
    %4406 = vmatprep.subr.bf16.mxu0 0
    %4407 = vmatpush1.bf16.msra.mxu0 %v4249
    %4408 = vmatprep.subr.bf16.mxu0 0
    %4409 = vmatpush1.bf16.msra.mxu0 %v4250
    %4410 = vmatprep.subr.bf16.mxu0 0
    %4411 = vmatpush1.bf16.msra.mxu0 %v4251
    %4412 = vmatprep.subr.bf16.mxu0 0
    %4413 = vmatpush1.bf16.msra.mxu0 %v4252
    %4414 = vmatprep.subr.bf16.mxu0 0
    %4415 = vmatpush1.bf16.msra.mxu0 %v4253
    %4416 = vmatprep.subr.bf16.mxu0 0
    %4417 = vmatpush1.bf16.msra.mxu0 %v4254
    %4418 = vmatprep.subr.bf16.mxu0 0
    %4419 = vmatpush1.bf16.msra.mxu0 %v4255
    %4420 = vmatprep.subr.bf16.mxu0 0
    %4421 = vmatpush1.bf16.msra.mxu0 %v4256
    %4422 = vmatprep.subr.bf16.mxu0 0
    %4423 = vmatpush1.bf16.msra.mxu0 %v4257
    %4424 = vmatprep.subr.bf16.mxu0 0
    %4425 = vmatpush1.bf16.msra.mxu0 %v4258
    %4426 = vmatprep.mubr.bf16.mxu0 %v4266
    %4427 = vmatmul.mubr.bf16.gmra.mrb[0].mxu0 %v4265
    %v4428 = vpop.f32.mrb[0].mxu0
    %v4429 = vadd.f32 %v4389, %v4428
    %v4430 = vpop.f32.mrb[0].mxu0
    %v4431 = vpop.f32.mrb[0].mxu0
    %v4432 = vpop.f32.mrb[0].mxu0
    %4433 = vdwg.mxu0
    %v4434 = vtanh.pop %v4429
    %4435 = vst.msk [vmem:[#allocation8] sm:$0xff] %vm198, %v4434
    // Predicated region
    $region50: #{tpu_custom_call.1} parent=1 // pred_check
      _
    $region51: #{tpu_custom_call.1} parent=1 // pred_check_branch
      %4437 = sbr.rel (0) target = $region53
    $region52: #{tpu_custom_call.1} parent=1 // pred_region
      %s4439 = ssub.s32 128, 128
      %4440 = vsyncadd [#allocation4], %s4439
      %s4442 = sshll.u32 [#allocation8], 4
      %s4443 = int_to_ptr.vmem [resolvable:$true] %s4442
      %4445 = dma.vmem_to_hbm [thread:$0]  %s4443, 128, %s9, [#allocation4]
    $region53: #{tpu_custom_call.1} parent=1 // pred_fallthru
      _
    // Predicated region
    $region54: #{tpu_custom_call.1} parent=1 // pred_check
      _
    $region55: #{tpu_custom_call.1} parent=1 // pred_check_branch
      %4447 = sbr.rel (0) target = $region57
    $region56: #{tpu_custom_call.1} parent=1 // pred_region
      %4448 = dma.done [#allocation4], 128
    $region57: #{tpu_custom_call.1} parent=1 // pred_fallthru
      _
    %4449 = vsyncpa [#allocation3], 1
    %4450 = vsyncpa [#allocation6], 1
    %4451 = vsyncpa [#allocation4], 1

</llo_original>
